<compile_context>
chip_gen: v7x
topology: tpu7x:2x2x1
jax: 0.10.0
libtpu: 0.0.40
codegen_flags: <defaults>
</compile_context>

<pallas_src>
import functools

import jax
import jax.numpy as jnp
from jax import lax
from jax.experimental import pallas as pl
from jax.experimental.pallas import tpu as pltpu

EPS = 1e-5  # PyTorch BatchNorm1d default eps


# ---------------------------------------------------------------------------
# Fused Pallas kernel: the full 6-block ResTemporal stack
# ---------------------------------------------------------------------------
def _res_temporal_kernel(x_ref, pslab_ref, alpha_ref, out_ref, *,
                         dilations, kernel_size, cin, cmid, rows_per_block):
    """Layouts (packed by `pack_params`):
      x_ref     : (N, Cin, T)      VMEM  activations, C on sublanes / T on lanes
      pslab_ref : (R, Cmax, 1)     VMEM  all per-block params, one row per vector:
                   per block: [w1 cols (cin) | b1 | g1 | be1 | wdw taps (K) |
                               g2 | be2 | wpw cols (cmid, zero-padded to Cmax)]
      alpha_ref : (2*L,)           SMEM  PReLU scalars [a1_0..a1_{L-1}, a2_0..]
    """
    num_layers = len(dilations)
    x = x_ref[...]                                   # (N, Cin, T) f32
    n, _, t = x.shape
    inv_cnt = 1.0 / float(n * t)

    def prow(r, c):
        v = pslab_ref[r]                             # (Cmax, 1) single vreg load
        return v[:c] if c != v.shape[0] else v

    def batch_sum(v):
        # reduce over (N, T) -> (C, 1): lane reduce + unrolled tiny batch add
        s = jnp.sum(v, axis=2, keepdims=True)        # (N, C, 1)
        acc = s[0]
        for b in range(1, n):
            acc = acc + s[b]
        return acc

    # Hoisted zero slab for the causal shifts (JAX does not CSE broadcasts).
    shifts = [(kernel_size - 1 - k) * d
              for d in dilations for k in range(kernel_size)
              if 0 < (kernel_size - 1 - k) * d < t]
    max_shift = max(shifts) if shifts else 0
    zpad = jnp.zeros((n, cmid, max_shift), jnp.float32) if max_shift > 0 else None

    cur = x
    for l, dil in enumerate(dilations):
        base = l * rows_per_block
        r_w1, r_b1 = base, base + cin
        r_g1, r_be1 = r_b1 + 1, r_b1 + 2
        r_wdw = r_be1 + 1
        r_g2, r_be2 = r_wdw + kernel_size, r_wdw + kernel_size + 1
        r_wpw = r_be2 + 1

        # ---- 1x1 conv (Cin -> Cmid) + bias: unrolled VPU FMAs, no MXU ------
        y = prow(r_b1, cmid)                         # start from the bias
        for ci in range(cin):
            y = y + cur[:, ci:ci + 1, :] * prow(r_w1 + ci, cmid)

        # ---- PReLU -> BatchNorm1d (two-pass centered stats, 1 FMA apply) ---
        a1 = alpha_ref[l]
        y = jnp.where(y > 0, y, a1 * y)
        mu1 = batch_sum(y) * inv_cnt                 # (Cmid, 1)
        d1 = y - mu1                                 # reused by the apply
        var1 = batch_sum(d1 * d1) * inv_cnt
        scale1 = lax.rsqrt(var1 + EPS) * prow(r_g1, cmid)
        y = d1 * scale1 + prow(r_be1, cmid)

        # ---- causal dilated depthwise conv (groups=C) + Chomp1d ------------
        # z[n,c,t] = sum_k wdw[k,c] * y[n,c,t - (K-1-k)*dil], zero outside.
        z = None
        for k in range(kernel_size):
            shift = (kernel_size - 1 - k) * dil
            if shift >= t:                           # tap entirely off the signal
                continue
            tap = prow(r_wdw + k, cmid)              # (Cmid, 1)
            if shift == 0:
                win = y
            else:
                win = jnp.concatenate(
                    [zpad[:, :, :shift], y[:, :, :t - shift]], axis=2)
            term = win * tap
            z = term if z is None else z + term

        # ---- PReLU -> BN2 stats only (affine folded into pointwise conv) ---
        a2 = alpha_ref[num_layers + l]
        z = jnp.where(z > 0, z, a2 * z)
        mu2 = batch_sum(z) * inv_cnt
        d2 = z - mu2                                 # feeds pointwise directly
        var2 = batch_sum(d2 * d2) * inv_cnt
        scale2 = lax.rsqrt(var2 + EPS) * prow(r_g2, cmid)   # (Cmid, 1)
        be2 = prow(r_be2, cmid)

        # ---- pointwise conv (Cmid -> Cin) with BN2 folded + residual -------
        # o = sum_cm (wpw[:,cm]*scale2[cm]) * d2[:,cm,:] + sum_cm wpw[:,cm]*be2[cm]
        bias = None
        o = None
        for cm in range(cmid):
            wcol = prow(r_wpw + cm, cin)             # (Cin, 1)
            bterm = wcol * be2[cm:cm + 1]
            bias = bterm if bias is None else bias + bterm
            term = d2[:, cm:cm + 1, :] * (wcol * scale2[cm:cm + 1])
            o = term if o is None else o + term
        cur = cur + (o + bias)

    out_ref[...] = cur


def res_temporal_pallas(x_nct, pslab, alphas, *, dilations, kernel_size, cin, cmid):
    """Full ResTemporal stack. x_nct: (N, C, T) — same layout as the PyTorch module."""
    n, c, t = x_nct.shape
    assert c == cin
    rows_per_block = pslab.shape[0] // len(dilations)
    kernel = functools.partial(_res_temporal_kernel,
                               dilations=tuple(dilations),
                               kernel_size=kernel_size, cin=cin, cmid=cmid,
                               rows_per_block=rows_per_block)
    vmem = pl.BlockSpec(memory_space=pltpu.MemorySpace.VMEM)
    smem = pl.BlockSpec(memory_space=pltpu.MemorySpace.SMEM)
    # TODO(synk): if N or T grows, add a "parallel" grid over N (v7x 2nd TC) with
    # cross-core BatchNorm partial sums, keep T a multiple of 128 for unmasked
    # lane-dense stores, and carry bf16 activations between BN stats on v6e/v7x.
    return pl.pallas_call(
        kernel,
        out_shape=jax.ShapeDtypeStruct((n, cin, t), jnp.float32),
        in_specs=[vmem,   # x
                  vmem,   # packed parameter slab (single DMA)
                  smem],  # PReLU scalars
        out_specs=vmem,
        compiler_params=pltpu.CompilerParams(vmem_limit_bytes=4 * 1024 * 1024),
    )(x_nct.astype(jnp.float32), pslab, alphas)


# ---------------------------------------------------------------------------
# Deterministic params (natural PyTorch-like shapes) + kernel-layout packing
# ---------------------------------------------------------------------------
def init_block_params(key, cin, cmid, ksize):
    ks = jax.random.split(key, 8)
    s = 0.3
    f32 = jnp.float32
    return dict(
        w1=(s * jax.random.normal(ks[0], (cmid, cin))).astype(f32),   # Conv1d(cin,cmid,1).weight[:,:,0]
        b1=(s * jax.random.normal(ks[1], (cmid,))).astype(f32),
        a1=jnp.float32(0.25),                                          # PReLU default init
        g1=(1.0 + 0.1 * jax.random.normal(ks[2], (cmid,))).astype(f32),
        be1=(0.1 * jax.random.normal(ks[3], (cmid,))).astype(f32),
        wdw=(s * jax.random.normal(ks[4], (cmid, ksize))).astype(f32), # depthwise weight[:,0,:]
        a2=jnp.float32(0.25),
        g2=(1.0 + 0.1 * jax.random.normal(ks[5], (cmid,))).astype(f32),
        be2=(0.1 * jax.random.normal(ks[6], (cmid,))).astype(f32),
        wpw=(s * jax.random.normal(ks[7], (cin, cmid))).astype(f32),   # pointwise weight[:,:,0]
    )


def pack_params(plist, cin, cmid, ksize):
    """Pack every per-block parameter into one (R_total, Cmax, 1) slab (one DMA)
    plus one (2*L,) SMEM vector of PReLU scalars."""
    max_c = max(cin, cmid)

    def row(v):
        v = jnp.asarray(v, jnp.float32).reshape(-1)
        return jnp.pad(v, (0, max_c - v.shape[0]))

    rows = []
    for p in plist:
        for ci in range(cin):
            rows.append(row(p["w1"][:, ci]))      # conv1 weight column ci
        rows.append(row(p["b1"]))
        rows.append(row(p["g1"]))
        rows.append(row(p["be1"]))
        for k in range(ksize):
            rows.append(row(p["wdw"][:, k]))      # depthwise tap k
        rows.append(row(p["g2"]))
        rows.append(row(p["be2"]))
        for cm in range(cmid):
            rows.append(row(p["wpw"][:, cm]))     # pointwise weight column cm
    pslab = jnp.stack(rows)[..., None]            # (R_total, Cmax, 1)
    alphas = jnp.concatenate(
        [jnp.stack([p["a1"] for p in plist]),
         jnp.stack([p["a2"] for p in plist])]).astype(jnp.float32)   # (2L,)
    return pslab, alphas


# ---------------------------------------------------------------------------
# Pure-JAX reference (channels-first, same math) for validation
# ---------------------------------------------------------------------------
def _block_ref(x, p, dilation, ksize):
    N, Cin, T = x.shape
    y = jnp.einsum("mc,nct->nmt", p["w1"], x) + p["b1"][None, :, None]
    y = jnp.where(y > 0, y, p["a1"] * y)
    mu = jnp.mean(y, axis=(0, 2), keepdims=True)
    var = jnp.mean((y - mu) ** 2, axis=(0, 2), keepdims=True)
    y = (y - mu) / jnp.sqrt(var + EPS) * p["g1"][None, :, None] + p["be1"][None, :, None]
    z = jnp.zeros_like(y)
    for k in range(ksize):
        s = (ksize - 1 - k) * dilation
        if s >= T:
            continue
        sh = jnp.pad(y, ((0, 0), (0, 0), (s, 0)))[:, :, :T]
        z = z + sh * p["wdw"][:, k][None, :, None]
    z = jnp.where(z > 0, z, p["a2"] * z)
    mu = jnp.mean(z, axis=(0, 2), keepdims=True)
    var = jnp.mean((z - mu) ** 2, axis=(0, 2), keepdims=True)
    z = (z - mu) / jnp.sqrt(var + EPS) * p["g2"][None, :, None] + p["be2"][None, :, None]
    return x + jnp.einsum("om,nmt->not", p["wpw"], z)


def res_temporal_ref(x, plist, dilations, ksize):
    for p, d in zip(plist, dilations):
        x = _block_ref(x, p, d, ksize)
    return x


# ---------------------------------------------------------------------------
if __name__ == "__main__":
    # Small shapes consistent with the module: Conv1d input (N, C_in, T)
    N, C_IN, C_OUT, T = 2, 4, 8, 16
    KERNEL_SIZE, INIT_DILATION, NUM_LAYERS = 3, 3, 6
    dilations = tuple(INIT_DILATION ** i for i in range(NUM_LAYERS))

    root = jax.random.PRNGKey(0)
    kx, kp = jax.random.split(root)
    x = jax.random.normal(kx, (N, C_IN, T), dtype=jnp.float32)

    pkeys = jax.random.split(kp, NUM_LAYERS)
    plist = [init_block_params(pkeys[i], C_IN, C_OUT, KERNEL_SIZE)
             for i in range(NUM_LAYERS)]
    pslab, alphas = pack_params(plist, C_IN, C_OUT, KERNEL_SIZE)

    fwd = jax.jit(functools.partial(res_temporal_pallas,
                                    dilations=dilations,
                                    kernel_size=KERNEL_SIZE,
                                    cin=C_IN, cmid=C_OUT))
    out = jax.block_until_ready(fwd(x, pslab, alphas))

    ref = jax.block_until_ready(res_temporal_ref(x, plist, dilations, KERNEL_SIZE))
    assert out.shape == x.shape, (out.shape, x.shape)
    max_err = float(jnp.max(jnp.abs(out - ref)))
    # Kernel and reference both use two-pass (centered) batch variance now; the
    # remaining difference is reduction-order / rsqrt-vs-div rounding only.
    assert jnp.allclose(out, ref, atol=5e-4, rtol=5e-4), max_err
    print("KERNEL_OK")
</pallas_src>

<mosaic_0001>
module attributes {stable_mosaic.version = 11 : i64} {
  func.func @_res_temporal_kernel(%arg0: memref<2x4x16xf32, #tpu.memory_space<vmem>>, %arg1: memref<120x8x1xf32, #tpu.memory_space<vmem>>, %arg2: memref<12xf32, #tpu.memory_space<smem>>, %arg3: memref<2x4x16xf32, #tpu.memory_space<vmem>>) attributes {dimension_semantics = [], scalar_prefetch = 0 : i64, scratch_operands = 0 : i64, tpu.core_type = #tpu.core_type<tc>} {
    %c0 = arith.constant 0 : index
    %c0_0 = arith.constant 0 : index
    %c0_1 = arith.constant 0 : index
    %0 = vector.load %arg0[%c0, %c0_0, %c0_1] : memref<2x4x16xf32, #tpu.memory_space<vmem>>, vector<2x4x16xf32>
    %cst = arith.constant 0.000000e+00 : f32
    %1 = vector.broadcast %cst : f32 to vector<2x8x9xf32>
    %c4 = arith.constant 4 : index
    %c0_2 = arith.constant 0 : index
    %c0_3 = arith.constant 0 : index
    %2 = vector.load %arg1[%c4, %c0_2, %c0_3] : memref<120x8x1xf32, #tpu.memory_space<vmem>>, vector<1x8x1xf32>
    %3 = vector.shape_cast %2 : vector<1x8x1xf32> to vector<8x1xf32>
    %4 = vector.extract_strided_slice %0 {offsets = [0, 0, 0], sizes = [2, 1, 16], strides = [1, 1, 1]} : vector<2x4x16xf32> to vector<2x1x16xf32>
    %c0_4 = arith.constant 0 : index
    %c0_5 = arith.constant 0 : index
    %c0_6 = arith.constant 0 : index
    %5 = vector.load %arg1[%c0_4, %c0_5, %c0_6] : memref<120x8x1xf32, #tpu.memory_space<vmem>>, vector<1x8x1xf32>
    %6 = vector.shape_cast %5 : vector<1x8x1xf32> to vector<8x1xf32>
    %7 = vector.shape_cast %6 : vector<8x1xf32> to vector<1x8x1xf32>
    %8 = vector.broadcast %4 : vector<2x1x16xf32> to vector<2x8x16xf32>
    %9 = vector.broadcast %7 : vector<1x8x1xf32> to vector<2x8x16xf32>
    %10 = arith.mulf %8, %9 : vector<2x8x16xf32>
    %11 = vector.shape_cast %3 : vector<8x1xf32> to vector<1x8x1xf32>
    %12 = vector.broadcast %11 : vector<1x8x1xf32> to vector<2x8x16xf32>
    %13 = arith.addf %12, %10 : vector<2x8x16xf32>
    %14 = vector.extract_strided_slice %0 {offsets = [0, 1, 0], sizes = [2, 1, 16], strides = [1, 1, 1]} : vector<2x4x16xf32> to vector<2x1x16xf32>
    %c1 = arith.constant 1 : index
    %c0_7 = arith.constant 0 : index
    %c0_8 = arith.constant 0 : index
    %15 = vector.load %arg1[%c1, %c0_7, %c0_8] : memref<120x8x1xf32, #tpu.memory_space<vmem>>, vector<1x8x1xf32>
    %16 = vector.shape_cast %15 : vector<1x8x1xf32> to vector<8x1xf32>
    %17 = vector.shape_cast %16 : vector<8x1xf32> to vector<1x8x1xf32>
    %18 = vector.broadcast %14 : vector<2x1x16xf32> to vector<2x8x16xf32>
    %19 = vector.broadcast %17 : vector<1x8x1xf32> to vector<2x8x16xf32>
    %20 = arith.mulf %18, %19 : vector<2x8x16xf32>
    %21 = arith.addf %13, %20 : vector<2x8x16xf32>
    %22 = vector.extract_strided_slice %0 {offsets = [0, 2, 0], sizes = [2, 1, 16], strides = [1, 1, 1]} : vector<2x4x16xf32> to vector<2x1x16xf32>
    %c2 = arith.constant 2 : index
    %c0_9 = arith.constant 0 : index
    %c0_10 = arith.constant 0 : index
    %23 = vector.load %arg1[%c2, %c0_9, %c0_10] : memref<120x8x1xf32, #tpu.memory_space<vmem>>, vector<1x8x1xf32>
    %24 = vector.shape_cast %23 : vector<1x8x1xf32> to vector<8x1xf32>
    %25 = vector.shape_cast %24 : vector<8x1xf32> to vector<1x8x1xf32>
    %26 = vector.broadcast %22 : vector<2x1x16xf32> to vector<2x8x16xf32>
    %27 = vector.broadcast %25 : vector<1x8x1xf32> to vector<2x8x16xf32>
    %28 = arith.mulf %26, %27 : vector<2x8x16xf32>
    %29 = arith.addf %21, %28 : vector<2x8x16xf32>
    %30 = vector.extract_strided_slice %0 {offsets = [0, 3, 0], sizes = [2, 1, 16], strides = [1, 1, 1]} : vector<2x4x16xf32> to vector<2x1x16xf32>
    %c3 = arith.constant 3 : index
    %c0_11 = arith.constant 0 : index
    %c0_12 = arith.constant 0 : index
    %31 = vector.load %arg1[%c3, %c0_11, %c0_12] : memref<120x8x1xf32, #tpu.memory_space<vmem>>, vector<1x8x1xf32>
    %32 = vector.shape_cast %31 : vector<1x8x1xf32> to vector<8x1xf32>
    %33 = vector.shape_cast %32 : vector<8x1xf32> to vector<1x8x1xf32>
    %34 = vector.broadcast %30 : vector<2x1x16xf32> to vector<2x8x16xf32>
    %35 = vector.broadcast %33 : vector<1x8x1xf32> to vector<2x8x16xf32>
    %36 = arith.mulf %34, %35 : vector<2x8x16xf32>
    %37 = arith.addf %29, %36 : vector<2x8x16xf32>
    %c0_13 = arith.constant 0 : index
    %38 = memref.load %arg2[%c0_13] : memref<12xf32, #tpu.memory_space<smem>>
    %cst_14 = arith.constant 0.000000e+00 : f32
    %39 = vector.broadcast %cst_14 : f32 to vector<2x8x16xf32>
    %40 = arith.cmpf ogt, %37, %39 : vector<2x8x16xf32>
    %41 = vector.broadcast %38 : f32 to vector<2x8x16xf32>
    %42 = arith.mulf %41, %37 : vector<2x8x16xf32>
    %43 = arith.select %40, %37, %42 : vector<2x8x16xi1>, vector<2x8x16xf32>
    %cst_15 = arith.constant dense<0.000000e+00> : vector<2x8xf32>
    %44 = vector.multi_reduction <add>, %43, %cst_15 [2] : vector<2x8x16xf32> to vector<2x8xf32>
    %45 = vector.shape_cast %44 : vector<2x8xf32> to vector<2x8x1xf32>
    %46 = vector.extract_strided_slice %45 {offsets = [0, 0, 0], sizes = [1, 8, 1], strides = [1, 1, 1]} : vector<2x8x1xf32> to vector<1x8x1xf32>
    %47 = vector.shape_cast %46 : vector<1x8x1xf32> to vector<8x1xf32>
    %48 = vector.extract_strided_slice %45 {offsets = [1, 0, 0], sizes = [1, 8, 1], strides = [1, 1, 1]} : vector<2x8x1xf32> to vector<1x8x1xf32>
    %49 = vector.shape_cast %48 : vector<1x8x1xf32> to vector<8x1xf32>
    %50 = arith.addf %47, %49 : vector<8x1xf32>
    %cst_16 = arith.constant 3.125000e-02 : f32
    %51 = vector.broadcast %cst_16 : f32 to vector<8x1xf32>
    %52 = arith.mulf %50, %51 : vector<8x1xf32>
    %53 = vector.shape_cast %52 : vector<8x1xf32> to vector<1x8x1xf32>
    %54 = vector.broadcast %53 : vector<1x8x1xf32> to vector<2x8x16xf32>
    %55 = arith.subf %43, %54 : vector<2x8x16xf32>
    %56 = arith.mulf %55, %55 : vector<2x8x16xf32>
    %cst_17 = arith.constant dense<0.000000e+00> : vector<2x8xf32>
    %57 = vector.multi_reduction <add>, %56, %cst_17 [2] : vector<2x8x16xf32> to vector<2x8xf32>
    %58 = vector.shape_cast %57 : vector<2x8xf32> to vector<2x8x1xf32>
    %59 = vector.extract_strided_slice %58 {offsets = [0, 0, 0], sizes = [1, 8, 1], strides = [1, 1, 1]} : vector<2x8x1xf32> to vector<1x8x1xf32>
    %60 = vector.shape_cast %59 : vector<1x8x1xf32> to vector<8x1xf32>
    %61 = vector.extract_strided_slice %58 {offsets = [1, 0, 0], sizes = [1, 8, 1], strides = [1, 1, 1]} : vector<2x8x1xf32> to vector<1x8x1xf32>
    %62 = vector.shape_cast %61 : vector<1x8x1xf32> to vector<8x1xf32>
    %63 = arith.addf %60, %62 : vector<8x1xf32>
    %cst_18 = arith.constant 3.125000e-02 : f32
    %64 = vector.broadcast %cst_18 : f32 to vector<8x1xf32>
    %65 = arith.mulf %63, %64 : vector<8x1xf32>
    %cst_19 = arith.constant 9.99999974E-6 : f32
    %66 = vector.broadcast %cst_19 : f32 to vector<8x1xf32>
    %67 = arith.addf %65, %66 : vector<8x1xf32>
    %68 = math.rsqrt %67 : vector<8x1xf32>
    %c5 = arith.constant 5 : index
    %c0_20 = arith.constant 0 : index
    %c0_21 = arith.constant 0 : index
    %69 = vector.load %arg1[%c5, %c0_20, %c0_21] : memref<120x8x1xf32, #tpu.memory_space<vmem>>, vector<1x8x1xf32>
    %70 = vector.shape_cast %69 : vector<1x8x1xf32> to vector<8x1xf32>
    %71 = arith.mulf %68, %70 : vector<8x1xf32>
    %72 = vector.shape_cast %71 : vector<8x1xf32> to vector<1x8x1xf32>
    %73 = vector.broadcast %72 : vector<1x8x1xf32> to vector<2x8x16xf32>
    %74 = arith.mulf %55, %73 : vector<2x8x16xf32>
    %c6 = arith.constant 6 : index
    %c0_22 = arith.constant 0 : index
    %c0_23 = arith.constant 0 : index
    %75 = vector.load %arg1[%c6, %c0_22, %c0_23] : memref<120x8x1xf32, #tpu.memory_space<vmem>>, vector<1x8x1xf32>
    %76 = vector.shape_cast %75 : vector<1x8x1xf32> to vector<8x1xf32>
    %77 = vector.shape_cast %76 : vector<8x1xf32> to vector<1x8x1xf32>
    %78 = vector.broadcast %77 : vector<1x8x1xf32> to vector<2x8x16xf32>
    %79 = arith.addf %74, %78 : vector<2x8x16xf32>
    %c7 = arith.constant 7 : index
    %c0_24 = arith.constant 0 : index
    %c0_25 = arith.constant 0 : index
    %80 = vector.load %arg1[%c7, %c0_24, %c0_25] : memref<120x8x1xf32, #tpu.memory_space<vmem>>, vector<1x8x1xf32>
    %81 = vector.shape_cast %80 : vector<1x8x1xf32> to vector<8x1xf32>
    %82 = vector.extract_strided_slice %1 {offsets = [0, 0, 0], sizes = [2, 8, 2], strides = [1, 1, 1]} : vector<2x8x9xf32> to vector<2x8x2xf32>
    %83 = vector.extract_strided_slice %79 {offsets = [0, 0, 0], sizes = [2, 8, 14], strides = [1, 1, 1]} : vector<2x8x16xf32> to vector<2x8x14xf32>
    %84 = tpu.concatenate %82, %83 in 2 : vector<2x8x2xf32>, vector<2x8x14xf32> -> vector<2x8x16xf32>
    %85 = vector.shape_cast %81 : vector<8x1xf32> to vector<1x8x1xf32>
    %86 = vector.broadcast %85 : vector<1x8x1xf32> to vector<2x8x16xf32>
    %87 = arith.mulf %84, %86 : vector<2x8x16xf32>
    %c8 = arith.constant 8 : index
    %c0_26 = arith.constant 0 : index
    %c0_27 = arith.constant 0 : index
    %88 = vector.load %arg1[%c8, %c0_26, %c0_27] : memref<120x8x1xf32, #tpu.memory_space<vmem>>, vector<1x8x1xf32>
    %89 = vector.shape_cast %88 : vector<1x8x1xf32> to vector<8x1xf32>
    %90 = vector.extract_strided_slice %1 {offsets = [0, 0, 0], sizes = [2, 8, 1], strides = [1, 1, 1]} : vector<2x8x9xf32> to vector<2x8x1xf32>
    %91 = vector.extract_strided_slice %79 {offsets = [0, 0, 0], sizes = [2, 8, 15], strides = [1, 1, 1]} : vector<2x8x16xf32> to vector<2x8x15xf32>
    %92 = tpu.concatenate %90, %91 in 2 : vector<2x8x1xf32>, vector<2x8x15xf32> -> vector<2x8x16xf32>
    %93 = vector.shape_cast %89 : vector<8x1xf32> to vector<1x8x1xf32>
    %94 = vector.broadcast %93 : vector<1x8x1xf32> to vector<2x8x16xf32>
    %95 = arith.mulf %92, %94 : vector<2x8x16xf32>
    %96 = arith.addf %87, %95 : vector<2x8x16xf32>
    %c9 = arith.constant 9 : index
    %c0_28 = arith.constant 0 : index
    %c0_29 = arith.constant 0 : index
    %97 = vector.load %arg1[%c9, %c0_28, %c0_29] : memref<120x8x1xf32, #tpu.memory_space<vmem>>, vector<1x8x1xf32>
    %98 = vector.shape_cast %97 : vector<1x8x1xf32> to vector<8x1xf32>
    %99 = vector.shape_cast %98 : vector<8x1xf32> to vector<1x8x1xf32>
    %100 = vector.broadcast %99 : vector<1x8x1xf32> to vector<2x8x16xf32>
    %101 = arith.mulf %79, %100 : vector<2x8x16xf32>
    %102 = arith.addf %96, %101 : vector<2x8x16xf32>
    %c6_30 = arith.constant 6 : index
    %103 = memref.load %arg2[%c6_30] : memref<12xf32, #tpu.memory_space<smem>>
    %cst_31 = arith.constant 0.000000e+00 : f32
    %104 = vector.broadcast %cst_31 : f32 to vector<2x8x16xf32>
    %105 = arith.cmpf ogt, %102, %104 : vector<2x8x16xf32>
    %106 = vector.broadcast %103 : f32 to vector<2x8x16xf32>
    %107 = arith.mulf %106, %102 : vector<2x8x16xf32>
    %108 = arith.select %105, %102, %107 : vector<2x8x16xi1>, vector<2x8x16xf32>
    %cst_32 = arith.constant dense<0.000000e+00> : vector<2x8xf32>
    %109 = vector.multi_reduction <add>, %108, %cst_32 [2] : vector<2x8x16xf32> to vector<2x8xf32>
    %110 = vector.shape_cast %109 : vector<2x8xf32> to vector<2x8x1xf32>
    %111 = vector.extract_strided_slice %110 {offsets = [0, 0, 0], sizes = [1, 8, 1], strides = [1, 1, 1]} : vector<2x8x1xf32> to vector<1x8x1xf32>
    %112 = vector.shape_cast %111 : vector<1x8x1xf32> to vector<8x1xf32>
    %113 = vector.extract_strided_slice %110 {offsets = [1, 0, 0], sizes = [1, 8, 1], strides = [1, 1, 1]} : vector<2x8x1xf32> to vector<1x8x1xf32>
    %114 = vector.shape_cast %113 : vector<1x8x1xf32> to vector<8x1xf32>
    %115 = arith.addf %112, %114 : vector<8x1xf32>
    %cst_33 = arith.constant 3.125000e-02 : f32
    %116 = vector.broadcast %cst_33 : f32 to vector<8x1xf32>
    %117 = arith.mulf %115, %116 : vector<8x1xf32>
    %118 = vector.shape_cast %117 : vector<8x1xf32> to vector<1x8x1xf32>
    %119 = vector.broadcast %118 : vector<1x8x1xf32> to vector<2x8x16xf32>
    %120 = arith.subf %108, %119 : vector<2x8x16xf32>
    %121 = arith.mulf %120, %120 : vector<2x8x16xf32>
    %cst_34 = arith.constant dense<0.000000e+00> : vector<2x8xf32>
    %122 = vector.multi_reduction <add>, %121, %cst_34 [2] : vector<2x8x16xf32> to vector<2x8xf32>
    %123 = vector.shape_cast %122 : vector<2x8xf32> to vector<2x8x1xf32>
    %124 = vector.extract_strided_slice %123 {offsets = [0, 0, 0], sizes = [1, 8, 1], strides = [1, 1, 1]} : vector<2x8x1xf32> to vector<1x8x1xf32>
    %125 = vector.shape_cast %124 : vector<1x8x1xf32> to vector<8x1xf32>
    %126 = vector.extract_strided_slice %123 {offsets = [1, 0, 0], sizes = [1, 8, 1], strides = [1, 1, 1]} : vector<2x8x1xf32> to vector<1x8x1xf32>
    %127 = vector.shape_cast %126 : vector<1x8x1xf32> to vector<8x1xf32>
    %128 = arith.addf %125, %127 : vector<8x1xf32>
    %cst_35 = arith.constant 3.125000e-02 : f32
    %129 = vector.broadcast %cst_35 : f32 to vector<8x1xf32>
    %130 = arith.mulf %128, %129 : vector<8x1xf32>
    %cst_36 = arith.constant 9.99999974E-6 : f32
    %131 = vector.broadcast %cst_36 : f32 to vector<8x1xf32>
    %132 = arith.addf %130, %131 : vector<8x1xf32>
    %133 = math.rsqrt %132 : vector<8x1xf32>
    %c10 = arith.constant 10 : index
    %c0_37 = arith.constant 0 : index
    %c0_38 = arith.constant 0 : index
    %134 = vector.load %arg1[%c10, %c0_37, %c0_38] : memref<120x8x1xf32, #tpu.memory_space<vmem>>, vector<1x8x1xf32>
    %135 = vector.shape_cast %134 : vector<1x8x1xf32> to vector<8x1xf32>
    %136 = arith.mulf %133, %135 : vector<8x1xf32>
    %c11 = arith.constant 11 : index
    %c0_39 = arith.constant 0 : index
    %c0_40 = arith.constant 0 : index
    %137 = vector.load %arg1[%c11, %c0_39, %c0_40] : memref<120x8x1xf32, #tpu.memory_space<vmem>>, vector<1x8x1xf32>
    %138 = vector.shape_cast %137 : vector<1x8x1xf32> to vector<8x1xf32>
    %c12 = arith.constant 12 : index
    %c0_41 = arith.constant 0 : index
    %c0_42 = arith.constant 0 : index
    %139 = vector.load %arg1[%c12, %c0_41, %c0_42] : memref<120x8x1xf32, #tpu.memory_space<vmem>>, vector<1x8x1xf32>
    %140 = vector.shape_cast %139 : vector<1x8x1xf32> to vector<8x1xf32>
    %141 = vector.extract_strided_slice %140 {offsets = [0, 0], sizes = [4, 1], strides = [1, 1]} : vector<8x1xf32> to vector<4x1xf32>
    %142 = vector.extract_strided_slice %138 {offsets = [0, 0], sizes = [1, 1], strides = [1, 1]} : vector<8x1xf32> to vector<1x1xf32>
    %143 = vector.broadcast %142 : vector<1x1xf32> to vector<4x1xf32>
    %144 = arith.mulf %141, %143 : vector<4x1xf32>
    %145 = vector.extract_strided_slice %120 {offsets = [0, 0, 0], sizes = [2, 1, 16], strides = [1, 1, 1]} : vector<2x8x16xf32> to vector<2x1x16xf32>
    %146 = vector.extract_strided_slice %136 {offsets = [0, 0], sizes = [1, 1], strides = [1, 1]} : vector<8x1xf32> to vector<1x1xf32>
    %147 = vector.broadcast %146 : vector<1x1xf32> to vector<4x1xf32>
    %148 = arith.mulf %141, %147 : vector<4x1xf32>
    %149 = vector.shape_cast %148 : vector<4x1xf32> to vector<1x4x1xf32>
    %150 = vector.broadcast %145 : vector<2x1x16xf32> to vector<2x4x16xf32>
    %151 = vector.broadcast %149 : vector<1x4x1xf32> to vector<2x4x16xf32>
    %152 = arith.mulf %150, %151 : vector<2x4x16xf32>
    %c13 = arith.constant 13 : index
    %c0_43 = arith.constant 0 : index
    %c0_44 = arith.constant 0 : index
    %153 = vector.load %arg1[%c13, %c0_43, %c0_44] : memref<120x8x1xf32, #tpu.memory_space<vmem>>, vector<1x8x1xf32>
    %154 = vector.shape_cast %153 : vector<1x8x1xf32> to vector<8x1xf32>
    %155 = vector.extract_strided_slice %154 {offsets = [0, 0], sizes = [4, 1], strides = [1, 1]} : vector<8x1xf32> to vector<4x1xf32>
    %156 = vector.extract_strided_slice %138 {offsets = [1, 0], sizes = [1, 1], strides = [1, 1]} : vector<8x1xf32> to vector<1x1xf32>
    %157 = vector.broadcast %156 : vector<1x1xf32> to vector<4x1xf32>
    %158 = arith.mulf %155, %157 : vector<4x1xf32>
    %159 = arith.addf %144, %158 : vector<4x1xf32>
    %160 = vector.extract_strided_slice %120 {offsets = [0, 1, 0], sizes = [2, 1, 16], strides = [1, 1, 1]} : vector<2x8x16xf32> to vector<2x1x16xf32>
    %161 = vector.extract_strided_slice %136 {offsets = [1, 0], sizes = [1, 1], strides = [1, 1]} : vector<8x1xf32> to vector<1x1xf32>
    %162 = vector.broadcast %161 : vector<1x1xf32> to vector<4x1xf32>
    %163 = arith.mulf %155, %162 : vector<4x1xf32>
    %164 = vector.shape_cast %163 : vector<4x1xf32> to vector<1x4x1xf32>
    %165 = vector.broadcast %160 : vector<2x1x16xf32> to vector<2x4x16xf32>
    %166 = vector.broadcast %164 : vector<1x4x1xf32> to vector<2x4x16xf32>
    %167 = arith.mulf %165, %166 : vector<2x4x16xf32>
    %168 = arith.addf %152, %167 : vector<2x4x16xf32>
    %c14 = arith.constant 14 : index
    %c0_45 = arith.constant 0 : index
    %c0_46 = arith.constant 0 : index
    %169 = vector.load %arg1[%c14, %c0_45, %c0_46] : memref<120x8x1xf32, #tpu.memory_space<vmem>>, vector<1x8x1xf32>
    %170 = vector.shape_cast %169 : vector<1x8x1xf32> to vector<8x1xf32>
    %171 = vector.extract_strided_slice %170 {offsets = [0, 0], sizes = [4, 1], strides = [1, 1]} : vector<8x1xf32> to vector<4x1xf32>
    %172 = vector.extract_strided_slice %138 {offsets = [2, 0], sizes = [1, 1], strides = [1, 1]} : vector<8x1xf32> to vector<1x1xf32>
    %173 = vector.broadcast %172 : vector<1x1xf32> to vector<4x1xf32>
    %174 = arith.mulf %171, %173 : vector<4x1xf32>
    %175 = arith.addf %159, %174 : vector<4x1xf32>
    %176 = vector.extract_strided_slice %120 {offsets = [0, 2, 0], sizes = [2, 1, 16], strides = [1, 1, 1]} : vector<2x8x16xf32> to vector<2x1x16xf32>
    %177 = vector.extract_strided_slice %136 {offsets = [2, 0], sizes = [1, 1], strides = [1, 1]} : vector<8x1xf32> to vector<1x1xf32>
    %178 = vector.broadcast %177 : vector<1x1xf32> to vector<4x1xf32>
    %179 = arith.mulf %171, %178 : vector<4x1xf32>
    %180 = vector.shape_cast %179 : vector<4x1xf32> to vector<1x4x1xf32>
    %181 = vector.broadcast %176 : vector<2x1x16xf32> to vector<2x4x16xf32>
    %182 = vector.broadcast %180 : vector<1x4x1xf32> to vector<2x4x16xf32>
    %183 = arith.mulf %181, %182 : vector<2x4x16xf32>
    %184 = arith.addf %168, %183 : vector<2x4x16xf32>
    %c15 = arith.constant 15 : index
    %c0_47 = arith.constant 0 : index
    %c0_48 = arith.constant 0 : index
    %185 = vector.load %arg1[%c15, %c0_47, %c0_48] : memref<120x8x1xf32, #tpu.memory_space<vmem>>, vector<1x8x1xf32>
    %186 = vector.shape_cast %185 : vector<1x8x1xf32> to vector<8x1xf32>
    %187 = vector.extract_strided_slice %186 {offsets = [0, 0], sizes = [4, 1], strides = [1, 1]} : vector<8x1xf32> to vector<4x1xf32>
    %188 = vector.extract_strided_slice %138 {offsets = [3, 0], sizes = [1, 1], strides = [1, 1]} : vector<8x1xf32> to vector<1x1xf32>
    %189 = vector.broadcast %188 : vector<1x1xf32> to vector<4x1xf32>
    %190 = arith.mulf %187, %189 : vector<4x1xf32>
    %191 = arith.addf %175, %190 : vector<4x1xf32>
    %192 = vector.extract_strided_slice %120 {offsets = [0, 3, 0], sizes = [2, 1, 16], strides = [1, 1, 1]} : vector<2x8x16xf32> to vector<2x1x16xf32>
    %193 = vector.extract_strided_slice %136 {offsets = [3, 0], sizes = [1, 1], strides = [1, 1]} : vector<8x1xf32> to vector<1x1xf32>
    %194 = vector.broadcast %193 : vector<1x1xf32> to vector<4x1xf32>
    %195 = arith.mulf %187, %194 : vector<4x1xf32>
    %196 = vector.shape_cast %195 : vector<4x1xf32> to vector<1x4x1xf32>
    %197 = vector.broadcast %192 : vector<2x1x16xf32> to vector<2x4x16xf32>
    %198 = vector.broadcast %196 : vector<1x4x1xf32> to vector<2x4x16xf32>
    %199 = arith.mulf %197, %198 : vector<2x4x16xf32>
    %200 = arith.addf %184, %199 : vector<2x4x16xf32>
    %c16 = arith.constant 16 : index
    %c0_49 = arith.constant 0 : index
    %c0_50 = arith.constant 0 : index
    %201 = vector.load %arg1[%c16, %c0_49, %c0_50] : memref<120x8x1xf32, #tpu.memory_space<vmem>>, vector<1x8x1xf32>
    %202 = vector.shape_cast %201 : vector<1x8x1xf32> to vector<8x1xf32>
    %203 = vector.extract_strided_slice %202 {offsets = [0, 0], sizes = [4, 1], strides = [1, 1]} : vector<8x1xf32> to vector<4x1xf32>
    %204 = vector.extract_strided_slice %138 {offsets = [4, 0], sizes = [1, 1], strides = [1, 1]} : vector<8x1xf32> to vector<1x1xf32>
    %205 = vector.broadcast %204 : vector<1x1xf32> to vector<4x1xf32>
    %206 = arith.mulf %203, %205 : vector<4x1xf32>
    %207 = arith.addf %191, %206 : vector<4x1xf32>
    %208 = vector.extract_strided_slice %120 {offsets = [0, 4, 0], sizes = [2, 1, 16], strides = [1, 1, 1]} : vector<2x8x16xf32> to vector<2x1x16xf32>
    %209 = vector.extract_strided_slice %136 {offsets = [4, 0], sizes = [1, 1], strides = [1, 1]} : vector<8x1xf32> to vector<1x1xf32>
    %210 = vector.broadcast %209 : vector<1x1xf32> to vector<4x1xf32>
    %211 = arith.mulf %203, %210 : vector<4x1xf32>
    %212 = vector.shape_cast %211 : vector<4x1xf32> to vector<1x4x1xf32>
    %213 = vector.broadcast %208 : vector<2x1x16xf32> to vector<2x4x16xf32>
    %214 = vector.broadcast %212 : vector<1x4x1xf32> to vector<2x4x16xf32>
    %215 = arith.mulf %213, %214 : vector<2x4x16xf32>
    %216 = arith.addf %200, %215 : vector<2x4x16xf32>
    %c17 = arith.constant 17 : index
    %c0_51 = arith.constant 0 : index
    %c0_52 = arith.constant 0 : index
    %217 = vector.load %arg1[%c17, %c0_51, %c0_52] : memref<120x8x1xf32, #tpu.memory_space<vmem>>, vector<1x8x1xf32>
    %218 = vector.shape_cast %217 : vector<1x8x1xf32> to vector<8x1xf32>
    %219 = vector.extract_strided_slice %218 {offsets = [0, 0], sizes = [4, 1], strides = [1, 1]} : vector<8x1xf32> to vector<4x1xf32>
    %220 = vector.extract_strided_slice %138 {offsets = [5, 0], sizes = [1, 1], strides = [1, 1]} : vector<8x1xf32> to vector<1x1xf32>
    %221 = vector.broadcast %220 : vector<1x1xf32> to vector<4x1xf32>
    %222 = arith.mulf %219, %221 : vector<4x1xf32>
    %223 = arith.addf %207, %222 : vector<4x1xf32>
    %224 = vector.extract_strided_slice %120 {offsets = [0, 5, 0], sizes = [2, 1, 16], strides = [1, 1, 1]} : vector<2x8x16xf32> to vector<2x1x16xf32>
    %225 = vector.extract_strided_slice %136 {offsets = [5, 0], sizes = [1, 1], strides = [1, 1]} : vector<8x1xf32> to vector<1x1xf32>
    %226 = vector.broadcast %225 : vector<1x1xf32> to vector<4x1xf32>
    %227 = arith.mulf %219, %226 : vector<4x1xf32>
    %228 = vector.shape_cast %227 : vector<4x1xf32> to vector<1x4x1xf32>
    %229 = vector.broadcast %224 : vector<2x1x16xf32> to vector<2x4x16xf32>
    %230 = vector.broadcast %228 : vector<1x4x1xf32> to vector<2x4x16xf32>
    %231 = arith.mulf %229, %230 : vector<2x4x16xf32>
    %232 = arith.addf %216, %231 : vector<2x4x16xf32>
    %c18 = arith.constant 18 : index
    %c0_53 = arith.constant 0 : index
    %c0_54 = arith.constant 0 : index
    %233 = vector.load %arg1[%c18, %c0_53, %c0_54] : memref<120x8x1xf32, #tpu.memory_space<vmem>>, vector<1x8x1xf32>
    %234 = vector.shape_cast %233 : vector<1x8x1xf32> to vector<8x1xf32>
    %235 = vector.extract_strided_slice %234 {offsets = [0, 0], sizes = [4, 1], strides = [1, 1]} : vector<8x1xf32> to vector<4x1xf32>
    %236 = vector.extract_strided_slice %138 {offsets = [6, 0], sizes = [1, 1], strides = [1, 1]} : vector<8x1xf32> to vector<1x1xf32>
    %237 = vector.broadcast %236 : vector<1x1xf32> to vector<4x1xf32>
    %238 = arith.mulf %235, %237 : vector<4x1xf32>
    %239 = arith.addf %223, %238 : vector<4x1xf32>
    %240 = vector.extract_strided_slice %120 {offsets = [0, 6, 0], sizes = [2, 1, 16], strides = [1, 1, 1]} : vector<2x8x16xf32> to vector<2x1x16xf32>
    %241 = vector.extract_strided_slice %136 {offsets = [6, 0], sizes = [1, 1], strides = [1, 1]} : vector<8x1xf32> to vector<1x1xf32>
    %242 = vector.broadcast %241 : vector<1x1xf32> to vector<4x1xf32>
    %243 = arith.mulf %235, %242 : vector<4x1xf32>
    %244 = vector.shape_cast %243 : vector<4x1xf32> to vector<1x4x1xf32>
    %245 = vector.broadcast %240 : vector<2x1x16xf32> to vector<2x4x16xf32>
    %246 = vector.broadcast %244 : vector<1x4x1xf32> to vector<2x4x16xf32>
    %247 = arith.mulf %245, %246 : vector<2x4x16xf32>
    %248 = arith.addf %232, %247 : vector<2x4x16xf32>
    %c19 = arith.constant 19 : index
    %c0_55 = arith.constant 0 : index
    %c0_56 = arith.constant 0 : index
    %249 = vector.load %arg1[%c19, %c0_55, %c0_56] : memref<120x8x1xf32, #tpu.memory_space<vmem>>, vector<1x8x1xf32>
    %250 = vector.shape_cast %249 : vector<1x8x1xf32> to vector<8x1xf32>
    %251 = vector.extract_strided_slice %250 {offsets = [0, 0], sizes = [4, 1], strides = [1, 1]} : vector<8x1xf32> to vector<4x1xf32>
    %252 = vector.extract_strided_slice %138 {offsets = [7, 0], sizes = [1, 1], strides = [1, 1]} : vector<8x1xf32> to vector<1x1xf32>
    %253 = vector.broadcast %252 : vector<1x1xf32> to vector<4x1xf32>
    %254 = arith.mulf %251, %253 : vector<4x1xf32>
    %255 = arith.addf %239, %254 : vector<4x1xf32>
    %256 = vector.extract_strided_slice %120 {offsets = [0, 7, 0], sizes = [2, 1, 16], strides = [1, 1, 1]} : vector<2x8x16xf32> to vector<2x1x16xf32>
    %257 = vector.extract_strided_slice %136 {offsets = [7, 0], sizes = [1, 1], strides = [1, 1]} : vector<8x1xf32> to vector<1x1xf32>
    %258 = vector.broadcast %257 : vector<1x1xf32> to vector<4x1xf32>
    %259 = arith.mulf %251, %258 : vector<4x1xf32>
    %260 = vector.shape_cast %259 : vector<4x1xf32> to vector<1x4x1xf32>
    %261 = vector.broadcast %256 : vector<2x1x16xf32> to vector<2x4x16xf32>
    %262 = vector.broadcast %260 : vector<1x4x1xf32> to vector<2x4x16xf32>
    %263 = arith.mulf %261, %262 : vector<2x4x16xf32>
    %264 = arith.addf %248, %263 : vector<2x4x16xf32>
    %265 = vector.shape_cast %255 : vector<4x1xf32> to vector<1x4x1xf32>
    %266 = vector.broadcast %265 : vector<1x4x1xf32> to vector<2x4x16xf32>
    %267 = arith.addf %264, %266 : vector<2x4x16xf32>
    %268 = arith.addf %0, %267 : vector<2x4x16xf32>
    %c24 = arith.constant 24 : index
    %c0_57 = arith.constant 0 : index
    %c0_58 = arith.constant 0 : index
    %269 = vector.load %arg1[%c24, %c0_57, %c0_58] : memref<120x8x1xf32, #tpu.memory_space<vmem>>, vector<1x8x1xf32>
    %270 = vector.shape_cast %269 : vector<1x8x1xf32> to vector<8x1xf32>
    %271 = vector.extract_strided_slice %268 {offsets = [0, 0, 0], sizes = [2, 1, 16], strides = [1, 1, 1]} : vector<2x4x16xf32> to vector<2x1x16xf32>
    %c20 = arith.constant 20 : index
    %c0_59 = arith.constant 0 : index
    %c0_60 = arith.constant 0 : index
    %272 = vector.load %arg1[%c20, %c0_59, %c0_60] : memref<120x8x1xf32, #tpu.memory_space<vmem>>, vector<1x8x1xf32>
    %273 = vector.shape_cast %272 : vector<1x8x1xf32> to vector<8x1xf32>
    %274 = vector.shape_cast %273 : vector<8x1xf32> to vector<1x8x1xf32>
    %275 = vector.broadcast %271 : vector<2x1x16xf32> to vector<2x8x16xf32>
    %276 = vector.broadcast %274 : vector<1x8x1xf32> to vector<2x8x16xf32>
    %277 = arith.mulf %275, %276 : vector<2x8x16xf32>
    %278 = vector.shape_cast %270 : vector<8x1xf32> to vector<1x8x1xf32>
    %279 = vector.broadcast %278 : vector<1x8x1xf32> to vector<2x8x16xf32>
    %280 = arith.addf %279, %277 : vector<2x8x16xf32>
    %281 = vector.extract_strided_slice %268 {offsets = [0, 1, 0], sizes = [2, 1, 16], strides = [1, 1, 1]} : vector<2x4x16xf32> to vector<2x1x16xf32>
    %c21 = arith.constant 21 : index
    %c0_61 = arith.constant 0 : index
    %c0_62 = arith.constant 0 : index
    %282 = vector.load %arg1[%c21, %c0_61, %c0_62] : memref<120x8x1xf32, #tpu.memory_space<vmem>>, vector<1x8x1xf32>
    %283 = vector.shape_cast %282 : vector<1x8x1xf32> to vector<8x1xf32>
    %284 = vector.shape_cast %283 : vector<8x1xf32> to vector<1x8x1xf32>
    %285 = vector.broadcast %281 : vector<2x1x16xf32> to vector<2x8x16xf32>
    %286 = vector.broadcast %284 : vector<1x8x1xf32> to vector<2x8x16xf32>
    %287 = arith.mulf %285, %286 : vector<2x8x16xf32>
    %288 = arith.addf %280, %287 : vector<2x8x16xf32>
    %289 = vector.extract_strided_slice %268 {offsets = [0, 2, 0], sizes = [2, 1, 16], strides = [1, 1, 1]} : vector<2x4x16xf32> to vector<2x1x16xf32>
    %c22 = arith.constant 22 : index
    %c0_63 = arith.constant 0 : index
    %c0_64 = arith.constant 0 : index
    %290 = vector.load %arg1[%c22, %c0_63, %c0_64] : memref<120x8x1xf32, #tpu.memory_space<vmem>>, vector<1x8x1xf32>
    %291 = vector.shape_cast %290 : vector<1x8x1xf32> to vector<8x1xf32>
    %292 = vector.shape_cast %291 : vector<8x1xf32> to vector<1x8x1xf32>
    %293 = vector.broadcast %289 : vector<2x1x16xf32> to vector<2x8x16xf32>
    %294 = vector.broadcast %292 : vector<1x8x1xf32> to vector<2x8x16xf32>
    %295 = arith.mulf %293, %294 : vector<2x8x16xf32>
    %296 = arith.addf %288, %295 : vector<2x8x16xf32>
    %297 = vector.extract_strided_slice %268 {offsets = [0, 3, 0], sizes = [2, 1, 16], strides = [1, 1, 1]} : vector<2x4x16xf32> to vector<2x1x16xf32>
    %c23 = arith.constant 23 : index
    %c0_65 = arith.constant 0 : index
    %c0_66 = arith.constant 0 : index
    %298 = vector.load %arg1[%c23, %c0_65, %c0_66] : memref<120x8x1xf32, #tpu.memory_space<vmem>>, vector<1x8x1xf32>
    %299 = vector.shape_cast %298 : vector<1x8x1xf32> to vector<8x1xf32>
    %300 = vector.shape_cast %299 : vector<8x1xf32> to vector<1x8x1xf32>
    %301 = vector.broadcast %297 : vector<2x1x16xf32> to vector<2x8x16xf32>
    %302 = vector.broadcast %300 : vector<1x8x1xf32> to vector<2x8x16xf32>
    %303 = arith.mulf %301, %302 : vector<2x8x16xf32>
    %304 = arith.addf %296, %303 : vector<2x8x16xf32>
    %c1_67 = arith.constant 1 : index
    %305 = memref.load %arg2[%c1_67] : memref<12xf32, #tpu.memory_space<smem>>
    %cst_68 = arith.constant 0.000000e+00 : f32
    %306 = vector.broadcast %cst_68 : f32 to vector<2x8x16xf32>
    %307 = arith.cmpf ogt, %304, %306 : vector<2x8x16xf32>
    %308 = vector.broadcast %305 : f32 to vector<2x8x16xf32>
    %309 = arith.mulf %308, %304 : vector<2x8x16xf32>
    %310 = arith.select %307, %304, %309 : vector<2x8x16xi1>, vector<2x8x16xf32>
    %cst_69 = arith.constant dense<0.000000e+00> : vector<2x8xf32>
    %311 = vector.multi_reduction <add>, %310, %cst_69 [2] : vector<2x8x16xf32> to vector<2x8xf32>
    %312 = vector.shape_cast %311 : vector<2x8xf32> to vector<2x8x1xf32>
    %313 = vector.extract_strided_slice %312 {offsets = [0, 0, 0], sizes = [1, 8, 1], strides = [1, 1, 1]} : vector<2x8x1xf32> to vector<1x8x1xf32>
    %314 = vector.shape_cast %313 : vector<1x8x1xf32> to vector<8x1xf32>
    %315 = vector.extract_strided_slice %312 {offsets = [1, 0, 0], sizes = [1, 8, 1], strides = [1, 1, 1]} : vector<2x8x1xf32> to vector<1x8x1xf32>
    %316 = vector.shape_cast %315 : vector<1x8x1xf32> to vector<8x1xf32>
    %317 = arith.addf %314, %316 : vector<8x1xf32>
    %cst_70 = arith.constant 3.125000e-02 : f32
    %318 = vector.broadcast %cst_70 : f32 to vector<8x1xf32>
    %319 = arith.mulf %317, %318 : vector<8x1xf32>
    %320 = vector.shape_cast %319 : vector<8x1xf32> to vector<1x8x1xf32>
    %321 = vector.broadcast %320 : vector<1x8x1xf32> to vector<2x8x16xf32>
    %322 = arith.subf %310, %321 : vector<2x8x16xf32>
    %323 = arith.mulf %322, %322 : vector<2x8x16xf32>
    %cst_71 = arith.constant dense<0.000000e+00> : vector<2x8xf32>
    %324 = vector.multi_reduction <add>, %323, %cst_71 [2] : vector<2x8x16xf32> to vector<2x8xf32>
    %325 = vector.shape_cast %324 : vector<2x8xf32> to vector<2x8x1xf32>
    %326 = vector.extract_strided_slice %325 {offsets = [0, 0, 0], sizes = [1, 8, 1], strides = [1, 1, 1]} : vector<2x8x1xf32> to vector<1x8x1xf32>
    %327 = vector.shape_cast %326 : vector<1x8x1xf32> to vector<8x1xf32>
    %328 = vector.extract_strided_slice %325 {offsets = [1, 0, 0], sizes = [1, 8, 1], strides = [1, 1, 1]} : vector<2x8x1xf32> to vector<1x8x1xf32>
    %329 = vector.shape_cast %328 : vector<1x8x1xf32> to vector<8x1xf32>
    %330 = arith.addf %327, %329 : vector<8x1xf32>
    %cst_72 = arith.constant 3.125000e-02 : f32
    %331 = vector.broadcast %cst_72 : f32 to vector<8x1xf32>
    %332 = arith.mulf %330, %331 : vector<8x1xf32>
    %cst_73 = arith.constant 9.99999974E-6 : f32
    %333 = vector.broadcast %cst_73 : f32 to vector<8x1xf32>
    %334 = arith.addf %332, %333 : vector<8x1xf32>
    %335 = math.rsqrt %334 : vector<8x1xf32>
    %c25 = arith.constant 25 : index
    %c0_74 = arith.constant 0 : index
    %c0_75 = arith.constant 0 : index
    %336 = vector.load %arg1[%c25, %c0_74, %c0_75] : memref<120x8x1xf32, #tpu.memory_space<vmem>>, vector<1x8x1xf32>
    %337 = vector.shape_cast %336 : vector<1x8x1xf32> to vector<8x1xf32>
    %338 = arith.mulf %335, %337 : vector<8x1xf32>
    %339 = vector.shape_cast %338 : vector<8x1xf32> to vector<1x8x1xf32>
    %340 = vector.broadcast %339 : vector<1x8x1xf32> to vector<2x8x16xf32>
    %341 = arith.mulf %322, %340 : vector<2x8x16xf32>
    %c26 = arith.constant 26 : index
    %c0_76 = arith.constant 0 : index
    %c0_77 = arith.constant 0 : index
    %342 = vector.load %arg1[%c26, %c0_76, %c0_77] : memref<120x8x1xf32, #tpu.memory_space<vmem>>, vector<1x8x1xf32>
    %343 = vector.shape_cast %342 : vector<1x8x1xf32> to vector<8x1xf32>
    %344 = vector.shape_cast %343 : vector<8x1xf32> to vector<1x8x1xf32>
    %345 = vector.broadcast %344 : vector<1x8x1xf32> to vector<2x8x16xf32>
    %346 = arith.addf %341, %345 : vector<2x8x16xf32>
    %c27 = arith.constant 27 : index
    %c0_78 = arith.constant 0 : index
    %c0_79 = arith.constant 0 : index
    %347 = vector.load %arg1[%c27, %c0_78, %c0_79] : memref<120x8x1xf32, #tpu.memory_space<vmem>>, vector<1x8x1xf32>
    %348 = vector.shape_cast %347 : vector<1x8x1xf32> to vector<8x1xf32>
    %349 = vector.extract_strided_slice %1 {offsets = [0, 0, 0], sizes = [2, 8, 6], strides = [1, 1, 1]} : vector<2x8x9xf32> to vector<2x8x6xf32>
    %350 = vector.extract_strided_slice %346 {offsets = [0, 0, 0], sizes = [2, 8, 10], strides = [1, 1, 1]} : vector<2x8x16xf32> to vector<2x8x10xf32>
    %351 = tpu.concatenate %349, %350 in 2 : vector<2x8x6xf32>, vector<2x8x10xf32> -> vector<2x8x16xf32>
    %352 = vector.shape_cast %348 : vector<8x1xf32> to vector<1x8x1xf32>
    %353 = vector.broadcast %352 : vector<1x8x1xf32> to vector<2x8x16xf32>
    %354 = arith.mulf %351, %353 : vector<2x8x16xf32>
    %c28 = arith.constant 28 : index
    %c0_80 = arith.constant 0 : index
    %c0_81 = arith.constant 0 : index
    %355 = vector.load %arg1[%c28, %c0_80, %c0_81] : memref<120x8x1xf32, #tpu.memory_space<vmem>>, vector<1x8x1xf32>
    %356 = vector.shape_cast %355 : vector<1x8x1xf32> to vector<8x1xf32>
    %357 = vector.extract_strided_slice %1 {offsets = [0, 0, 0], sizes = [2, 8, 3], strides = [1, 1, 1]} : vector<2x8x9xf32> to vector<2x8x3xf32>
    %358 = vector.extract_strided_slice %346 {offsets = [0, 0, 0], sizes = [2, 8, 13], strides = [1, 1, 1]} : vector<2x8x16xf32> to vector<2x8x13xf32>
    %359 = tpu.concatenate %357, %358 in 2 : vector<2x8x3xf32>, vector<2x8x13xf32> -> vector<2x8x16xf32>
    %360 = vector.shape_cast %356 : vector<8x1xf32> to vector<1x8x1xf32>
    %361 = vector.broadcast %360 : vector<1x8x1xf32> to vector<2x8x16xf32>
    %362 = arith.mulf %359, %361 : vector<2x8x16xf32>
    %363 = arith.addf %354, %362 : vector<2x8x16xf32>
    %c29 = arith.constant 29 : index
    %c0_82 = arith.constant 0 : index
    %c0_83 = arith.constant 0 : index
    %364 = vector.load %arg1[%c29, %c0_82, %c0_83] : memref<120x8x1xf32, #tpu.memory_space<vmem>>, vector<1x8x1xf32>
    %365 = vector.shape_cast %364 : vector<1x8x1xf32> to vector<8x1xf32>
    %366 = vector.shape_cast %365 : vector<8x1xf32> to vector<1x8x1xf32>
    %367 = vector.broadcast %366 : vector<1x8x1xf32> to vector<2x8x16xf32>
    %368 = arith.mulf %346, %367 : vector<2x8x16xf32>
    %369 = arith.addf %363, %368 : vector<2x8x16xf32>
    %c7_84 = arith.constant 7 : index
    %370 = memref.load %arg2[%c7_84] : memref<12xf32, #tpu.memory_space<smem>>
    %cst_85 = arith.constant 0.000000e+00 : f32
    %371 = vector.broadcast %cst_85 : f32 to vector<2x8x16xf32>
    %372 = arith.cmpf ogt, %369, %371 : vector<2x8x16xf32>
    %373 = vector.broadcast %370 : f32 to vector<2x8x16xf32>
    %374 = arith.mulf %373, %369 : vector<2x8x16xf32>
    %375 = arith.select %372, %369, %374 : vector<2x8x16xi1>, vector<2x8x16xf32>
    %cst_86 = arith.constant dense<0.000000e+00> : vector<2x8xf32>
    %376 = vector.multi_reduction <add>, %375, %cst_86 [2] : vector<2x8x16xf32> to vector<2x8xf32>
    %377 = vector.shape_cast %376 : vector<2x8xf32> to vector<2x8x1xf32>
    %378 = vector.extract_strided_slice %377 {offsets = [0, 0, 0], sizes = [1, 8, 1], strides = [1, 1, 1]} : vector<2x8x1xf32> to vector<1x8x1xf32>
    %379 = vector.shape_cast %378 : vector<1x8x1xf32> to vector<8x1xf32>
    %380 = vector.extract_strided_slice %377 {offsets = [1, 0, 0], sizes = [1, 8, 1], strides = [1, 1, 1]} : vector<2x8x1xf32> to vector<1x8x1xf32>
    %381 = vector.shape_cast %380 : vector<1x8x1xf32> to vector<8x1xf32>
    %382 = arith.addf %379, %381 : vector<8x1xf32>
    %cst_87 = arith.constant 3.125000e-02 : f32
    %383 = vector.broadcast %cst_87 : f32 to vector<8x1xf32>
    %384 = arith.mulf %382, %383 : vector<8x1xf32>
    %385 = vector.shape_cast %384 : vector<8x1xf32> to vector<1x8x1xf32>
    %386 = vector.broadcast %385 : vector<1x8x1xf32> to vector<2x8x16xf32>
    %387 = arith.subf %375, %386 : vector<2x8x16xf32>
    %388 = arith.mulf %387, %387 : vector<2x8x16xf32>
    %cst_88 = arith.constant dense<0.000000e+00> : vector<2x8xf32>
    %389 = vector.multi_reduction <add>, %388, %cst_88 [2] : vector<2x8x16xf32> to vector<2x8xf32>
    %390 = vector.shape_cast %389 : vector<2x8xf32> to vector<2x8x1xf32>
    %391 = vector.extract_strided_slice %390 {offsets = [0, 0, 0], sizes = [1, 8, 1], strides = [1, 1, 1]} : vector<2x8x1xf32> to vector<1x8x1xf32>
    %392 = vector.shape_cast %391 : vector<1x8x1xf32> to vector<8x1xf32>
    %393 = vector.extract_strided_slice %390 {offsets = [1, 0, 0], sizes = [1, 8, 1], strides = [1, 1, 1]} : vector<2x8x1xf32> to vector<1x8x1xf32>
    %394 = vector.shape_cast %393 : vector<1x8x1xf32> to vector<8x1xf32>
    %395 = arith.addf %392, %394 : vector<8x1xf32>
    %cst_89 = arith.constant 3.125000e-02 : f32
    %396 = vector.broadcast %cst_89 : f32 to vector<8x1xf32>
    %397 = arith.mulf %395, %396 : vector<8x1xf32>
    %cst_90 = arith.constant 9.99999974E-6 : f32
    %398 = vector.broadcast %cst_90 : f32 to vector<8x1xf32>
    %399 = arith.addf %397, %398 : vector<8x1xf32>
    %400 = math.rsqrt %399 : vector<8x1xf32>
    %c30 = arith.constant 30 : index
    %c0_91 = arith.constant 0 : index
    %c0_92 = arith.constant 0 : index
    %401 = vector.load %arg1[%c30, %c0_91, %c0_92] : memref<120x8x1xf32, #tpu.memory_space<vmem>>, vector<1x8x1xf32>
    %402 = vector.shape_cast %401 : vector<1x8x1xf32> to vector<8x1xf32>
    %403 = arith.mulf %400, %402 : vector<8x1xf32>
    %c31 = arith.constant 31 : index
    %c0_93 = arith.constant 0 : index
    %c0_94 = arith.constant 0 : index
    %404 = vector.load %arg1[%c31, %c0_93, %c0_94] : memref<120x8x1xf32, #tpu.memory_space<vmem>>, vector<1x8x1xf32>
    %405 = vector.shape_cast %404 : vector<1x8x1xf32> to vector<8x1xf32>
    %c32 = arith.constant 32 : index
    %c0_95 = arith.constant 0 : index
    %c0_96 = arith.constant 0 : index
    %406 = vector.load %arg1[%c32, %c0_95, %c0_96] : memref<120x8x1xf32, #tpu.memory_space<vmem>>, vector<1x8x1xf32>
    %407 = vector.shape_cast %406 : vector<1x8x1xf32> to vector<8x1xf32>
    %408 = vector.extract_strided_slice %407 {offsets = [0, 0], sizes = [4, 1], strides = [1, 1]} : vector<8x1xf32> to vector<4x1xf32>
    %409 = vector.extract_strided_slice %405 {offsets = [0, 0], sizes = [1, 1], strides = [1, 1]} : vector<8x1xf32> to vector<1x1xf32>
    %410 = vector.broadcast %409 : vector<1x1xf32> to vector<4x1xf32>
    %411 = arith.mulf %408, %410 : vector<4x1xf32>
    %412 = vector.extract_strided_slice %387 {offsets = [0, 0, 0], sizes = [2, 1, 16], strides = [1, 1, 1]} : vector<2x8x16xf32> to vector<2x1x16xf32>
    %413 = vector.extract_strided_slice %403 {offsets = [0, 0], sizes = [1, 1], strides = [1, 1]} : vector<8x1xf32> to vector<1x1xf32>
    %414 = vector.broadcast %413 : vector<1x1xf32> to vector<4x1xf32>
    %415 = arith.mulf %408, %414 : vector<4x1xf32>
    %416 = vector.shape_cast %415 : vector<4x1xf32> to vector<1x4x1xf32>
    %417 = vector.broadcast %412 : vector<2x1x16xf32> to vector<2x4x16xf32>
    %418 = vector.broadcast %416 : vector<1x4x1xf32> to vector<2x4x16xf32>
    %419 = arith.mulf %417, %418 : vector<2x4x16xf32>
    %c33 = arith.constant 33 : index
    %c0_97 = arith.constant 0 : index
    %c0_98 = arith.constant 0 : index
    %420 = vector.load %arg1[%c33, %c0_97, %c0_98] : memref<120x8x1xf32, #tpu.memory_space<vmem>>, vector<1x8x1xf32>
    %421 = vector.shape_cast %420 : vector<1x8x1xf32> to vector<8x1xf32>
    %422 = vector.extract_strided_slice %421 {offsets = [0, 0], sizes = [4, 1], strides = [1, 1]} : vector<8x1xf32> to vector<4x1xf32>
    %423 = vector.extract_strided_slice %405 {offsets = [1, 0], sizes = [1, 1], strides = [1, 1]} : vector<8x1xf32> to vector<1x1xf32>
    %424 = vector.broadcast %423 : vector<1x1xf32> to vector<4x1xf32>
    %425 = arith.mulf %422, %424 : vector<4x1xf32>
    %426 = arith.addf %411, %425 : vector<4x1xf32>
    %427 = vector.extract_strided_slice %387 {offsets = [0, 1, 0], sizes = [2, 1, 16], strides = [1, 1, 1]} : vector<2x8x16xf32> to vector<2x1x16xf32>
    %428 = vector.extract_strided_slice %403 {offsets = [1, 0], sizes = [1, 1], strides = [1, 1]} : vector<8x1xf32> to vector<1x1xf32>
    %429 = vector.broadcast %428 : vector<1x1xf32> to vector<4x1xf32>
    %430 = arith.mulf %422, %429 : vector<4x1xf32>
    %431 = vector.shape_cast %430 : vector<4x1xf32> to vector<1x4x1xf32>
    %432 = vector.broadcast %427 : vector<2x1x16xf32> to vector<2x4x16xf32>
    %433 = vector.broadcast %431 : vector<1x4x1xf32> to vector<2x4x16xf32>
    %434 = arith.mulf %432, %433 : vector<2x4x16xf32>
    %435 = arith.addf %419, %434 : vector<2x4x16xf32>
    %c34 = arith.constant 34 : index
    %c0_99 = arith.constant 0 : index
    %c0_100 = arith.constant 0 : index
    %436 = vector.load %arg1[%c34, %c0_99, %c0_100] : memref<120x8x1xf32, #tpu.memory_space<vmem>>, vector<1x8x1xf32>
    %437 = vector.shape_cast %436 : vector<1x8x1xf32> to vector<8x1xf32>
    %438 = vector.extract_strided_slice %437 {offsets = [0, 0], sizes = [4, 1], strides = [1, 1]} : vector<8x1xf32> to vector<4x1xf32>
    %439 = vector.extract_strided_slice %405 {offsets = [2, 0], sizes = [1, 1], strides = [1, 1]} : vector<8x1xf32> to vector<1x1xf32>
    %440 = vector.broadcast %439 : vector<1x1xf32> to vector<4x1xf32>
    %441 = arith.mulf %438, %440 : vector<4x1xf32>
    %442 = arith.addf %426, %441 : vector<4x1xf32>
    %443 = vector.extract_strided_slice %387 {offsets = [0, 2, 0], sizes = [2, 1, 16], strides = [1, 1, 1]} : vector<2x8x16xf32> to vector<2x1x16xf32>
    %444 = vector.extract_strided_slice %403 {offsets = [2, 0], sizes = [1, 1], strides = [1, 1]} : vector<8x1xf32> to vector<1x1xf32>
    %445 = vector.broadcast %444 : vector<1x1xf32> to vector<4x1xf32>
    %446 = arith.mulf %438, %445 : vector<4x1xf32>
    %447 = vector.shape_cast %446 : vector<4x1xf32> to vector<1x4x1xf32>
    %448 = vector.broadcast %443 : vector<2x1x16xf32> to vector<2x4x16xf32>
    %449 = vector.broadcast %447 : vector<1x4x1xf32> to vector<2x4x16xf32>
    %450 = arith.mulf %448, %449 : vector<2x4x16xf32>
    %451 = arith.addf %435, %450 : vector<2x4x16xf32>
    %c35 = arith.constant 35 : index
    %c0_101 = arith.constant 0 : index
    %c0_102 = arith.constant 0 : index
    %452 = vector.load %arg1[%c35, %c0_101, %c0_102] : memref<120x8x1xf32, #tpu.memory_space<vmem>>, vector<1x8x1xf32>
    %453 = vector.shape_cast %452 : vector<1x8x1xf32> to vector<8x1xf32>
    %454 = vector.extract_strided_slice %453 {offsets = [0, 0], sizes = [4, 1], strides = [1, 1]} : vector<8x1xf32> to vector<4x1xf32>
    %455 = vector.extract_strided_slice %405 {offsets = [3, 0], sizes = [1, 1], strides = [1, 1]} : vector<8x1xf32> to vector<1x1xf32>
    %456 = vector.broadcast %455 : vector<1x1xf32> to vector<4x1xf32>
    %457 = arith.mulf %454, %456 : vector<4x1xf32>
    %458 = arith.addf %442, %457 : vector<4x1xf32>
    %459 = vector.extract_strided_slice %387 {offsets = [0, 3, 0], sizes = [2, 1, 16], strides = [1, 1, 1]} : vector<2x8x16xf32> to vector<2x1x16xf32>
    %460 = vector.extract_strided_slice %403 {offsets = [3, 0], sizes = [1, 1], strides = [1, 1]} : vector<8x1xf32> to vector<1x1xf32>
    %461 = vector.broadcast %460 : vector<1x1xf32> to vector<4x1xf32>
    %462 = arith.mulf %454, %461 : vector<4x1xf32>
    %463 = vector.shape_cast %462 : vector<4x1xf32> to vector<1x4x1xf32>
    %464 = vector.broadcast %459 : vector<2x1x16xf32> to vector<2x4x16xf32>
    %465 = vector.broadcast %463 : vector<1x4x1xf32> to vector<2x4x16xf32>
    %466 = arith.mulf %464, %465 : vector<2x4x16xf32>
    %467 = arith.addf %451, %466 : vector<2x4x16xf32>
    %c36 = arith.constant 36 : index
    %c0_103 = arith.constant 0 : index
    %c0_104 = arith.constant 0 : index
    %468 = vector.load %arg1[%c36, %c0_103, %c0_104] : memref<120x8x1xf32, #tpu.memory_space<vmem>>, vector<1x8x1xf32>
    %469 = vector.shape_cast %468 : vector<1x8x1xf32> to vector<8x1xf32>
    %470 = vector.extract_strided_slice %469 {offsets = [0, 0], sizes = [4, 1], strides = [1, 1]} : vector<8x1xf32> to vector<4x1xf32>
    %471 = vector.extract_strided_slice %405 {offsets = [4, 0], sizes = [1, 1], strides = [1, 1]} : vector<8x1xf32> to vector<1x1xf32>
    %472 = vector.broadcast %471 : vector<1x1xf32> to vector<4x1xf32>
    %473 = arith.mulf %470, %472 : vector<4x1xf32>
    %474 = arith.addf %458, %473 : vector<4x1xf32>
    %475 = vector.extract_strided_slice %387 {offsets = [0, 4, 0], sizes = [2, 1, 16], strides = [1, 1, 1]} : vector<2x8x16xf32> to vector<2x1x16xf32>
    %476 = vector.extract_strided_slice %403 {offsets = [4, 0], sizes = [1, 1], strides = [1, 1]} : vector<8x1xf32> to vector<1x1xf32>
    %477 = vector.broadcast %476 : vector<1x1xf32> to vector<4x1xf32>
    %478 = arith.mulf %470, %477 : vector<4x1xf32>
    %479 = vector.shape_cast %478 : vector<4x1xf32> to vector<1x4x1xf32>
    %480 = vector.broadcast %475 : vector<2x1x16xf32> to vector<2x4x16xf32>
    %481 = vector.broadcast %479 : vector<1x4x1xf32> to vector<2x4x16xf32>
    %482 = arith.mulf %480, %481 : vector<2x4x16xf32>
    %483 = arith.addf %467, %482 : vector<2x4x16xf32>
    %c37 = arith.constant 37 : index
    %c0_105 = arith.constant 0 : index
    %c0_106 = arith.constant 0 : index
    %484 = vector.load %arg1[%c37, %c0_105, %c0_106] : memref<120x8x1xf32, #tpu.memory_space<vmem>>, vector<1x8x1xf32>
    %485 = vector.shape_cast %484 : vector<1x8x1xf32> to vector<8x1xf32>
    %486 = vector.extract_strided_slice %485 {offsets = [0, 0], sizes = [4, 1], strides = [1, 1]} : vector<8x1xf32> to vector<4x1xf32>
    %487 = vector.extract_strided_slice %405 {offsets = [5, 0], sizes = [1, 1], strides = [1, 1]} : vector<8x1xf32> to vector<1x1xf32>
    %488 = vector.broadcast %487 : vector<1x1xf32> to vector<4x1xf32>
    %489 = arith.mulf %486, %488 : vector<4x1xf32>
    %490 = arith.addf %474, %489 : vector<4x1xf32>
    %491 = vector.extract_strided_slice %387 {offsets = [0, 5, 0], sizes = [2, 1, 16], strides = [1, 1, 1]} : vector<2x8x16xf32> to vector<2x1x16xf32>
    %492 = vector.extract_strided_slice %403 {offsets = [5, 0], sizes = [1, 1], strides = [1, 1]} : vector<8x1xf32> to vector<1x1xf32>
    %493 = vector.broadcast %492 : vector<1x1xf32> to vector<4x1xf32>
    %494 = arith.mulf %486, %493 : vector<4x1xf32>
    %495 = vector.shape_cast %494 : vector<4x1xf32> to vector<1x4x1xf32>
    %496 = vector.broadcast %491 : vector<2x1x16xf32> to vector<2x4x16xf32>
    %497 = vector.broadcast %495 : vector<1x4x1xf32> to vector<2x4x16xf32>
    %498 = arith.mulf %496, %497 : vector<2x4x16xf32>
    %499 = arith.addf %483, %498 : vector<2x4x16xf32>
    %c38 = arith.constant 38 : index
    %c0_107 = arith.constant 0 : index
    %c0_108 = arith.constant 0 : index
    %500 = vector.load %arg1[%c38, %c0_107, %c0_108] : memref<120x8x1xf32, #tpu.memory_space<vmem>>, vector<1x8x1xf32>
    %501 = vector.shape_cast %500 : vector<1x8x1xf32> to vector<8x1xf32>
    %502 = vector.extract_strided_slice %501 {offsets = [0, 0], sizes = [4, 1], strides = [1, 1]} : vector<8x1xf32> to vector<4x1xf32>
    %503 = vector.extract_strided_slice %405 {offsets = [6, 0], sizes = [1, 1], strides = [1, 1]} : vector<8x1xf32> to vector<1x1xf32>
    %504 = vector.broadcast %503 : vector<1x1xf32> to vector<4x1xf32>
    %505 = arith.mulf %502, %504 : vector<4x1xf32>
    %506 = arith.addf %490, %505 : vector<4x1xf32>
    %507 = vector.extract_strided_slice %387 {offsets = [0, 6, 0], sizes = [2, 1, 16], strides = [1, 1, 1]} : vector<2x8x16xf32> to vector<2x1x16xf32>
    %508 = vector.extract_strided_slice %403 {offsets = [6, 0], sizes = [1, 1], strides = [1, 1]} : vector<8x1xf32> to vector<1x1xf32>
    %509 = vector.broadcast %508 : vector<1x1xf32> to vector<4x1xf32>
    %510 = arith.mulf %502, %509 : vector<4x1xf32>
    %511 = vector.shape_cast %510 : vector<4x1xf32> to vector<1x4x1xf32>
    %512 = vector.broadcast %507 : vector<2x1x16xf32> to vector<2x4x16xf32>
    %513 = vector.broadcast %511 : vector<1x4x1xf32> to vector<2x4x16xf32>
    %514 = arith.mulf %512, %513 : vector<2x4x16xf32>
    %515 = arith.addf %499, %514 : vector<2x4x16xf32>
    %c39 = arith.constant 39 : index
    %c0_109 = arith.constant 0 : index
    %c0_110 = arith.constant 0 : index
    %516 = vector.load %arg1[%c39, %c0_109, %c0_110] : memref<120x8x1xf32, #tpu.memory_space<vmem>>, vector<1x8x1xf32>
    %517 = vector.shape_cast %516 : vector<1x8x1xf32> to vector<8x1xf32>
    %518 = vector.extract_strided_slice %517 {offsets = [0, 0], sizes = [4, 1], strides = [1, 1]} : vector<8x1xf32> to vector<4x1xf32>
    %519 = vector.extract_strided_slice %405 {offsets = [7, 0], sizes = [1, 1], strides = [1, 1]} : vector<8x1xf32> to vector<1x1xf32>
    %520 = vector.broadcast %519 : vector<1x1xf32> to vector<4x1xf32>
    %521 = arith.mulf %518, %520 : vector<4x1xf32>
    %522 = arith.addf %506, %521 : vector<4x1xf32>
    %523 = vector.extract_strided_slice %387 {offsets = [0, 7, 0], sizes = [2, 1, 16], strides = [1, 1, 1]} : vector<2x8x16xf32> to vector<2x1x16xf32>
    %524 = vector.extract_strided_slice %403 {offsets = [7, 0], sizes = [1, 1], strides = [1, 1]} : vector<8x1xf32> to vector<1x1xf32>
    %525 = vector.broadcast %524 : vector<1x1xf32> to vector<4x1xf32>
    %526 = arith.mulf %518, %525 : vector<4x1xf32>
    %527 = vector.shape_cast %526 : vector<4x1xf32> to vector<1x4x1xf32>
    %528 = vector.broadcast %523 : vector<2x1x16xf32> to vector<2x4x16xf32>
    %529 = vector.broadcast %527 : vector<1x4x1xf32> to vector<2x4x16xf32>
    %530 = arith.mulf %528, %529 : vector<2x4x16xf32>
    %531 = arith.addf %515, %530 : vector<2x4x16xf32>
    %532 = vector.shape_cast %522 : vector<4x1xf32> to vector<1x4x1xf32>
    %533 = vector.broadcast %532 : vector<1x4x1xf32> to vector<2x4x16xf32>
    %534 = arith.addf %531, %533 : vector<2x4x16xf32>
    %535 = arith.addf %268, %534 : vector<2x4x16xf32>
    %c44 = arith.constant 44 : index
    %c0_111 = arith.constant 0 : index
    %c0_112 = arith.constant 0 : index
    %536 = vector.load %arg1[%c44, %c0_111, %c0_112] : memref<120x8x1xf32, #tpu.memory_space<vmem>>, vector<1x8x1xf32>
    %537 = vector.shape_cast %536 : vector<1x8x1xf32> to vector<8x1xf32>
    %538 = vector.extract_strided_slice %535 {offsets = [0, 0, 0], sizes = [2, 1, 16], strides = [1, 1, 1]} : vector<2x4x16xf32> to vector<2x1x16xf32>
    %c40 = arith.constant 40 : index
    %c0_113 = arith.constant 0 : index
    %c0_114 = arith.constant 0 : index
    %539 = vector.load %arg1[%c40, %c0_113, %c0_114] : memref<120x8x1xf32, #tpu.memory_space<vmem>>, vector<1x8x1xf32>
    %540 = vector.shape_cast %539 : vector<1x8x1xf32> to vector<8x1xf32>
    %541 = vector.shape_cast %540 : vector<8x1xf32> to vector<1x8x1xf32>
    %542 = vector.broadcast %538 : vector<2x1x16xf32> to vector<2x8x16xf32>
    %543 = vector.broadcast %541 : vector<1x8x1xf32> to vector<2x8x16xf32>
    %544 = arith.mulf %542, %543 : vector<2x8x16xf32>
    %545 = vector.shape_cast %537 : vector<8x1xf32> to vector<1x8x1xf32>
    %546 = vector.broadcast %545 : vector<1x8x1xf32> to vector<2x8x16xf32>
    %547 = arith.addf %546, %544 : vector<2x8x16xf32>
    %548 = vector.extract_strided_slice %535 {offsets = [0, 1, 0], sizes = [2, 1, 16], strides = [1, 1, 1]} : vector<2x4x16xf32> to vector<2x1x16xf32>
    %c41 = arith.constant 41 : index
    %c0_115 = arith.constant 0 : index
    %c0_116 = arith.constant 0 : index
    %549 = vector.load %arg1[%c41, %c0_115, %c0_116] : memref<120x8x1xf32, #tpu.memory_space<vmem>>, vector<1x8x1xf32>
    %550 = vector.shape_cast %549 : vector<1x8x1xf32> to vector<8x1xf32>
    %551 = vector.shape_cast %550 : vector<8x1xf32> to vector<1x8x1xf32>
    %552 = vector.broadcast %548 : vector<2x1x16xf32> to vector<2x8x16xf32>
    %553 = vector.broadcast %551 : vector<1x8x1xf32> to vector<2x8x16xf32>
    %554 = arith.mulf %552, %553 : vector<2x8x16xf32>
    %555 = arith.addf %547, %554 : vector<2x8x16xf32>
    %556 = vector.extract_strided_slice %535 {offsets = [0, 2, 0], sizes = [2, 1, 16], strides = [1, 1, 1]} : vector<2x4x16xf32> to vector<2x1x16xf32>
    %c42 = arith.constant 42 : index
    %c0_117 = arith.constant 0 : index
    %c0_118 = arith.constant 0 : index
    %557 = vector.load %arg1[%c42, %c0_117, %c0_118] : memref<120x8x1xf32, #tpu.memory_space<vmem>>, vector<1x8x1xf32>
    %558 = vector.shape_cast %557 : vector<1x8x1xf32> to vector<8x1xf32>
    %559 = vector.shape_cast %558 : vector<8x1xf32> to vector<1x8x1xf32>
    %560 = vector.broadcast %556 : vector<2x1x16xf32> to vector<2x8x16xf32>
    %561 = vector.broadcast %559 : vector<1x8x1xf32> to vector<2x8x16xf32>
    %562 = arith.mulf %560, %561 : vector<2x8x16xf32>
    %563 = arith.addf %555, %562 : vector<2x8x16xf32>
    %564 = vector.extract_strided_slice %535 {offsets = [0, 3, 0], sizes = [2, 1, 16], strides = [1, 1, 1]} : vector<2x4x16xf32> to vector<2x1x16xf32>
    %c43 = arith.constant 43 : index
    %c0_119 = arith.constant 0 : index
    %c0_120 = arith.constant 0 : index
    %565 = vector.load %arg1[%c43, %c0_119, %c0_120] : memref<120x8x1xf32, #tpu.memory_space<vmem>>, vector<1x8x1xf32>
    %566 = vector.shape_cast %565 : vector<1x8x1xf32> to vector<8x1xf32>
    %567 = vector.shape_cast %566 : vector<8x1xf32> to vector<1x8x1xf32>
    %568 = vector.broadcast %564 : vector<2x1x16xf32> to vector<2x8x16xf32>
    %569 = vector.broadcast %567 : vector<1x8x1xf32> to vector<2x8x16xf32>
    %570 = arith.mulf %568, %569 : vector<2x8x16xf32>
    %571 = arith.addf %563, %570 : vector<2x8x16xf32>
    %c2_121 = arith.constant 2 : index
    %572 = memref.load %arg2[%c2_121] : memref<12xf32, #tpu.memory_space<smem>>
    %cst_122 = arith.constant 0.000000e+00 : f32
    %573 = vector.broadcast %cst_122 : f32 to vector<2x8x16xf32>
    %574 = arith.cmpf ogt, %571, %573 : vector<2x8x16xf32>
    %575 = vector.broadcast %572 : f32 to vector<2x8x16xf32>
    %576 = arith.mulf %575, %571 : vector<2x8x16xf32>
    %577 = arith.select %574, %571, %576 : vector<2x8x16xi1>, vector<2x8x16xf32>
    %cst_123 = arith.constant dense<0.000000e+00> : vector<2x8xf32>
    %578 = vector.multi_reduction <add>, %577, %cst_123 [2] : vector<2x8x16xf32> to vector<2x8xf32>
    %579 = vector.shape_cast %578 : vector<2x8xf32> to vector<2x8x1xf32>
    %580 = vector.extract_strided_slice %579 {offsets = [0, 0, 0], sizes = [1, 8, 1], strides = [1, 1, 1]} : vector<2x8x1xf32> to vector<1x8x1xf32>
    %581 = vector.shape_cast %580 : vector<1x8x1xf32> to vector<8x1xf32>
    %582 = vector.extract_strided_slice %579 {offsets = [1, 0, 0], sizes = [1, 8, 1], strides = [1, 1, 1]} : vector<2x8x1xf32> to vector<1x8x1xf32>
    %583 = vector.shape_cast %582 : vector<1x8x1xf32> to vector<8x1xf32>
    %584 = arith.addf %581, %583 : vector<8x1xf32>
    %cst_124 = arith.constant 3.125000e-02 : f32
    %585 = vector.broadcast %cst_124 : f32 to vector<8x1xf32>
    %586 = arith.mulf %584, %585 : vector<8x1xf32>
    %587 = vector.shape_cast %586 : vector<8x1xf32> to vector<1x8x1xf32>
    %588 = vector.broadcast %587 : vector<1x8x1xf32> to vector<2x8x16xf32>
    %589 = arith.subf %577, %588 : vector<2x8x16xf32>
    %590 = arith.mulf %589, %589 : vector<2x8x16xf32>
    %cst_125 = arith.constant dense<0.000000e+00> : vector<2x8xf32>
    %591 = vector.multi_reduction <add>, %590, %cst_125 [2] : vector<2x8x16xf32> to vector<2x8xf32>
    %592 = vector.shape_cast %591 : vector<2x8xf32> to vector<2x8x1xf32>
    %593 = vector.extract_strided_slice %592 {offsets = [0, 0, 0], sizes = [1, 8, 1], strides = [1, 1, 1]} : vector<2x8x1xf32> to vector<1x8x1xf32>
    %594 = vector.shape_cast %593 : vector<1x8x1xf32> to vector<8x1xf32>
    %595 = vector.extract_strided_slice %592 {offsets = [1, 0, 0], sizes = [1, 8, 1], strides = [1, 1, 1]} : vector<2x8x1xf32> to vector<1x8x1xf32>
    %596 = vector.shape_cast %595 : vector<1x8x1xf32> to vector<8x1xf32>
    %597 = arith.addf %594, %596 : vector<8x1xf32>
    %cst_126 = arith.constant 3.125000e-02 : f32
    %598 = vector.broadcast %cst_126 : f32 to vector<8x1xf32>
    %599 = arith.mulf %597, %598 : vector<8x1xf32>
    %cst_127 = arith.constant 9.99999974E-6 : f32
    %600 = vector.broadcast %cst_127 : f32 to vector<8x1xf32>
    %601 = arith.addf %599, %600 : vector<8x1xf32>
    %602 = math.rsqrt %601 : vector<8x1xf32>
    %c45 = arith.constant 45 : index
    %c0_128 = arith.constant 0 : index
    %c0_129 = arith.constant 0 : index
    %603 = vector.load %arg1[%c45, %c0_128, %c0_129] : memref<120x8x1xf32, #tpu.memory_space<vmem>>, vector<1x8x1xf32>
    %604 = vector.shape_cast %603 : vector<1x8x1xf32> to vector<8x1xf32>
    %605 = arith.mulf %602, %604 : vector<8x1xf32>
    %606 = vector.shape_cast %605 : vector<8x1xf32> to vector<1x8x1xf32>
    %607 = vector.broadcast %606 : vector<1x8x1xf32> to vector<2x8x16xf32>
    %608 = arith.mulf %589, %607 : vector<2x8x16xf32>
    %c46 = arith.constant 46 : index
    %c0_130 = arith.constant 0 : index
    %c0_131 = arith.constant 0 : index
    %609 = vector.load %arg1[%c46, %c0_130, %c0_131] : memref<120x8x1xf32, #tpu.memory_space<vmem>>, vector<1x8x1xf32>
    %610 = vector.shape_cast %609 : vector<1x8x1xf32> to vector<8x1xf32>
    %611 = vector.shape_cast %610 : vector<8x1xf32> to vector<1x8x1xf32>
    %612 = vector.broadcast %611 : vector<1x8x1xf32> to vector<2x8x16xf32>
    %613 = arith.addf %608, %612 : vector<2x8x16xf32>
    %c48 = arith.constant 48 : index
    %c0_132 = arith.constant 0 : index
    %c0_133 = arith.constant 0 : index
    %614 = vector.load %arg1[%c48, %c0_132, %c0_133] : memref<120x8x1xf32, #tpu.memory_space<vmem>>, vector<1x8x1xf32>
    %615 = vector.shape_cast %614 : vector<1x8x1xf32> to vector<8x1xf32>
    %616 = vector.extract_strided_slice %613 {offsets = [0, 0, 0], sizes = [2, 8, 7], strides = [1, 1, 1]} : vector<2x8x16xf32> to vector<2x8x7xf32>
    %617 = tpu.concatenate %1, %616 in 2 : vector<2x8x9xf32>, vector<2x8x7xf32> -> vector<2x8x16xf32>
    %618 = vector.shape_cast %615 : vector<8x1xf32> to vector<1x8x1xf32>
    %619 = vector.broadcast %618 : vector<1x8x1xf32> to vector<2x8x16xf32>
    %620 = arith.mulf %617, %619 : vector<2x8x16xf32>
    %c49 = arith.constant 49 : index
    %c0_134 = arith.constant 0 : index
    %c0_135 = arith.constant 0 : index
    %621 = vector.load %arg1[%c49, %c0_134, %c0_135] : memref<120x8x1xf32, #tpu.memory_space<vmem>>, vector<1x8x1xf32>
    %622 = vector.shape_cast %621 : vector<1x8x1xf32> to vector<8x1xf32>
    %623 = vector.shape_cast %622 : vector<8x1xf32> to vector<1x8x1xf32>
    %624 = vector.broadcast %623 : vector<1x8x1xf32> to vector<2x8x16xf32>
    %625 = arith.mulf %613, %624 : vector<2x8x16xf32>
    %626 = arith.addf %620, %625 : vector<2x8x16xf32>
    %c8_136 = arith.constant 8 : index
    %627 = memref.load %arg2[%c8_136] : memref<12xf32, #tpu.memory_space<smem>>
    %cst_137 = arith.constant 0.000000e+00 : f32
    %628 = vector.broadcast %cst_137 : f32 to vector<2x8x16xf32>
    %629 = arith.cmpf ogt, %626, %628 : vector<2x8x16xf32>
    %630 = vector.broadcast %627 : f32 to vector<2x8x16xf32>
    %631 = arith.mulf %630, %626 : vector<2x8x16xf32>
    %632 = arith.select %629, %626, %631 : vector<2x8x16xi1>, vector<2x8x16xf32>
    %cst_138 = arith.constant dense<0.000000e+00> : vector<2x8xf32>
    %633 = vector.multi_reduction <add>, %632, %cst_138 [2] : vector<2x8x16xf32> to vector<2x8xf32>
    %634 = vector.shape_cast %633 : vector<2x8xf32> to vector<2x8x1xf32>
    %635 = vector.extract_strided_slice %634 {offsets = [0, 0, 0], sizes = [1, 8, 1], strides = [1, 1, 1]} : vector<2x8x1xf32> to vector<1x8x1xf32>
    %636 = vector.shape_cast %635 : vector<1x8x1xf32> to vector<8x1xf32>
    %637 = vector.extract_strided_slice %634 {offsets = [1, 0, 0], sizes = [1, 8, 1], strides = [1, 1, 1]} : vector<2x8x1xf32> to vector<1x8x1xf32>
    %638 = vector.shape_cast %637 : vector<1x8x1xf32> to vector<8x1xf32>
    %639 = arith.addf %636, %638 : vector<8x1xf32>
    %cst_139 = arith.constant 3.125000e-02 : f32
    %640 = vector.broadcast %cst_139 : f32 to vector<8x1xf32>
    %641 = arith.mulf %639, %640 : vector<8x1xf32>
    %642 = vector.shape_cast %641 : vector<8x1xf32> to vector<1x8x1xf32>
    %643 = vector.broadcast %642 : vector<1x8x1xf32> to vector<2x8x16xf32>
    %644 = arith.subf %632, %643 : vector<2x8x16xf32>
    %645 = arith.mulf %644, %644 : vector<2x8x16xf32>
    %cst_140 = arith.constant dense<0.000000e+00> : vector<2x8xf32>
    %646 = vector.multi_reduction <add>, %645, %cst_140 [2] : vector<2x8x16xf32> to vector<2x8xf32>
    %647 = vector.shape_cast %646 : vector<2x8xf32> to vector<2x8x1xf32>
    %648 = vector.extract_strided_slice %647 {offsets = [0, 0, 0], sizes = [1, 8, 1], strides = [1, 1, 1]} : vector<2x8x1xf32> to vector<1x8x1xf32>
    %649 = vector.shape_cast %648 : vector<1x8x1xf32> to vector<8x1xf32>
    %650 = vector.extract_strided_slice %647 {offsets = [1, 0, 0], sizes = [1, 8, 1], strides = [1, 1, 1]} : vector<2x8x1xf32> to vector<1x8x1xf32>
    %651 = vector.shape_cast %650 : vector<1x8x1xf32> to vector<8x1xf32>
    %652 = arith.addf %649, %651 : vector<8x1xf32>
    %cst_141 = arith.constant 3.125000e-02 : f32
    %653 = vector.broadcast %cst_141 : f32 to vector<8x1xf32>
    %654 = arith.mulf %652, %653 : vector<8x1xf32>
    %cst_142 = arith.constant 9.99999974E-6 : f32
    %655 = vector.broadcast %cst_142 : f32 to vector<8x1xf32>
    %656 = arith.addf %654, %655 : vector<8x1xf32>
    %657 = math.rsqrt %656 : vector<8x1xf32>
    %c50 = arith.constant 50 : index
    %c0_143 = arith.constant 0 : index
    %c0_144 = arith.constant 0 : index
    %658 = vector.load %arg1[%c50, %c0_143, %c0_144] : memref<120x8x1xf32, #tpu.memory_space<vmem>>, vector<1x8x1xf32>
    %659 = vector.shape_cast %658 : vector<1x8x1xf32> to vector<8x1xf32>
    %660 = arith.mulf %657, %659 : vector<8x1xf32>
    %c51 = arith.constant 51 : index
    %c0_145 = arith.constant 0 : index
    %c0_146 = arith.constant 0 : index
    %661 = vector.load %arg1[%c51, %c0_145, %c0_146] : memref<120x8x1xf32, #tpu.memory_space<vmem>>, vector<1x8x1xf32>
    %662 = vector.shape_cast %661 : vector<1x8x1xf32> to vector<8x1xf32>
    %c52 = arith.constant 52 : index
    %c0_147 = arith.constant 0 : index
    %c0_148 = arith.constant 0 : index
    %663 = vector.load %arg1[%c52, %c0_147, %c0_148] : memref<120x8x1xf32, #tpu.memory_space<vmem>>, vector<1x8x1xf32>
    %664 = vector.shape_cast %663 : vector<1x8x1xf32> to vector<8x1xf32>
    %665 = vector.extract_strided_slice %664 {offsets = [0, 0], sizes = [4, 1], strides = [1, 1]} : vector<8x1xf32> to vector<4x1xf32>
    %666 = vector.extract_strided_slice %662 {offsets = [0, 0], sizes = [1, 1], strides = [1, 1]} : vector<8x1xf32> to vector<1x1xf32>
    %667 = vector.broadcast %666 : vector<1x1xf32> to vector<4x1xf32>
    %668 = arith.mulf %665, %667 : vector<4x1xf32>
    %669 = vector.extract_strided_slice %644 {offsets = [0, 0, 0], sizes = [2, 1, 16], strides = [1, 1, 1]} : vector<2x8x16xf32> to vector<2x1x16xf32>
    %670 = vector.extract_strided_slice %660 {offsets = [0, 0], sizes = [1, 1], strides = [1, 1]} : vector<8x1xf32> to vector<1x1xf32>
    %671 = vector.broadcast %670 : vector<1x1xf32> to vector<4x1xf32>
    %672 = arith.mulf %665, %671 : vector<4x1xf32>
    %673 = vector.shape_cast %672 : vector<4x1xf32> to vector<1x4x1xf32>
    %674 = vector.broadcast %669 : vector<2x1x16xf32> to vector<2x4x16xf32>
    %675 = vector.broadcast %673 : vector<1x4x1xf32> to vector<2x4x16xf32>
    %676 = arith.mulf %674, %675 : vector<2x4x16xf32>
    %c53 = arith.constant 53 : index
    %c0_149 = arith.constant 0 : index
    %c0_150 = arith.constant 0 : index
    %677 = vector.load %arg1[%c53, %c0_149, %c0_150] : memref<120x8x1xf32, #tpu.memory_space<vmem>>, vector<1x8x1xf32>
    %678 = vector.shape_cast %677 : vector<1x8x1xf32> to vector<8x1xf32>
    %679 = vector.extract_strided_slice %678 {offsets = [0, 0], sizes = [4, 1], strides = [1, 1]} : vector<8x1xf32> to vector<4x1xf32>
    %680 = vector.extract_strided_slice %662 {offsets = [1, 0], sizes = [1, 1], strides = [1, 1]} : vector<8x1xf32> to vector<1x1xf32>
    %681 = vector.broadcast %680 : vector<1x1xf32> to vector<4x1xf32>
    %682 = arith.mulf %679, %681 : vector<4x1xf32>
    %683 = arith.addf %668, %682 : vector<4x1xf32>
    %684 = vector.extract_strided_slice %644 {offsets = [0, 1, 0], sizes = [2, 1, 16], strides = [1, 1, 1]} : vector<2x8x16xf32> to vector<2x1x16xf32>
    %685 = vector.extract_strided_slice %660 {offsets = [1, 0], sizes = [1, 1], strides = [1, 1]} : vector<8x1xf32> to vector<1x1xf32>
    %686 = vector.broadcast %685 : vector<1x1xf32> to vector<4x1xf32>
    %687 = arith.mulf %679, %686 : vector<4x1xf32>
    %688 = vector.shape_cast %687 : vector<4x1xf32> to vector<1x4x1xf32>
    %689 = vector.broadcast %684 : vector<2x1x16xf32> to vector<2x4x16xf32>
    %690 = vector.broadcast %688 : vector<1x4x1xf32> to vector<2x4x16xf32>
    %691 = arith.mulf %689, %690 : vector<2x4x16xf32>
    %692 = arith.addf %676, %691 : vector<2x4x16xf32>
    %c54 = arith.constant 54 : index
    %c0_151 = arith.constant 0 : index
    %c0_152 = arith.constant 0 : index
    %693 = vector.load %arg1[%c54, %c0_151, %c0_152] : memref<120x8x1xf32, #tpu.memory_space<vmem>>, vector<1x8x1xf32>
    %694 = vector.shape_cast %693 : vector<1x8x1xf32> to vector<8x1xf32>
    %695 = vector.extract_strided_slice %694 {offsets = [0, 0], sizes = [4, 1], strides = [1, 1]} : vector<8x1xf32> to vector<4x1xf32>
    %696 = vector.extract_strided_slice %662 {offsets = [2, 0], sizes = [1, 1], strides = [1, 1]} : vector<8x1xf32> to vector<1x1xf32>
    %697 = vector.broadcast %696 : vector<1x1xf32> to vector<4x1xf32>
    %698 = arith.mulf %695, %697 : vector<4x1xf32>
    %699 = arith.addf %683, %698 : vector<4x1xf32>
    %700 = vector.extract_strided_slice %644 {offsets = [0, 2, 0], sizes = [2, 1, 16], strides = [1, 1, 1]} : vector<2x8x16xf32> to vector<2x1x16xf32>
    %701 = vector.extract_strided_slice %660 {offsets = [2, 0], sizes = [1, 1], strides = [1, 1]} : vector<8x1xf32> to vector<1x1xf32>
    %702 = vector.broadcast %701 : vector<1x1xf32> to vector<4x1xf32>
    %703 = arith.mulf %695, %702 : vector<4x1xf32>
    %704 = vector.shape_cast %703 : vector<4x1xf32> to vector<1x4x1xf32>
    %705 = vector.broadcast %700 : vector<2x1x16xf32> to vector<2x4x16xf32>
    %706 = vector.broadcast %704 : vector<1x4x1xf32> to vector<2x4x16xf32>
    %707 = arith.mulf %705, %706 : vector<2x4x16xf32>
    %708 = arith.addf %692, %707 : vector<2x4x16xf32>
    %c55 = arith.constant 55 : index
    %c0_153 = arith.constant 0 : index
    %c0_154 = arith.constant 0 : index
    %709 = vector.load %arg1[%c55, %c0_153, %c0_154] : memref<120x8x1xf32, #tpu.memory_space<vmem>>, vector<1x8x1xf32>
    %710 = vector.shape_cast %709 : vector<1x8x1xf32> to vector<8x1xf32>
    %711 = vector.extract_strided_slice %710 {offsets = [0, 0], sizes = [4, 1], strides = [1, 1]} : vector<8x1xf32> to vector<4x1xf32>
    %712 = vector.extract_strided_slice %662 {offsets = [3, 0], sizes = [1, 1], strides = [1, 1]} : vector<8x1xf32> to vector<1x1xf32>
    %713 = vector.broadcast %712 : vector<1x1xf32> to vector<4x1xf32>
    %714 = arith.mulf %711, %713 : vector<4x1xf32>
    %715 = arith.addf %699, %714 : vector<4x1xf32>
    %716 = vector.extract_strided_slice %644 {offsets = [0, 3, 0], sizes = [2, 1, 16], strides = [1, 1, 1]} : vector<2x8x16xf32> to vector<2x1x16xf32>
    %717 = vector.extract_strided_slice %660 {offsets = [3, 0], sizes = [1, 1], strides = [1, 1]} : vector<8x1xf32> to vector<1x1xf32>
    %718 = vector.broadcast %717 : vector<1x1xf32> to vector<4x1xf32>
    %719 = arith.mulf %711, %718 : vector<4x1xf32>
    %720 = vector.shape_cast %719 : vector<4x1xf32> to vector<1x4x1xf32>
    %721 = vector.broadcast %716 : vector<2x1x16xf32> to vector<2x4x16xf32>
    %722 = vector.broadcast %720 : vector<1x4x1xf32> to vector<2x4x16xf32>
    %723 = arith.mulf %721, %722 : vector<2x4x16xf32>
    %724 = arith.addf %708, %723 : vector<2x4x16xf32>
    %c56 = arith.constant 56 : index
    %c0_155 = arith.constant 0 : index
    %c0_156 = arith.constant 0 : index
    %725 = vector.load %arg1[%c56, %c0_155, %c0_156] : memref<120x8x1xf32, #tpu.memory_space<vmem>>, vector<1x8x1xf32>
    %726 = vector.shape_cast %725 : vector<1x8x1xf32> to vector<8x1xf32>
    %727 = vector.extract_strided_slice %726 {offsets = [0, 0], sizes = [4, 1], strides = [1, 1]} : vector<8x1xf32> to vector<4x1xf32>
    %728 = vector.extract_strided_slice %662 {offsets = [4, 0], sizes = [1, 1], strides = [1, 1]} : vector<8x1xf32> to vector<1x1xf32>
    %729 = vector.broadcast %728 : vector<1x1xf32> to vector<4x1xf32>
    %730 = arith.mulf %727, %729 : vector<4x1xf32>
    %731 = arith.addf %715, %730 : vector<4x1xf32>
    %732 = vector.extract_strided_slice %644 {offsets = [0, 4, 0], sizes = [2, 1, 16], strides = [1, 1, 1]} : vector<2x8x16xf32> to vector<2x1x16xf32>
    %733 = vector.extract_strided_slice %660 {offsets = [4, 0], sizes = [1, 1], strides = [1, 1]} : vector<8x1xf32> to vector<1x1xf32>
    %734 = vector.broadcast %733 : vector<1x1xf32> to vector<4x1xf32>
    %735 = arith.mulf %727, %734 : vector<4x1xf32>
    %736 = vector.shape_cast %735 : vector<4x1xf32> to vector<1x4x1xf32>
    %737 = vector.broadcast %732 : vector<2x1x16xf32> to vector<2x4x16xf32>
    %738 = vector.broadcast %736 : vector<1x4x1xf32> to vector<2x4x16xf32>
    %739 = arith.mulf %737, %738 : vector<2x4x16xf32>
    %740 = arith.addf %724, %739 : vector<2x4x16xf32>
    %c57 = arith.constant 57 : index
    %c0_157 = arith.constant 0 : index
    %c0_158 = arith.constant 0 : index
    %741 = vector.load %arg1[%c57, %c0_157, %c0_158] : memref<120x8x1xf32, #tpu.memory_space<vmem>>, vector<1x8x1xf32>
    %742 = vector.shape_cast %741 : vector<1x8x1xf32> to vector<8x1xf32>
    %743 = vector.extract_strided_slice %742 {offsets = [0, 0], sizes = [4, 1], strides = [1, 1]} : vector<8x1xf32> to vector<4x1xf32>
    %744 = vector.extract_strided_slice %662 {offsets = [5, 0], sizes = [1, 1], strides = [1, 1]} : vector<8x1xf32> to vector<1x1xf32>
    %745 = vector.broadcast %744 : vector<1x1xf32> to vector<4x1xf32>
    %746 = arith.mulf %743, %745 : vector<4x1xf32>
    %747 = arith.addf %731, %746 : vector<4x1xf32>
    %748 = vector.extract_strided_slice %644 {offsets = [0, 5, 0], sizes = [2, 1, 16], strides = [1, 1, 1]} : vector<2x8x16xf32> to vector<2x1x16xf32>
    %749 = vector.extract_strided_slice %660 {offsets = [5, 0], sizes = [1, 1], strides = [1, 1]} : vector<8x1xf32> to vector<1x1xf32>
    %750 = vector.broadcast %749 : vector<1x1xf32> to vector<4x1xf32>
    %751 = arith.mulf %743, %750 : vector<4x1xf32>
    %752 = vector.shape_cast %751 : vector<4x1xf32> to vector<1x4x1xf32>
    %753 = vector.broadcast %748 : vector<2x1x16xf32> to vector<2x4x16xf32>
    %754 = vector.broadcast %752 : vector<1x4x1xf32> to vector<2x4x16xf32>
    %755 = arith.mulf %753, %754 : vector<2x4x16xf32>
    %756 = arith.addf %740, %755 : vector<2x4x16xf32>
    %c58 = arith.constant 58 : index
    %c0_159 = arith.constant 0 : index
    %c0_160 = arith.constant 0 : index
    %757 = vector.load %arg1[%c58, %c0_159, %c0_160] : memref<120x8x1xf32, #tpu.memory_space<vmem>>, vector<1x8x1xf32>
    %758 = vector.shape_cast %757 : vector<1x8x1xf32> to vector<8x1xf32>
    %759 = vector.extract_strided_slice %758 {offsets = [0, 0], sizes = [4, 1], strides = [1, 1]} : vector<8x1xf32> to vector<4x1xf32>
    %760 = vector.extract_strided_slice %662 {offsets = [6, 0], sizes = [1, 1], strides = [1, 1]} : vector<8x1xf32> to vector<1x1xf32>
    %761 = vector.broadcast %760 : vector<1x1xf32> to vector<4x1xf32>
    %762 = arith.mulf %759, %761 : vector<4x1xf32>
    %763 = arith.addf %747, %762 : vector<4x1xf32>
    %764 = vector.extract_strided_slice %644 {offsets = [0, 6, 0], sizes = [2, 1, 16], strides = [1, 1, 1]} : vector<2x8x16xf32> to vector<2x1x16xf32>
    %765 = vector.extract_strided_slice %660 {offsets = [6, 0], sizes = [1, 1], strides = [1, 1]} : vector<8x1xf32> to vector<1x1xf32>
    %766 = vector.broadcast %765 : vector<1x1xf32> to vector<4x1xf32>
    %767 = arith.mulf %759, %766 : vector<4x1xf32>
    %768 = vector.shape_cast %767 : vector<4x1xf32> to vector<1x4x1xf32>
    %769 = vector.broadcast %764 : vector<2x1x16xf32> to vector<2x4x16xf32>
    %770 = vector.broadcast %768 : vector<1x4x1xf32> to vector<2x4x16xf32>
    %771 = arith.mulf %769, %770 : vector<2x4x16xf32>
    %772 = arith.addf %756, %771 : vector<2x4x16xf32>
    %c59 = arith.constant 59 : index
    %c0_161 = arith.constant 0 : index
    %c0_162 = arith.constant 0 : index
    %773 = vector.load %arg1[%c59, %c0_161, %c0_162] : memref<120x8x1xf32, #tpu.memory_space<vmem>>, vector<1x8x1xf32>
    %774 = vector.shape_cast %773 : vector<1x8x1xf32> to vector<8x1xf32>
    %775 = vector.extract_strided_slice %774 {offsets = [0, 0], sizes = [4, 1], strides = [1, 1]} : vector<8x1xf32> to vector<4x1xf32>
    %776 = vector.extract_strided_slice %662 {offsets = [7, 0], sizes = [1, 1], strides = [1, 1]} : vector<8x1xf32> to vector<1x1xf32>
    %777 = vector.broadcast %776 : vector<1x1xf32> to vector<4x1xf32>
    %778 = arith.mulf %775, %777 : vector<4x1xf32>
    %779 = arith.addf %763, %778 : vector<4x1xf32>
    %780 = vector.extract_strided_slice %644 {offsets = [0, 7, 0], sizes = [2, 1, 16], strides = [1, 1, 1]} : vector<2x8x16xf32> to vector<2x1x16xf32>
    %781 = vector.extract_strided_slice %660 {offsets = [7, 0], sizes = [1, 1], strides = [1, 1]} : vector<8x1xf32> to vector<1x1xf32>
    %782 = vector.broadcast %781 : vector<1x1xf32> to vector<4x1xf32>
    %783 = arith.mulf %775, %782 : vector<4x1xf32>
    %784 = vector.shape_cast %783 : vector<4x1xf32> to vector<1x4x1xf32>
    %785 = vector.broadcast %780 : vector<2x1x16xf32> to vector<2x4x16xf32>
    %786 = vector.broadcast %784 : vector<1x4x1xf32> to vector<2x4x16xf32>
    %787 = arith.mulf %785, %786 : vector<2x4x16xf32>
    %788 = arith.addf %772, %787 : vector<2x4x16xf32>
    %789 = vector.shape_cast %779 : vector<4x1xf32> to vector<1x4x1xf32>
    %790 = vector.broadcast %789 : vector<1x4x1xf32> to vector<2x4x16xf32>
    %791 = arith.addf %788, %790 : vector<2x4x16xf32>
    %792 = arith.addf %535, %791 : vector<2x4x16xf32>
    %c64 = arith.constant 64 : index
    %c0_163 = arith.constant 0 : index
    %c0_164 = arith.constant 0 : index
    %793 = vector.load %arg1[%c64, %c0_163, %c0_164] : memref<120x8x1xf32, #tpu.memory_space<vmem>>, vector<1x8x1xf32>
    %794 = vector.shape_cast %793 : vector<1x8x1xf32> to vector<8x1xf32>
    %795 = vector.extract_strided_slice %792 {offsets = [0, 0, 0], sizes = [2, 1, 16], strides = [1, 1, 1]} : vector<2x4x16xf32> to vector<2x1x16xf32>
    %c60 = arith.constant 60 : index
    %c0_165 = arith.constant 0 : index
    %c0_166 = arith.constant 0 : index
    %796 = vector.load %arg1[%c60, %c0_165, %c0_166] : memref<120x8x1xf32, #tpu.memory_space<vmem>>, vector<1x8x1xf32>
    %797 = vector.shape_cast %796 : vector<1x8x1xf32> to vector<8x1xf32>
    %798 = vector.shape_cast %797 : vector<8x1xf32> to vector<1x8x1xf32>
    %799 = vector.broadcast %795 : vector<2x1x16xf32> to vector<2x8x16xf32>
    %800 = vector.broadcast %798 : vector<1x8x1xf32> to vector<2x8x16xf32>
    %801 = arith.mulf %799, %800 : vector<2x8x16xf32>
    %802 = vector.shape_cast %794 : vector<8x1xf32> to vector<1x8x1xf32>
    %803 = vector.broadcast %802 : vector<1x8x1xf32> to vector<2x8x16xf32>
    %804 = arith.addf %803, %801 : vector<2x8x16xf32>
    %805 = vector.extract_strided_slice %792 {offsets = [0, 1, 0], sizes = [2, 1, 16], strides = [1, 1, 1]} : vector<2x4x16xf32> to vector<2x1x16xf32>
    %c61 = arith.constant 61 : index
    %c0_167 = arith.constant 0 : index
    %c0_168 = arith.constant 0 : index
    %806 = vector.load %arg1[%c61, %c0_167, %c0_168] : memref<120x8x1xf32, #tpu.memory_space<vmem>>, vector<1x8x1xf32>
    %807 = vector.shape_cast %806 : vector<1x8x1xf32> to vector<8x1xf32>
    %808 = vector.shape_cast %807 : vector<8x1xf32> to vector<1x8x1xf32>
    %809 = vector.broadcast %805 : vector<2x1x16xf32> to vector<2x8x16xf32>
    %810 = vector.broadcast %808 : vector<1x8x1xf32> to vector<2x8x16xf32>
    %811 = arith.mulf %809, %810 : vector<2x8x16xf32>
    %812 = arith.addf %804, %811 : vector<2x8x16xf32>
    %813 = vector.extract_strided_slice %792 {offsets = [0, 2, 0], sizes = [2, 1, 16], strides = [1, 1, 1]} : vector<2x4x16xf32> to vector<2x1x16xf32>
    %c62 = arith.constant 62 : index
    %c0_169 = arith.constant 0 : index
    %c0_170 = arith.constant 0 : index
    %814 = vector.load %arg1[%c62, %c0_169, %c0_170] : memref<120x8x1xf32, #tpu.memory_space<vmem>>, vector<1x8x1xf32>
    %815 = vector.shape_cast %814 : vector<1x8x1xf32> to vector<8x1xf32>
    %816 = vector.shape_cast %815 : vector<8x1xf32> to vector<1x8x1xf32>
    %817 = vector.broadcast %813 : vector<2x1x16xf32> to vector<2x8x16xf32>
    %818 = vector.broadcast %816 : vector<1x8x1xf32> to vector<2x8x16xf32>
    %819 = arith.mulf %817, %818 : vector<2x8x16xf32>
    %820 = arith.addf %812, %819 : vector<2x8x16xf32>
    %821 = vector.extract_strided_slice %792 {offsets = [0, 3, 0], sizes = [2, 1, 16], strides = [1, 1, 1]} : vector<2x4x16xf32> to vector<2x1x16xf32>
    %c63 = arith.constant 63 : index
    %c0_171 = arith.constant 0 : index
    %c0_172 = arith.constant 0 : index
    %822 = vector.load %arg1[%c63, %c0_171, %c0_172] : memref<120x8x1xf32, #tpu.memory_space<vmem>>, vector<1x8x1xf32>
    %823 = vector.shape_cast %822 : vector<1x8x1xf32> to vector<8x1xf32>
    %824 = vector.shape_cast %823 : vector<8x1xf32> to vector<1x8x1xf32>
    %825 = vector.broadcast %821 : vector<2x1x16xf32> to vector<2x8x16xf32>
    %826 = vector.broadcast %824 : vector<1x8x1xf32> to vector<2x8x16xf32>
    %827 = arith.mulf %825, %826 : vector<2x8x16xf32>
    %828 = arith.addf %820, %827 : vector<2x8x16xf32>
    %c3_173 = arith.constant 3 : index
    %829 = memref.load %arg2[%c3_173] : memref<12xf32, #tpu.memory_space<smem>>
    %cst_174 = arith.constant 0.000000e+00 : f32
    %830 = vector.broadcast %cst_174 : f32 to vector<2x8x16xf32>
    %831 = arith.cmpf ogt, %828, %830 : vector<2x8x16xf32>
    %832 = vector.broadcast %829 : f32 to vector<2x8x16xf32>
    %833 = arith.mulf %832, %828 : vector<2x8x16xf32>
    %834 = arith.select %831, %828, %833 : vector<2x8x16xi1>, vector<2x8x16xf32>
    %cst_175 = arith.constant dense<0.000000e+00> : vector<2x8xf32>
    %835 = vector.multi_reduction <add>, %834, %cst_175 [2] : vector<2x8x16xf32> to vector<2x8xf32>
    %836 = vector.shape_cast %835 : vector<2x8xf32> to vector<2x8x1xf32>
    %837 = vector.extract_strided_slice %836 {offsets = [0, 0, 0], sizes = [1, 8, 1], strides = [1, 1, 1]} : vector<2x8x1xf32> to vector<1x8x1xf32>
    %838 = vector.shape_cast %837 : vector<1x8x1xf32> to vector<8x1xf32>
    %839 = vector.extract_strided_slice %836 {offsets = [1, 0, 0], sizes = [1, 8, 1], strides = [1, 1, 1]} : vector<2x8x1xf32> to vector<1x8x1xf32>
    %840 = vector.shape_cast %839 : vector<1x8x1xf32> to vector<8x1xf32>
    %841 = arith.addf %838, %840 : vector<8x1xf32>
    %cst_176 = arith.constant 3.125000e-02 : f32
    %842 = vector.broadcast %cst_176 : f32 to vector<8x1xf32>
    %843 = arith.mulf %841, %842 : vector<8x1xf32>
    %844 = vector.shape_cast %843 : vector<8x1xf32> to vector<1x8x1xf32>
    %845 = vector.broadcast %844 : vector<1x8x1xf32> to vector<2x8x16xf32>
    %846 = arith.subf %834, %845 : vector<2x8x16xf32>
    %847 = arith.mulf %846, %846 : vector<2x8x16xf32>
    %cst_177 = arith.constant dense<0.000000e+00> : vector<2x8xf32>
    %848 = vector.multi_reduction <add>, %847, %cst_177 [2] : vector<2x8x16xf32> to vector<2x8xf32>
    %849 = vector.shape_cast %848 : vector<2x8xf32> to vector<2x8x1xf32>
    %850 = vector.extract_strided_slice %849 {offsets = [0, 0, 0], sizes = [1, 8, 1], strides = [1, 1, 1]} : vector<2x8x1xf32> to vector<1x8x1xf32>
    %851 = vector.shape_cast %850 : vector<1x8x1xf32> to vector<8x1xf32>
    %852 = vector.extract_strided_slice %849 {offsets = [1, 0, 0], sizes = [1, 8, 1], strides = [1, 1, 1]} : vector<2x8x1xf32> to vector<1x8x1xf32>
    %853 = vector.shape_cast %852 : vector<1x8x1xf32> to vector<8x1xf32>
    %854 = arith.addf %851, %853 : vector<8x1xf32>
    %cst_178 = arith.constant 3.125000e-02 : f32
    %855 = vector.broadcast %cst_178 : f32 to vector<8x1xf32>
    %856 = arith.mulf %854, %855 : vector<8x1xf32>
    %cst_179 = arith.constant 9.99999974E-6 : f32
    %857 = vector.broadcast %cst_179 : f32 to vector<8x1xf32>
    %858 = arith.addf %856, %857 : vector<8x1xf32>
    %859 = math.rsqrt %858 : vector<8x1xf32>
    %c65 = arith.constant 65 : index
    %c0_180 = arith.constant 0 : index
    %c0_181 = arith.constant 0 : index
    %860 = vector.load %arg1[%c65, %c0_180, %c0_181] : memref<120x8x1xf32, #tpu.memory_space<vmem>>, vector<1x8x1xf32>
    %861 = vector.shape_cast %860 : vector<1x8x1xf32> to vector<8x1xf32>
    %862 = arith.mulf %859, %861 : vector<8x1xf32>
    %863 = vector.shape_cast %862 : vector<8x1xf32> to vector<1x8x1xf32>
    %864 = vector.broadcast %863 : vector<1x8x1xf32> to vector<2x8x16xf32>
    %865 = arith.mulf %846, %864 : vector<2x8x16xf32>
    %c66 = arith.constant 66 : index
    %c0_182 = arith.constant 0 : index
    %c0_183 = arith.constant 0 : index
    %866 = vector.load %arg1[%c66, %c0_182, %c0_183] : memref<120x8x1xf32, #tpu.memory_space<vmem>>, vector<1x8x1xf32>
    %867 = vector.shape_cast %866 : vector<1x8x1xf32> to vector<8x1xf32>
    %868 = vector.shape_cast %867 : vector<8x1xf32> to vector<1x8x1xf32>
    %869 = vector.broadcast %868 : vector<1x8x1xf32> to vector<2x8x16xf32>
    %870 = arith.addf %865, %869 : vector<2x8x16xf32>
    %c69 = arith.constant 69 : index
    %c0_184 = arith.constant 0 : index
    %c0_185 = arith.constant 0 : index
    %871 = vector.load %arg1[%c69, %c0_184, %c0_185] : memref<120x8x1xf32, #tpu.memory_space<vmem>>, vector<1x8x1xf32>
    %872 = vector.shape_cast %871 : vector<1x8x1xf32> to vector<8x1xf32>
    %873 = vector.shape_cast %872 : vector<8x1xf32> to vector<1x8x1xf32>
    %874 = vector.broadcast %873 : vector<1x8x1xf32> to vector<2x8x16xf32>
    %875 = arith.mulf %870, %874 : vector<2x8x16xf32>
    %c9_186 = arith.constant 9 : index
    %876 = memref.load %arg2[%c9_186] : memref<12xf32, #tpu.memory_space<smem>>
    %cst_187 = arith.constant 0.000000e+00 : f32
    %877 = vector.broadcast %cst_187 : f32 to vector<2x8x16xf32>
    %878 = arith.cmpf ogt, %875, %877 : vector<2x8x16xf32>
    %879 = vector.broadcast %876 : f32 to vector<2x8x16xf32>
    %880 = arith.mulf %879, %875 : vector<2x8x16xf32>
    %881 = arith.select %878, %875, %880 : vector<2x8x16xi1>, vector<2x8x16xf32>
    %cst_188 = arith.constant dense<0.000000e+00> : vector<2x8xf32>
    %882 = vector.multi_reduction <add>, %881, %cst_188 [2] : vector<2x8x16xf32> to vector<2x8xf32>
    %883 = vector.shape_cast %882 : vector<2x8xf32> to vector<2x8x1xf32>
    %884 = vector.extract_strided_slice %883 {offsets = [0, 0, 0], sizes = [1, 8, 1], strides = [1, 1, 1]} : vector<2x8x1xf32> to vector<1x8x1xf32>
    %885 = vector.shape_cast %884 : vector<1x8x1xf32> to vector<8x1xf32>
    %886 = vector.extract_strided_slice %883 {offsets = [1, 0, 0], sizes = [1, 8, 1], strides = [1, 1, 1]} : vector<2x8x1xf32> to vector<1x8x1xf32>
    %887 = vector.shape_cast %886 : vector<1x8x1xf32> to vector<8x1xf32>
    %888 = arith.addf %885, %887 : vector<8x1xf32>
    %cst_189 = arith.constant 3.125000e-02 : f32
    %889 = vector.broadcast %cst_189 : f32 to vector<8x1xf32>
    %890 = arith.mulf %888, %889 : vector<8x1xf32>
    %891 = vector.shape_cast %890 : vector<8x1xf32> to vector<1x8x1xf32>
    %892 = vector.broadcast %891 : vector<1x8x1xf32> to vector<2x8x16xf32>
    %893 = arith.subf %881, %892 : vector<2x8x16xf32>
    %894 = arith.mulf %893, %893 : vector<2x8x16xf32>
    %cst_190 = arith.constant dense<0.000000e+00> : vector<2x8xf32>
    %895 = vector.multi_reduction <add>, %894, %cst_190 [2] : vector<2x8x16xf32> to vector<2x8xf32>
    %896 = vector.shape_cast %895 : vector<2x8xf32> to vector<2x8x1xf32>
    %897 = vector.extract_strided_slice %896 {offsets = [0, 0, 0], sizes = [1, 8, 1], strides = [1, 1, 1]} : vector<2x8x1xf32> to vector<1x8x1xf32>
    %898 = vector.shape_cast %897 : vector<1x8x1xf32> to vector<8x1xf32>
    %899 = vector.extract_strided_slice %896 {offsets = [1, 0, 0], sizes = [1, 8, 1], strides = [1, 1, 1]} : vector<2x8x1xf32> to vector<1x8x1xf32>
    %900 = vector.shape_cast %899 : vector<1x8x1xf32> to vector<8x1xf32>
    %901 = arith.addf %898, %900 : vector<8x1xf32>
    %cst_191 = arith.constant 3.125000e-02 : f32
    %902 = vector.broadcast %cst_191 : f32 to vector<8x1xf32>
    %903 = arith.mulf %901, %902 : vector<8x1xf32>
    %cst_192 = arith.constant 9.99999974E-6 : f32
    %904 = vector.broadcast %cst_192 : f32 to vector<8x1xf32>
    %905 = arith.addf %903, %904 : vector<8x1xf32>
    %906 = math.rsqrt %905 : vector<8x1xf32>
    %c70 = arith.constant 70 : index
    %c0_193 = arith.constant 0 : index
    %c0_194 = arith.constant 0 : index
    %907 = vector.load %arg1[%c70, %c0_193, %c0_194] : memref<120x8x1xf32, #tpu.memory_space<vmem>>, vector<1x8x1xf32>
    %908 = vector.shape_cast %907 : vector<1x8x1xf32> to vector<8x1xf32>
    %909 = arith.mulf %906, %908 : vector<8x1xf32>
    %c71 = arith.constant 71 : index
    %c0_195 = arith.constant 0 : index
    %c0_196 = arith.constant 0 : index
    %910 = vector.load %arg1[%c71, %c0_195, %c0_196] : memref<120x8x1xf32, #tpu.memory_space<vmem>>, vector<1x8x1xf32>
    %911 = vector.shape_cast %910 : vector<1x8x1xf32> to vector<8x1xf32>
    %c72 = arith.constant 72 : index
    %c0_197 = arith.constant 0 : index
    %c0_198 = arith.constant 0 : index
    %912 = vector.load %arg1[%c72, %c0_197, %c0_198] : memref<120x8x1xf32, #tpu.memory_space<vmem>>, vector<1x8x1xf32>
    %913 = vector.shape_cast %912 : vector<1x8x1xf32> to vector<8x1xf32>
    %914 = vector.extract_strided_slice %913 {offsets = [0, 0], sizes = [4, 1], strides = [1, 1]} : vector<8x1xf32> to vector<4x1xf32>
    %915 = vector.extract_strided_slice %911 {offsets = [0, 0], sizes = [1, 1], strides = [1, 1]} : vector<8x1xf32> to vector<1x1xf32>
    %916 = vector.broadcast %915 : vector<1x1xf32> to vector<4x1xf32>
    %917 = arith.mulf %914, %916 : vector<4x1xf32>
    %918 = vector.extract_strided_slice %893 {offsets = [0, 0, 0], sizes = [2, 1, 16], strides = [1, 1, 1]} : vector<2x8x16xf32> to vector<2x1x16xf32>
    %919 = vector.extract_strided_slice %909 {offsets = [0, 0], sizes = [1, 1], strides = [1, 1]} : vector<8x1xf32> to vector<1x1xf32>
    %920 = vector.broadcast %919 : vector<1x1xf32> to vector<4x1xf32>
    %921 = arith.mulf %914, %920 : vector<4x1xf32>
    %922 = vector.shape_cast %921 : vector<4x1xf32> to vector<1x4x1xf32>
    %923 = vector.broadcast %918 : vector<2x1x16xf32> to vector<2x4x16xf32>
    %924 = vector.broadcast %922 : vector<1x4x1xf32> to vector<2x4x16xf32>
    %925 = arith.mulf %923, %924 : vector<2x4x16xf32>
    %c73 = arith.constant 73 : index
    %c0_199 = arith.constant 0 : index
    %c0_200 = arith.constant 0 : index
    %926 = vector.load %arg1[%c73, %c0_199, %c0_200] : memref<120x8x1xf32, #tpu.memory_space<vmem>>, vector<1x8x1xf32>
    %927 = vector.shape_cast %926 : vector<1x8x1xf32> to vector<8x1xf32>
    %928 = vector.extract_strided_slice %927 {offsets = [0, 0], sizes = [4, 1], strides = [1, 1]} : vector<8x1xf32> to vector<4x1xf32>
    %929 = vector.extract_strided_slice %911 {offsets = [1, 0], sizes = [1, 1], strides = [1, 1]} : vector<8x1xf32> to vector<1x1xf32>
    %930 = vector.broadcast %929 : vector<1x1xf32> to vector<4x1xf32>
    %931 = arith.mulf %928, %930 : vector<4x1xf32>
    %932 = arith.addf %917, %931 : vector<4x1xf32>
    %933 = vector.extract_strided_slice %893 {offsets = [0, 1, 0], sizes = [2, 1, 16], strides = [1, 1, 1]} : vector<2x8x16xf32> to vector<2x1x16xf32>
    %934 = vector.extract_strided_slice %909 {offsets = [1, 0], sizes = [1, 1], strides = [1, 1]} : vector<8x1xf32> to vector<1x1xf32>
    %935 = vector.broadcast %934 : vector<1x1xf32> to vector<4x1xf32>
    %936 = arith.mulf %928, %935 : vector<4x1xf32>
    %937 = vector.shape_cast %936 : vector<4x1xf32> to vector<1x4x1xf32>
    %938 = vector.broadcast %933 : vector<2x1x16xf32> to vector<2x4x16xf32>
    %939 = vector.broadcast %937 : vector<1x4x1xf32> to vector<2x4x16xf32>
    %940 = arith.mulf %938, %939 : vector<2x4x16xf32>
    %941 = arith.addf %925, %940 : vector<2x4x16xf32>
    %c74 = arith.constant 74 : index
    %c0_201 = arith.constant 0 : index
    %c0_202 = arith.constant 0 : index
    %942 = vector.load %arg1[%c74, %c0_201, %c0_202] : memref<120x8x1xf32, #tpu.memory_space<vmem>>, vector<1x8x1xf32>
    %943 = vector.shape_cast %942 : vector<1x8x1xf32> to vector<8x1xf32>
    %944 = vector.extract_strided_slice %943 {offsets = [0, 0], sizes = [4, 1], strides = [1, 1]} : vector<8x1xf32> to vector<4x1xf32>
    %945 = vector.extract_strided_slice %911 {offsets = [2, 0], sizes = [1, 1], strides = [1, 1]} : vector<8x1xf32> to vector<1x1xf32>
    %946 = vector.broadcast %945 : vector<1x1xf32> to vector<4x1xf32>
    %947 = arith.mulf %944, %946 : vector<4x1xf32>
    %948 = arith.addf %932, %947 : vector<4x1xf32>
    %949 = vector.extract_strided_slice %893 {offsets = [0, 2, 0], sizes = [2, 1, 16], strides = [1, 1, 1]} : vector<2x8x16xf32> to vector<2x1x16xf32>
    %950 = vector.extract_strided_slice %909 {offsets = [2, 0], sizes = [1, 1], strides = [1, 1]} : vector<8x1xf32> to vector<1x1xf32>
    %951 = vector.broadcast %950 : vector<1x1xf32> to vector<4x1xf32>
    %952 = arith.mulf %944, %951 : vector<4x1xf32>
    %953 = vector.shape_cast %952 : vector<4x1xf32> to vector<1x4x1xf32>
    %954 = vector.broadcast %949 : vector<2x1x16xf32> to vector<2x4x16xf32>
    %955 = vector.broadcast %953 : vector<1x4x1xf32> to vector<2x4x16xf32>
    %956 = arith.mulf %954, %955 : vector<2x4x16xf32>
    %957 = arith.addf %941, %956 : vector<2x4x16xf32>
    %c75 = arith.constant 75 : index
    %c0_203 = arith.constant 0 : index
    %c0_204 = arith.constant 0 : index
    %958 = vector.load %arg1[%c75, %c0_203, %c0_204] : memref<120x8x1xf32, #tpu.memory_space<vmem>>, vector<1x8x1xf32>
    %959 = vector.shape_cast %958 : vector<1x8x1xf32> to vector<8x1xf32>
    %960 = vector.extract_strided_slice %959 {offsets = [0, 0], sizes = [4, 1], strides = [1, 1]} : vector<8x1xf32> to vector<4x1xf32>
    %961 = vector.extract_strided_slice %911 {offsets = [3, 0], sizes = [1, 1], strides = [1, 1]} : vector<8x1xf32> to vector<1x1xf32>
    %962 = vector.broadcast %961 : vector<1x1xf32> to vector<4x1xf32>
    %963 = arith.mulf %960, %962 : vector<4x1xf32>
    %964 = arith.addf %948, %963 : vector<4x1xf32>
    %965 = vector.extract_strided_slice %893 {offsets = [0, 3, 0], sizes = [2, 1, 16], strides = [1, 1, 1]} : vector<2x8x16xf32> to vector<2x1x16xf32>
    %966 = vector.extract_strided_slice %909 {offsets = [3, 0], sizes = [1, 1], strides = [1, 1]} : vector<8x1xf32> to vector<1x1xf32>
    %967 = vector.broadcast %966 : vector<1x1xf32> to vector<4x1xf32>
    %968 = arith.mulf %960, %967 : vector<4x1xf32>
    %969 = vector.shape_cast %968 : vector<4x1xf32> to vector<1x4x1xf32>
    %970 = vector.broadcast %965 : vector<2x1x16xf32> to vector<2x4x16xf32>
    %971 = vector.broadcast %969 : vector<1x4x1xf32> to vector<2x4x16xf32>
    %972 = arith.mulf %970, %971 : vector<2x4x16xf32>
    %973 = arith.addf %957, %972 : vector<2x4x16xf32>
    %c76 = arith.constant 76 : index
    %c0_205 = arith.constant 0 : index
    %c0_206 = arith.constant 0 : index
    %974 = vector.load %arg1[%c76, %c0_205, %c0_206] : memref<120x8x1xf32, #tpu.memory_space<vmem>>, vector<1x8x1xf32>
    %975 = vector.shape_cast %974 : vector<1x8x1xf32> to vector<8x1xf32>
    %976 = vector.extract_strided_slice %975 {offsets = [0, 0], sizes = [4, 1], strides = [1, 1]} : vector<8x1xf32> to vector<4x1xf32>
    %977 = vector.extract_strided_slice %911 {offsets = [4, 0], sizes = [1, 1], strides = [1, 1]} : vector<8x1xf32> to vector<1x1xf32>
    %978 = vector.broadcast %977 : vector<1x1xf32> to vector<4x1xf32>
    %979 = arith.mulf %976, %978 : vector<4x1xf32>
    %980 = arith.addf %964, %979 : vector<4x1xf32>
    %981 = vector.extract_strided_slice %893 {offsets = [0, 4, 0], sizes = [2, 1, 16], strides = [1, 1, 1]} : vector<2x8x16xf32> to vector<2x1x16xf32>
    %982 = vector.extract_strided_slice %909 {offsets = [4, 0], sizes = [1, 1], strides = [1, 1]} : vector<8x1xf32> to vector<1x1xf32>
    %983 = vector.broadcast %982 : vector<1x1xf32> to vector<4x1xf32>
    %984 = arith.mulf %976, %983 : vector<4x1xf32>
    %985 = vector.shape_cast %984 : vector<4x1xf32> to vector<1x4x1xf32>
    %986 = vector.broadcast %981 : vector<2x1x16xf32> to vector<2x4x16xf32>
    %987 = vector.broadcast %985 : vector<1x4x1xf32> to vector<2x4x16xf32>
    %988 = arith.mulf %986, %987 : vector<2x4x16xf32>
    %989 = arith.addf %973, %988 : vector<2x4x16xf32>
    %c77 = arith.constant 77 : index
    %c0_207 = arith.constant 0 : index
    %c0_208 = arith.constant 0 : index
    %990 = vector.load %arg1[%c77, %c0_207, %c0_208] : memref<120x8x1xf32, #tpu.memory_space<vmem>>, vector<1x8x1xf32>
    %991 = vector.shape_cast %990 : vector<1x8x1xf32> to vector<8x1xf32>
    %992 = vector.extract_strided_slice %991 {offsets = [0, 0], sizes = [4, 1], strides = [1, 1]} : vector<8x1xf32> to vector<4x1xf32>
    %993 = vector.extract_strided_slice %911 {offsets = [5, 0], sizes = [1, 1], strides = [1, 1]} : vector<8x1xf32> to vector<1x1xf32>
    %994 = vector.broadcast %993 : vector<1x1xf32> to vector<4x1xf32>
    %995 = arith.mulf %992, %994 : vector<4x1xf32>
    %996 = arith.addf %980, %995 : vector<4x1xf32>
    %997 = vector.extract_strided_slice %893 {offsets = [0, 5, 0], sizes = [2, 1, 16], strides = [1, 1, 1]} : vector<2x8x16xf32> to vector<2x1x16xf32>
    %998 = vector.extract_strided_slice %909 {offsets = [5, 0], sizes = [1, 1], strides = [1, 1]} : vector<8x1xf32> to vector<1x1xf32>
    %999 = vector.broadcast %998 : vector<1x1xf32> to vector<4x1xf32>
    %1000 = arith.mulf %992, %999 : vector<4x1xf32>
    %1001 = vector.shape_cast %1000 : vector<4x1xf32> to vector<1x4x1xf32>
    %1002 = vector.broadcast %997 : vector<2x1x16xf32> to vector<2x4x16xf32>
    %1003 = vector.broadcast %1001 : vector<1x4x1xf32> to vector<2x4x16xf32>
    %1004 = arith.mulf %1002, %1003 : vector<2x4x16xf32>
    %1005 = arith.addf %989, %1004 : vector<2x4x16xf32>
    %c78 = arith.constant 78 : index
    %c0_209 = arith.constant 0 : index
    %c0_210 = arith.constant 0 : index
    %1006 = vector.load %arg1[%c78, %c0_209, %c0_210] : memref<120x8x1xf32, #tpu.memory_space<vmem>>, vector<1x8x1xf32>
    %1007 = vector.shape_cast %1006 : vector<1x8x1xf32> to vector<8x1xf32>
    %1008 = vector.extract_strided_slice %1007 {offsets = [0, 0], sizes = [4, 1], strides = [1, 1]} : vector<8x1xf32> to vector<4x1xf32>
    %1009 = vector.extract_strided_slice %911 {offsets = [6, 0], sizes = [1, 1], strides = [1, 1]} : vector<8x1xf32> to vector<1x1xf32>
    %1010 = vector.broadcast %1009 : vector<1x1xf32> to vector<4x1xf32>
    %1011 = arith.mulf %1008, %1010 : vector<4x1xf32>
    %1012 = arith.addf %996, %1011 : vector<4x1xf32>
    %1013 = vector.extract_strided_slice %893 {offsets = [0, 6, 0], sizes = [2, 1, 16], strides = [1, 1, 1]} : vector<2x8x16xf32> to vector<2x1x16xf32>
    %1014 = vector.extract_strided_slice %909 {offsets = [6, 0], sizes = [1, 1], strides = [1, 1]} : vector<8x1xf32> to vector<1x1xf32>
    %1015 = vector.broadcast %1014 : vector<1x1xf32> to vector<4x1xf32>
    %1016 = arith.mulf %1008, %1015 : vector<4x1xf32>
    %1017 = vector.shape_cast %1016 : vector<4x1xf32> to vector<1x4x1xf32>
    %1018 = vector.broadcast %1013 : vector<2x1x16xf32> to vector<2x4x16xf32>
    %1019 = vector.broadcast %1017 : vector<1x4x1xf32> to vector<2x4x16xf32>
    %1020 = arith.mulf %1018, %1019 : vector<2x4x16xf32>
    %1021 = arith.addf %1005, %1020 : vector<2x4x16xf32>
    %c79 = arith.constant 79 : index
    %c0_211 = arith.constant 0 : index
    %c0_212 = arith.constant 0 : index
    %1022 = vector.load %arg1[%c79, %c0_211, %c0_212] : memref<120x8x1xf32, #tpu.memory_space<vmem>>, vector<1x8x1xf32>
    %1023 = vector.shape_cast %1022 : vector<1x8x1xf32> to vector<8x1xf32>
    %1024 = vector.extract_strided_slice %1023 {offsets = [0, 0], sizes = [4, 1], strides = [1, 1]} : vector<8x1xf32> to vector<4x1xf32>
    %1025 = vector.extract_strided_slice %911 {offsets = [7, 0], sizes = [1, 1], strides = [1, 1]} : vector<8x1xf32> to vector<1x1xf32>
    %1026 = vector.broadcast %1025 : vector<1x1xf32> to vector<4x1xf32>
    %1027 = arith.mulf %1024, %1026 : vector<4x1xf32>
    %1028 = arith.addf %1012, %1027 : vector<4x1xf32>
    %1029 = vector.extract_strided_slice %893 {offsets = [0, 7, 0], sizes = [2, 1, 16], strides = [1, 1, 1]} : vector<2x8x16xf32> to vector<2x1x16xf32>
    %1030 = vector.extract_strided_slice %909 {offsets = [7, 0], sizes = [1, 1], strides = [1, 1]} : vector<8x1xf32> to vector<1x1xf32>
    %1031 = vector.broadcast %1030 : vector<1x1xf32> to vector<4x1xf32>
    %1032 = arith.mulf %1024, %1031 : vector<4x1xf32>
    %1033 = vector.shape_cast %1032 : vector<4x1xf32> to vector<1x4x1xf32>
    %1034 = vector.broadcast %1029 : vector<2x1x16xf32> to vector<2x4x16xf32>
    %1035 = vector.broadcast %1033 : vector<1x4x1xf32> to vector<2x4x16xf32>
    %1036 = arith.mulf %1034, %1035 : vector<2x4x16xf32>
    %1037 = arith.addf %1021, %1036 : vector<2x4x16xf32>
    %1038 = vector.shape_cast %1028 : vector<4x1xf32> to vector<1x4x1xf32>
    %1039 = vector.broadcast %1038 : vector<1x4x1xf32> to vector<2x4x16xf32>
    %1040 = arith.addf %1037, %1039 : vector<2x4x16xf32>
    %1041 = arith.addf %792, %1040 : vector<2x4x16xf32>
    %c84 = arith.constant 84 : index
    %c0_213 = arith.constant 0 : index
    %c0_214 = arith.constant 0 : index
    %1042 = vector.load %arg1[%c84, %c0_213, %c0_214] : memref<120x8x1xf32, #tpu.memory_space<vmem>>, vector<1x8x1xf32>
    %1043 = vector.shape_cast %1042 : vector<1x8x1xf32> to vector<8x1xf32>
    %1044 = vector.extract_strided_slice %1041 {offsets = [0, 0, 0], sizes = [2, 1, 16], strides = [1, 1, 1]} : vector<2x4x16xf32> to vector<2x1x16xf32>
    %c80 = arith.constant 80 : index
    %c0_215 = arith.constant 0 : index
    %c0_216 = arith.constant 0 : index
    %1045 = vector.load %arg1[%c80, %c0_215, %c0_216] : memref<120x8x1xf32, #tpu.memory_space<vmem>>, vector<1x8x1xf32>
    %1046 = vector.shape_cast %1045 : vector<1x8x1xf32> to vector<8x1xf32>
    %1047 = vector.shape_cast %1046 : vector<8x1xf32> to vector<1x8x1xf32>
    %1048 = vector.broadcast %1044 : vector<2x1x16xf32> to vector<2x8x16xf32>
    %1049 = vector.broadcast %1047 : vector<1x8x1xf32> to vector<2x8x16xf32>
    %1050 = arith.mulf %1048, %1049 : vector<2x8x16xf32>
    %1051 = vector.shape_cast %1043 : vector<8x1xf32> to vector<1x8x1xf32>
    %1052 = vector.broadcast %1051 : vector<1x8x1xf32> to vector<2x8x16xf32>
    %1053 = arith.addf %1052, %1050 : vector<2x8x16xf32>
    %1054 = vector.extract_strided_slice %1041 {offsets = [0, 1, 0], sizes = [2, 1, 16], strides = [1, 1, 1]} : vector<2x4x16xf32> to vector<2x1x16xf32>
    %c81 = arith.constant 81 : index
    %c0_217 = arith.constant 0 : index
    %c0_218 = arith.constant 0 : index
    %1055 = vector.load %arg1[%c81, %c0_217, %c0_218] : memref<120x8x1xf32, #tpu.memory_space<vmem>>, vector<1x8x1xf32>
    %1056 = vector.shape_cast %1055 : vector<1x8x1xf32> to vector<8x1xf32>
    %1057 = vector.shape_cast %1056 : vector<8x1xf32> to vector<1x8x1xf32>
    %1058 = vector.broadcast %1054 : vector<2x1x16xf32> to vector<2x8x16xf32>
    %1059 = vector.broadcast %1057 : vector<1x8x1xf32> to vector<2x8x16xf32>
    %1060 = arith.mulf %1058, %1059 : vector<2x8x16xf32>
    %1061 = arith.addf %1053, %1060 : vector<2x8x16xf32>
    %1062 = vector.extract_strided_slice %1041 {offsets = [0, 2, 0], sizes = [2, 1, 16], strides = [1, 1, 1]} : vector<2x4x16xf32> to vector<2x1x16xf32>
    %c82 = arith.constant 82 : index
    %c0_219 = arith.constant 0 : index
    %c0_220 = arith.constant 0 : index
    %1063 = vector.load %arg1[%c82, %c0_219, %c0_220] : memref<120x8x1xf32, #tpu.memory_space<vmem>>, vector<1x8x1xf32>
    %1064 = vector.shape_cast %1063 : vector<1x8x1xf32> to vector<8x1xf32>
    %1065 = vector.shape_cast %1064 : vector<8x1xf32> to vector<1x8x1xf32>
    %1066 = vector.broadcast %1062 : vector<2x1x16xf32> to vector<2x8x16xf32>
    %1067 = vector.broadcast %1065 : vector<1x8x1xf32> to vector<2x8x16xf32>
    %1068 = arith.mulf %1066, %1067 : vector<2x8x16xf32>
    %1069 = arith.addf %1061, %1068 : vector<2x8x16xf32>
    %1070 = vector.extract_strided_slice %1041 {offsets = [0, 3, 0], sizes = [2, 1, 16], strides = [1, 1, 1]} : vector<2x4x16xf32> to vector<2x1x16xf32>
    %c83 = arith.constant 83 : index
    %c0_221 = arith.constant 0 : index
    %c0_222 = arith.constant 0 : index
    %1071 = vector.load %arg1[%c83, %c0_221, %c0_222] : memref<120x8x1xf32, #tpu.memory_space<vmem>>, vector<1x8x1xf32>
    %1072 = vector.shape_cast %1071 : vector<1x8x1xf32> to vector<8x1xf32>
    %1073 = vector.shape_cast %1072 : vector<8x1xf32> to vector<1x8x1xf32>
    %1074 = vector.broadcast %1070 : vector<2x1x16xf32> to vector<2x8x16xf32>
    %1075 = vector.broadcast %1073 : vector<1x8x1xf32> to vector<2x8x16xf32>
    %1076 = arith.mulf %1074, %1075 : vector<2x8x16xf32>
    %1077 = arith.addf %1069, %1076 : vector<2x8x16xf32>
    %c4_223 = arith.constant 4 : index
    %1078 = memref.load %arg2[%c4_223] : memref<12xf32, #tpu.memory_space<smem>>
    %cst_224 = arith.constant 0.000000e+00 : f32
    %1079 = vector.broadcast %cst_224 : f32 to vector<2x8x16xf32>
    %1080 = arith.cmpf ogt, %1077, %1079 : vector<2x8x16xf32>
    %1081 = vector.broadcast %1078 : f32 to vector<2x8x16xf32>
    %1082 = arith.mulf %1081, %1077 : vector<2x8x16xf32>
    %1083 = arith.select %1080, %1077, %1082 : vector<2x8x16xi1>, vector<2x8x16xf32>
    %cst_225 = arith.constant dense<0.000000e+00> : vector<2x8xf32>
    %1084 = vector.multi_reduction <add>, %1083, %cst_225 [2] : vector<2x8x16xf32> to vector<2x8xf32>
    %1085 = vector.shape_cast %1084 : vector<2x8xf32> to vector<2x8x1xf32>
    %1086 = vector.extract_strided_slice %1085 {offsets = [0, 0, 0], sizes = [1, 8, 1], strides = [1, 1, 1]} : vector<2x8x1xf32> to vector<1x8x1xf32>
    %1087 = vector.shape_cast %1086 : vector<1x8x1xf32> to vector<8x1xf32>
    %1088 = vector.extract_strided_slice %1085 {offsets = [1, 0, 0], sizes = [1, 8, 1], strides = [1, 1, 1]} : vector<2x8x1xf32> to vector<1x8x1xf32>
    %1089 = vector.shape_cast %1088 : vector<1x8x1xf32> to vector<8x1xf32>
    %1090 = arith.addf %1087, %1089 : vector<8x1xf32>
    %cst_226 = arith.constant 3.125000e-02 : f32
    %1091 = vector.broadcast %cst_226 : f32 to vector<8x1xf32>
    %1092 = arith.mulf %1090, %1091 : vector<8x1xf32>
    %1093 = vector.shape_cast %1092 : vector<8x1xf32> to vector<1x8x1xf32>
    %1094 = vector.broadcast %1093 : vector<1x8x1xf32> to vector<2x8x16xf32>
    %1095 = arith.subf %1083, %1094 : vector<2x8x16xf32>
    %1096 = arith.mulf %1095, %1095 : vector<2x8x16xf32>
    %cst_227 = arith.constant dense<0.000000e+00> : vector<2x8xf32>
    %1097 = vector.multi_reduction <add>, %1096, %cst_227 [2] : vector<2x8x16xf32> to vector<2x8xf32>
    %1098 = vector.shape_cast %1097 : vector<2x8xf32> to vector<2x8x1xf32>
    %1099 = vector.extract_strided_slice %1098 {offsets = [0, 0, 0], sizes = [1, 8, 1], strides = [1, 1, 1]} : vector<2x8x1xf32> to vector<1x8x1xf32>
    %1100 = vector.shape_cast %1099 : vector<1x8x1xf32> to vector<8x1xf32>
    %1101 = vector.extract_strided_slice %1098 {offsets = [1, 0, 0], sizes = [1, 8, 1], strides = [1, 1, 1]} : vector<2x8x1xf32> to vector<1x8x1xf32>
    %1102 = vector.shape_cast %1101 : vector<1x8x1xf32> to vector<8x1xf32>
    %1103 = arith.addf %1100, %1102 : vector<8x1xf32>
    %cst_228 = arith.constant 3.125000e-02 : f32
    %1104 = vector.broadcast %cst_228 : f32 to vector<8x1xf32>
    %1105 = arith.mulf %1103, %1104 : vector<8x1xf32>
    %cst_229 = arith.constant 9.99999974E-6 : f32
    %1106 = vector.broadcast %cst_229 : f32 to vector<8x1xf32>
    %1107 = arith.addf %1105, %1106 : vector<8x1xf32>
    %1108 = math.rsqrt %1107 : vector<8x1xf32>
    %c85 = arith.constant 85 : index
    %c0_230 = arith.constant 0 : index
    %c0_231 = arith.constant 0 : index
    %1109 = vector.load %arg1[%c85, %c0_230, %c0_231] : memref<120x8x1xf32, #tpu.memory_space<vmem>>, vector<1x8x1xf32>
    %1110 = vector.shape_cast %1109 : vector<1x8x1xf32> to vector<8x1xf32>
    %1111 = arith.mulf %1108, %1110 : vector<8x1xf32>
    %1112 = vector.shape_cast %1111 : vector<8x1xf32> to vector<1x8x1xf32>
    %1113 = vector.broadcast %1112 : vector<1x8x1xf32> to vector<2x8x16xf32>
    %1114 = arith.mulf %1095, %1113 : vector<2x8x16xf32>
    %c86 = arith.constant 86 : index
    %c0_232 = arith.constant 0 : index
    %c0_233 = arith.constant 0 : index
    %1115 = vector.load %arg1[%c86, %c0_232, %c0_233] : memref<120x8x1xf32, #tpu.memory_space<vmem>>, vector<1x8x1xf32>
    %1116 = vector.shape_cast %1115 : vector<1x8x1xf32> to vector<8x1xf32>
    %1117 = vector.shape_cast %1116 : vector<8x1xf32> to vector<1x8x1xf32>
    %1118 = vector.broadcast %1117 : vector<1x8x1xf32> to vector<2x8x16xf32>
    %1119 = arith.addf %1114, %1118 : vector<2x8x16xf32>
    %c89 = arith.constant 89 : index
    %c0_234 = arith.constant 0 : index
    %c0_235 = arith.constant 0 : index
    %1120 = vector.load %arg1[%c89, %c0_234, %c0_235] : memref<120x8x1xf32, #tpu.memory_space<vmem>>, vector<1x8x1xf32>
    %1121 = vector.shape_cast %1120 : vector<1x8x1xf32> to vector<8x1xf32>
    %1122 = vector.shape_cast %1121 : vector<8x1xf32> to vector<1x8x1xf32>
    %1123 = vector.broadcast %1122 : vector<1x8x1xf32> to vector<2x8x16xf32>
    %1124 = arith.mulf %1119, %1123 : vector<2x8x16xf32>
    %c10_236 = arith.constant 10 : index
    %1125 = memref.load %arg2[%c10_236] : memref<12xf32, #tpu.memory_space<smem>>
    %cst_237 = arith.constant 0.000000e+00 : f32
    %1126 = vector.broadcast %cst_237 : f32 to vector<2x8x16xf32>
    %1127 = arith.cmpf ogt, %1124, %1126 : vector<2x8x16xf32>
    %1128 = vector.broadcast %1125 : f32 to vector<2x8x16xf32>
    %1129 = arith.mulf %1128, %1124 : vector<2x8x16xf32>
    %1130 = arith.select %1127, %1124, %1129 : vector<2x8x16xi1>, vector<2x8x16xf32>
    %cst_238 = arith.constant dense<0.000000e+00> : vector<2x8xf32>
    %1131 = vector.multi_reduction <add>, %1130, %cst_238 [2] : vector<2x8x16xf32> to vector<2x8xf32>
    %1132 = vector.shape_cast %1131 : vector<2x8xf32> to vector<2x8x1xf32>
    %1133 = vector.extract_strided_slice %1132 {offsets = [0, 0, 0], sizes = [1, 8, 1], strides = [1, 1, 1]} : vector<2x8x1xf32> to vector<1x8x1xf32>
    %1134 = vector.shape_cast %1133 : vector<1x8x1xf32> to vector<8x1xf32>
    %1135 = vector.extract_strided_slice %1132 {offsets = [1, 0, 0], sizes = [1, 8, 1], strides = [1, 1, 1]} : vector<2x8x1xf32> to vector<1x8x1xf32>
    %1136 = vector.shape_cast %1135 : vector<1x8x1xf32> to vector<8x1xf32>
    %1137 = arith.addf %1134, %1136 : vector<8x1xf32>
    %cst_239 = arith.constant 3.125000e-02 : f32
    %1138 = vector.broadcast %cst_239 : f32 to vector<8x1xf32>
    %1139 = arith.mulf %1137, %1138 : vector<8x1xf32>
    %1140 = vector.shape_cast %1139 : vector<8x1xf32> to vector<1x8x1xf32>
    %1141 = vector.broadcast %1140 : vector<1x8x1xf32> to vector<2x8x16xf32>
    %1142 = arith.subf %1130, %1141 : vector<2x8x16xf32>
    %1143 = arith.mulf %1142, %1142 : vector<2x8x16xf32>
    %cst_240 = arith.constant dense<0.000000e+00> : vector<2x8xf32>
    %1144 = vector.multi_reduction <add>, %1143, %cst_240 [2] : vector<2x8x16xf32> to vector<2x8xf32>
    %1145 = vector.shape_cast %1144 : vector<2x8xf32> to vector<2x8x1xf32>
    %1146 = vector.extract_strided_slice %1145 {offsets = [0, 0, 0], sizes = [1, 8, 1], strides = [1, 1, 1]} : vector<2x8x1xf32> to vector<1x8x1xf32>
    %1147 = vector.shape_cast %1146 : vector<1x8x1xf32> to vector<8x1xf32>
    %1148 = vector.extract_strided_slice %1145 {offsets = [1, 0, 0], sizes = [1, 8, 1], strides = [1, 1, 1]} : vector<2x8x1xf32> to vector<1x8x1xf32>
    %1149 = vector.shape_cast %1148 : vector<1x8x1xf32> to vector<8x1xf32>
    %1150 = arith.addf %1147, %1149 : vector<8x1xf32>
    %cst_241 = arith.constant 3.125000e-02 : f32
    %1151 = vector.broadcast %cst_241 : f32 to vector<8x1xf32>
    %1152 = arith.mulf %1150, %1151 : vector<8x1xf32>
    %cst_242 = arith.constant 9.99999974E-6 : f32
    %1153 = vector.broadcast %cst_242 : f32 to vector<8x1xf32>
    %1154 = arith.addf %1152, %1153 : vector<8x1xf32>
    %1155 = math.rsqrt %1154 : vector<8x1xf32>
    %c90 = arith.constant 90 : index
    %c0_243 = arith.constant 0 : index
    %c0_244 = arith.constant 0 : index
    %1156 = vector.load %arg1[%c90, %c0_243, %c0_244] : memref<120x8x1xf32, #tpu.memory_space<vmem>>, vector<1x8x1xf32>
    %1157 = vector.shape_cast %1156 : vector<1x8x1xf32> to vector<8x1xf32>
    %1158 = arith.mulf %1155, %1157 : vector<8x1xf32>
    %c91 = arith.constant 91 : index
    %c0_245 = arith.constant 0 : index
    %c0_246 = arith.constant 0 : index
    %1159 = vector.load %arg1[%c91, %c0_245, %c0_246] : memref<120x8x1xf32, #tpu.memory_space<vmem>>, vector<1x8x1xf32>
    %1160 = vector.shape_cast %1159 : vector<1x8x1xf32> to vector<8x1xf32>
    %c92 = arith.constant 92 : index
    %c0_247 = arith.constant 0 : index
    %c0_248 = arith.constant 0 : index
    %1161 = vector.load %arg1[%c92, %c0_247, %c0_248] : memref<120x8x1xf32, #tpu.memory_space<vmem>>, vector<1x8x1xf32>
    %1162 = vector.shape_cast %1161 : vector<1x8x1xf32> to vector<8x1xf32>
    %1163 = vector.extract_strided_slice %1162 {offsets = [0, 0], sizes = [4, 1], strides = [1, 1]} : vector<8x1xf32> to vector<4x1xf32>
    %1164 = vector.extract_strided_slice %1160 {offsets = [0, 0], sizes = [1, 1], strides = [1, 1]} : vector<8x1xf32> to vector<1x1xf32>
    %1165 = vector.broadcast %1164 : vector<1x1xf32> to vector<4x1xf32>
    %1166 = arith.mulf %1163, %1165 : vector<4x1xf32>
    %1167 = vector.extract_strided_slice %1142 {offsets = [0, 0, 0], sizes = [2, 1, 16], strides = [1, 1, 1]} : vector<2x8x16xf32> to vector<2x1x16xf32>
    %1168 = vector.extract_strided_slice %1158 {offsets = [0, 0], sizes = [1, 1], strides = [1, 1]} : vector<8x1xf32> to vector<1x1xf32>
    %1169 = vector.broadcast %1168 : vector<1x1xf32> to vector<4x1xf32>
    %1170 = arith.mulf %1163, %1169 : vector<4x1xf32>
    %1171 = vector.shape_cast %1170 : vector<4x1xf32> to vector<1x4x1xf32>
    %1172 = vector.broadcast %1167 : vector<2x1x16xf32> to vector<2x4x16xf32>
    %1173 = vector.broadcast %1171 : vector<1x4x1xf32> to vector<2x4x16xf32>
    %1174 = arith.mulf %1172, %1173 : vector<2x4x16xf32>
    %c93 = arith.constant 93 : index
    %c0_249 = arith.constant 0 : index
    %c0_250 = arith.constant 0 : index
    %1175 = vector.load %arg1[%c93, %c0_249, %c0_250] : memref<120x8x1xf32, #tpu.memory_space<vmem>>, vector<1x8x1xf32>
    %1176 = vector.shape_cast %1175 : vector<1x8x1xf32> to vector<8x1xf32>
    %1177 = vector.extract_strided_slice %1176 {offsets = [0, 0], sizes = [4, 1], strides = [1, 1]} : vector<8x1xf32> to vector<4x1xf32>
    %1178 = vector.extract_strided_slice %1160 {offsets = [1, 0], sizes = [1, 1], strides = [1, 1]} : vector<8x1xf32> to vector<1x1xf32>
    %1179 = vector.broadcast %1178 : vector<1x1xf32> to vector<4x1xf32>
    %1180 = arith.mulf %1177, %1179 : vector<4x1xf32>
    %1181 = arith.addf %1166, %1180 : vector<4x1xf32>
    %1182 = vector.extract_strided_slice %1142 {offsets = [0, 1, 0], sizes = [2, 1, 16], strides = [1, 1, 1]} : vector<2x8x16xf32> to vector<2x1x16xf32>
    %1183 = vector.extract_strided_slice %1158 {offsets = [1, 0], sizes = [1, 1], strides = [1, 1]} : vector<8x1xf32> to vector<1x1xf32>
    %1184 = vector.broadcast %1183 : vector<1x1xf32> to vector<4x1xf32>
    %1185 = arith.mulf %1177, %1184 : vector<4x1xf32>
    %1186 = vector.shape_cast %1185 : vector<4x1xf32> to vector<1x4x1xf32>
    %1187 = vector.broadcast %1182 : vector<2x1x16xf32> to vector<2x4x16xf32>
    %1188 = vector.broadcast %1186 : vector<1x4x1xf32> to vector<2x4x16xf32>
    %1189 = arith.mulf %1187, %1188 : vector<2x4x16xf32>
    %1190 = arith.addf %1174, %1189 : vector<2x4x16xf32>
    %c94 = arith.constant 94 : index
    %c0_251 = arith.constant 0 : index
    %c0_252 = arith.constant 0 : index
    %1191 = vector.load %arg1[%c94, %c0_251, %c0_252] : memref<120x8x1xf32, #tpu.memory_space<vmem>>, vector<1x8x1xf32>
    %1192 = vector.shape_cast %1191 : vector<1x8x1xf32> to vector<8x1xf32>
    %1193 = vector.extract_strided_slice %1192 {offsets = [0, 0], sizes = [4, 1], strides = [1, 1]} : vector<8x1xf32> to vector<4x1xf32>
    %1194 = vector.extract_strided_slice %1160 {offsets = [2, 0], sizes = [1, 1], strides = [1, 1]} : vector<8x1xf32> to vector<1x1xf32>
    %1195 = vector.broadcast %1194 : vector<1x1xf32> to vector<4x1xf32>
    %1196 = arith.mulf %1193, %1195 : vector<4x1xf32>
    %1197 = arith.addf %1181, %1196 : vector<4x1xf32>
    %1198 = vector.extract_strided_slice %1142 {offsets = [0, 2, 0], sizes = [2, 1, 16], strides = [1, 1, 1]} : vector<2x8x16xf32> to vector<2x1x16xf32>
    %1199 = vector.extract_strided_slice %1158 {offsets = [2, 0], sizes = [1, 1], strides = [1, 1]} : vector<8x1xf32> to vector<1x1xf32>
    %1200 = vector.broadcast %1199 : vector<1x1xf32> to vector<4x1xf32>
    %1201 = arith.mulf %1193, %1200 : vector<4x1xf32>
    %1202 = vector.shape_cast %1201 : vector<4x1xf32> to vector<1x4x1xf32>
    %1203 = vector.broadcast %1198 : vector<2x1x16xf32> to vector<2x4x16xf32>
    %1204 = vector.broadcast %1202 : vector<1x4x1xf32> to vector<2x4x16xf32>
    %1205 = arith.mulf %1203, %1204 : vector<2x4x16xf32>
    %1206 = arith.addf %1190, %1205 : vector<2x4x16xf32>
    %c95 = arith.constant 95 : index
    %c0_253 = arith.constant 0 : index
    %c0_254 = arith.constant 0 : index
    %1207 = vector.load %arg1[%c95, %c0_253, %c0_254] : memref<120x8x1xf32, #tpu.memory_space<vmem>>, vector<1x8x1xf32>
    %1208 = vector.shape_cast %1207 : vector<1x8x1xf32> to vector<8x1xf32>
    %1209 = vector.extract_strided_slice %1208 {offsets = [0, 0], sizes = [4, 1], strides = [1, 1]} : vector<8x1xf32> to vector<4x1xf32>
    %1210 = vector.extract_strided_slice %1160 {offsets = [3, 0], sizes = [1, 1], strides = [1, 1]} : vector<8x1xf32> to vector<1x1xf32>
    %1211 = vector.broadcast %1210 : vector<1x1xf32> to vector<4x1xf32>
    %1212 = arith.mulf %1209, %1211 : vector<4x1xf32>
    %1213 = arith.addf %1197, %1212 : vector<4x1xf32>
    %1214 = vector.extract_strided_slice %1142 {offsets = [0, 3, 0], sizes = [2, 1, 16], strides = [1, 1, 1]} : vector<2x8x16xf32> to vector<2x1x16xf32>
    %1215 = vector.extract_strided_slice %1158 {offsets = [3, 0], sizes = [1, 1], strides = [1, 1]} : vector<8x1xf32> to vector<1x1xf32>
    %1216 = vector.broadcast %1215 : vector<1x1xf32> to vector<4x1xf32>
    %1217 = arith.mulf %1209, %1216 : vector<4x1xf32>
    %1218 = vector.shape_cast %1217 : vector<4x1xf32> to vector<1x4x1xf32>
    %1219 = vector.broadcast %1214 : vector<2x1x16xf32> to vector<2x4x16xf32>
    %1220 = vector.broadcast %1218 : vector<1x4x1xf32> to vector<2x4x16xf32>
    %1221 = arith.mulf %1219, %1220 : vector<2x4x16xf32>
    %1222 = arith.addf %1206, %1221 : vector<2x4x16xf32>
    %c96 = arith.constant 96 : index
    %c0_255 = arith.constant 0 : index
    %c0_256 = arith.constant 0 : index
    %1223 = vector.load %arg1[%c96, %c0_255, %c0_256] : memref<120x8x1xf32, #tpu.memory_space<vmem>>, vector<1x8x1xf32>
    %1224 = vector.shape_cast %1223 : vector<1x8x1xf32> to vector<8x1xf32>
    %1225 = vector.extract_strided_slice %1224 {offsets = [0, 0], sizes = [4, 1], strides = [1, 1]} : vector<8x1xf32> to vector<4x1xf32>
    %1226 = vector.extract_strided_slice %1160 {offsets = [4, 0], sizes = [1, 1], strides = [1, 1]} : vector<8x1xf32> to vector<1x1xf32>
    %1227 = vector.broadcast %1226 : vector<1x1xf32> to vector<4x1xf32>
    %1228 = arith.mulf %1225, %1227 : vector<4x1xf32>
    %1229 = arith.addf %1213, %1228 : vector<4x1xf32>
    %1230 = vector.extract_strided_slice %1142 {offsets = [0, 4, 0], sizes = [2, 1, 16], strides = [1, 1, 1]} : vector<2x8x16xf32> to vector<2x1x16xf32>
    %1231 = vector.extract_strided_slice %1158 {offsets = [4, 0], sizes = [1, 1], strides = [1, 1]} : vector<8x1xf32> to vector<1x1xf32>
    %1232 = vector.broadcast %1231 : vector<1x1xf32> to vector<4x1xf32>
    %1233 = arith.mulf %1225, %1232 : vector<4x1xf32>
    %1234 = vector.shape_cast %1233 : vector<4x1xf32> to vector<1x4x1xf32>
    %1235 = vector.broadcast %1230 : vector<2x1x16xf32> to vector<2x4x16xf32>
    %1236 = vector.broadcast %1234 : vector<1x4x1xf32> to vector<2x4x16xf32>
    %1237 = arith.mulf %1235, %1236 : vector<2x4x16xf32>
    %1238 = arith.addf %1222, %1237 : vector<2x4x16xf32>
    %c97 = arith.constant 97 : index
    %c0_257 = arith.constant 0 : index
    %c0_258 = arith.constant 0 : index
    %1239 = vector.load %arg1[%c97, %c0_257, %c0_258] : memref<120x8x1xf32, #tpu.memory_space<vmem>>, vector<1x8x1xf32>
    %1240 = vector.shape_cast %1239 : vector<1x8x1xf32> to vector<8x1xf32>
    %1241 = vector.extract_strided_slice %1240 {offsets = [0, 0], sizes = [4, 1], strides = [1, 1]} : vector<8x1xf32> to vector<4x1xf32>
    %1242 = vector.extract_strided_slice %1160 {offsets = [5, 0], sizes = [1, 1], strides = [1, 1]} : vector<8x1xf32> to vector<1x1xf32>
    %1243 = vector.broadcast %1242 : vector<1x1xf32> to vector<4x1xf32>
    %1244 = arith.mulf %1241, %1243 : vector<4x1xf32>
    %1245 = arith.addf %1229, %1244 : vector<4x1xf32>
    %1246 = vector.extract_strided_slice %1142 {offsets = [0, 5, 0], sizes = [2, 1, 16], strides = [1, 1, 1]} : vector<2x8x16xf32> to vector<2x1x16xf32>
    %1247 = vector.extract_strided_slice %1158 {offsets = [5, 0], sizes = [1, 1], strides = [1, 1]} : vector<8x1xf32> to vector<1x1xf32>
    %1248 = vector.broadcast %1247 : vector<1x1xf32> to vector<4x1xf32>
    %1249 = arith.mulf %1241, %1248 : vector<4x1xf32>
    %1250 = vector.shape_cast %1249 : vector<4x1xf32> to vector<1x4x1xf32>
    %1251 = vector.broadcast %1246 : vector<2x1x16xf32> to vector<2x4x16xf32>
    %1252 = vector.broadcast %1250 : vector<1x4x1xf32> to vector<2x4x16xf32>
    %1253 = arith.mulf %1251, %1252 : vector<2x4x16xf32>
    %1254 = arith.addf %1238, %1253 : vector<2x4x16xf32>
    %c98 = arith.constant 98 : index
    %c0_259 = arith.constant 0 : index
    %c0_260 = arith.constant 0 : index
    %1255 = vector.load %arg1[%c98, %c0_259, %c0_260] : memref<120x8x1xf32, #tpu.memory_space<vmem>>, vector<1x8x1xf32>
    %1256 = vector.shape_cast %1255 : vector<1x8x1xf32> to vector<8x1xf32>
    %1257 = vector.extract_strided_slice %1256 {offsets = [0, 0], sizes = [4, 1], strides = [1, 1]} : vector<8x1xf32> to vector<4x1xf32>
    %1258 = vector.extract_strided_slice %1160 {offsets = [6, 0], sizes = [1, 1], strides = [1, 1]} : vector<8x1xf32> to vector<1x1xf32>
    %1259 = vector.broadcast %1258 : vector<1x1xf32> to vector<4x1xf32>
    %1260 = arith.mulf %1257, %1259 : vector<4x1xf32>
    %1261 = arith.addf %1245, %1260 : vector<4x1xf32>
    %1262 = vector.extract_strided_slice %1142 {offsets = [0, 6, 0], sizes = [2, 1, 16], strides = [1, 1, 1]} : vector<2x8x16xf32> to vector<2x1x16xf32>
    %1263 = vector.extract_strided_slice %1158 {offsets = [6, 0], sizes = [1, 1], strides = [1, 1]} : vector<8x1xf32> to vector<1x1xf32>
    %1264 = vector.broadcast %1263 : vector<1x1xf32> to vector<4x1xf32>
    %1265 = arith.mulf %1257, %1264 : vector<4x1xf32>
    %1266 = vector.shape_cast %1265 : vector<4x1xf32> to vector<1x4x1xf32>
    %1267 = vector.broadcast %1262 : vector<2x1x16xf32> to vector<2x4x16xf32>
    %1268 = vector.broadcast %1266 : vector<1x4x1xf32> to vector<2x4x16xf32>
    %1269 = arith.mulf %1267, %1268 : vector<2x4x16xf32>
    %1270 = arith.addf %1254, %1269 : vector<2x4x16xf32>
    %c99 = arith.constant 99 : index
    %c0_261 = arith.constant 0 : index
    %c0_262 = arith.constant 0 : index
    %1271 = vector.load %arg1[%c99, %c0_261, %c0_262] : memref<120x8x1xf32, #tpu.memory_space<vmem>>, vector<1x8x1xf32>
    %1272 = vector.shape_cast %1271 : vector<1x8x1xf32> to vector<8x1xf32>
    %1273 = vector.extract_strided_slice %1272 {offsets = [0, 0], sizes = [4, 1], strides = [1, 1]} : vector<8x1xf32> to vector<4x1xf32>
    %1274 = vector.extract_strided_slice %1160 {offsets = [7, 0], sizes = [1, 1], strides = [1, 1]} : vector<8x1xf32> to vector<1x1xf32>
    %1275 = vector.broadcast %1274 : vector<1x1xf32> to vector<4x1xf32>
    %1276 = arith.mulf %1273, %1275 : vector<4x1xf32>
    %1277 = arith.addf %1261, %1276 : vector<4x1xf32>
    %1278 = vector.extract_strided_slice %1142 {offsets = [0, 7, 0], sizes = [2, 1, 16], strides = [1, 1, 1]} : vector<2x8x16xf32> to vector<2x1x16xf32>
    %1279 = vector.extract_strided_slice %1158 {offsets = [7, 0], sizes = [1, 1], strides = [1, 1]} : vector<8x1xf32> to vector<1x1xf32>
    %1280 = vector.broadcast %1279 : vector<1x1xf32> to vector<4x1xf32>
    %1281 = arith.mulf %1273, %1280 : vector<4x1xf32>
    %1282 = vector.shape_cast %1281 : vector<4x1xf32> to vector<1x4x1xf32>
    %1283 = vector.broadcast %1278 : vector<2x1x16xf32> to vector<2x4x16xf32>
    %1284 = vector.broadcast %1282 : vector<1x4x1xf32> to vector<2x4x16xf32>
    %1285 = arith.mulf %1283, %1284 : vector<2x4x16xf32>
    %1286 = arith.addf %1270, %1285 : vector<2x4x16xf32>
    %1287 = vector.shape_cast %1277 : vector<4x1xf32> to vector<1x4x1xf32>
    %1288 = vector.broadcast %1287 : vector<1x4x1xf32> to vector<2x4x16xf32>
    %1289 = arith.addf %1286, %1288 : vector<2x4x16xf32>
    %1290 = arith.addf %1041, %1289 : vector<2x4x16xf32>
    %c104 = arith.constant 104 : index
    %c0_263 = arith.constant 0 : index
    %c0_264 = arith.constant 0 : index
    %1291 = vector.load %arg1[%c104, %c0_263, %c0_264] : memref<120x8x1xf32, #tpu.memory_space<vmem>>, vector<1x8x1xf32>
    %1292 = vector.shape_cast %1291 : vector<1x8x1xf32> to vector<8x1xf32>
    %1293 = vector.extract_strided_slice %1290 {offsets = [0, 0, 0], sizes = [2, 1, 16], strides = [1, 1, 1]} : vector<2x4x16xf32> to vector<2x1x16xf32>
    %c100 = arith.constant 100 : index
    %c0_265 = arith.constant 0 : index
    %c0_266 = arith.constant 0 : index
    %1294 = vector.load %arg1[%c100, %c0_265, %c0_266] : memref<120x8x1xf32, #tpu.memory_space<vmem>>, vector<1x8x1xf32>
    %1295 = vector.shape_cast %1294 : vector<1x8x1xf32> to vector<8x1xf32>
    %1296 = vector.shape_cast %1295 : vector<8x1xf32> to vector<1x8x1xf32>
    %1297 = vector.broadcast %1293 : vector<2x1x16xf32> to vector<2x8x16xf32>
    %1298 = vector.broadcast %1296 : vector<1x8x1xf32> to vector<2x8x16xf32>
    %1299 = arith.mulf %1297, %1298 : vector<2x8x16xf32>
    %1300 = vector.shape_cast %1292 : vector<8x1xf32> to vector<1x8x1xf32>
    %1301 = vector.broadcast %1300 : vector<1x8x1xf32> to vector<2x8x16xf32>
    %1302 = arith.addf %1301, %1299 : vector<2x8x16xf32>
    %1303 = vector.extract_strided_slice %1290 {offsets = [0, 1, 0], sizes = [2, 1, 16], strides = [1, 1, 1]} : vector<2x4x16xf32> to vector<2x1x16xf32>
    %c101 = arith.constant 101 : index
    %c0_267 = arith.constant 0 : index
    %c0_268 = arith.constant 0 : index
    %1304 = vector.load %arg1[%c101, %c0_267, %c0_268] : memref<120x8x1xf32, #tpu.memory_space<vmem>>, vector<1x8x1xf32>
    %1305 = vector.shape_cast %1304 : vector<1x8x1xf32> to vector<8x1xf32>
    %1306 = vector.shape_cast %1305 : vector<8x1xf32> to vector<1x8x1xf32>
    %1307 = vector.broadcast %1303 : vector<2x1x16xf32> to vector<2x8x16xf32>
    %1308 = vector.broadcast %1306 : vector<1x8x1xf32> to vector<2x8x16xf32>
    %1309 = arith.mulf %1307, %1308 : vector<2x8x16xf32>
    %1310 = arith.addf %1302, %1309 : vector<2x8x16xf32>
    %1311 = vector.extract_strided_slice %1290 {offsets = [0, 2, 0], sizes = [2, 1, 16], strides = [1, 1, 1]} : vector<2x4x16xf32> to vector<2x1x16xf32>
    %c102 = arith.constant 102 : index
    %c0_269 = arith.constant 0 : index
    %c0_270 = arith.constant 0 : index
    %1312 = vector.load %arg1[%c102, %c0_269, %c0_270] : memref<120x8x1xf32, #tpu.memory_space<vmem>>, vector<1x8x1xf32>
    %1313 = vector.shape_cast %1312 : vector<1x8x1xf32> to vector<8x1xf32>
    %1314 = vector.shape_cast %1313 : vector<8x1xf32> to vector<1x8x1xf32>
    %1315 = vector.broadcast %1311 : vector<2x1x16xf32> to vector<2x8x16xf32>
    %1316 = vector.broadcast %1314 : vector<1x8x1xf32> to vector<2x8x16xf32>
    %1317 = arith.mulf %1315, %1316 : vector<2x8x16xf32>
    %1318 = arith.addf %1310, %1317 : vector<2x8x16xf32>
    %1319 = vector.extract_strided_slice %1290 {offsets = [0, 3, 0], sizes = [2, 1, 16], strides = [1, 1, 1]} : vector<2x4x16xf32> to vector<2x1x16xf32>
    %c103 = arith.constant 103 : index
    %c0_271 = arith.constant 0 : index
    %c0_272 = arith.constant 0 : index
    %1320 = vector.load %arg1[%c103, %c0_271, %c0_272] : memref<120x8x1xf32, #tpu.memory_space<vmem>>, vector<1x8x1xf32>
    %1321 = vector.shape_cast %1320 : vector<1x8x1xf32> to vector<8x1xf32>
    %1322 = vector.shape_cast %1321 : vector<8x1xf32> to vector<1x8x1xf32>
    %1323 = vector.broadcast %1319 : vector<2x1x16xf32> to vector<2x8x16xf32>
    %1324 = vector.broadcast %1322 : vector<1x8x1xf32> to vector<2x8x16xf32>
    %1325 = arith.mulf %1323, %1324 : vector<2x8x16xf32>
    %1326 = arith.addf %1318, %1325 : vector<2x8x16xf32>
    %c5_273 = arith.constant 5 : index
    %1327 = memref.load %arg2[%c5_273] : memref<12xf32, #tpu.memory_space<smem>>
    %cst_274 = arith.constant 0.000000e+00 : f32
    %1328 = vector.broadcast %cst_274 : f32 to vector<2x8x16xf32>
    %1329 = arith.cmpf ogt, %1326, %1328 : vector<2x8x16xf32>
    %1330 = vector.broadcast %1327 : f32 to vector<2x8x16xf32>
    %1331 = arith.mulf %1330, %1326 : vector<2x8x16xf32>
    %1332 = arith.select %1329, %1326, %1331 : vector<2x8x16xi1>, vector<2x8x16xf32>
    %cst_275 = arith.constant dense<0.000000e+00> : vector<2x8xf32>
    %1333 = vector.multi_reduction <add>, %1332, %cst_275 [2] : vector<2x8x16xf32> to vector<2x8xf32>
    %1334 = vector.shape_cast %1333 : vector<2x8xf32> to vector<2x8x1xf32>
    %1335 = vector.extract_strided_slice %1334 {offsets = [0, 0, 0], sizes = [1, 8, 1], strides = [1, 1, 1]} : vector<2x8x1xf32> to vector<1x8x1xf32>
    %1336 = vector.shape_cast %1335 : vector<1x8x1xf32> to vector<8x1xf32>
    %1337 = vector.extract_strided_slice %1334 {offsets = [1, 0, 0], sizes = [1, 8, 1], strides = [1, 1, 1]} : vector<2x8x1xf32> to vector<1x8x1xf32>
    %1338 = vector.shape_cast %1337 : vector<1x8x1xf32> to vector<8x1xf32>
    %1339 = arith.addf %1336, %1338 : vector<8x1xf32>
    %cst_276 = arith.constant 3.125000e-02 : f32
    %1340 = vector.broadcast %cst_276 : f32 to vector<8x1xf32>
    %1341 = arith.mulf %1339, %1340 : vector<8x1xf32>
    %1342 = vector.shape_cast %1341 : vector<8x1xf32> to vector<1x8x1xf32>
    %1343 = vector.broadcast %1342 : vector<1x8x1xf32> to vector<2x8x16xf32>
    %1344 = arith.subf %1332, %1343 : vector<2x8x16xf32>
    %1345 = arith.mulf %1344, %1344 : vector<2x8x16xf32>
    %cst_277 = arith.constant dense<0.000000e+00> : vector<2x8xf32>
    %1346 = vector.multi_reduction <add>, %1345, %cst_277 [2] : vector<2x8x16xf32> to vector<2x8xf32>
    %1347 = vector.shape_cast %1346 : vector<2x8xf32> to vector<2x8x1xf32>
    %1348 = vector.extract_strided_slice %1347 {offsets = [0, 0, 0], sizes = [1, 8, 1], strides = [1, 1, 1]} : vector<2x8x1xf32> to vector<1x8x1xf32>
    %1349 = vector.shape_cast %1348 : vector<1x8x1xf32> to vector<8x1xf32>
    %1350 = vector.extract_strided_slice %1347 {offsets = [1, 0, 0], sizes = [1, 8, 1], strides = [1, 1, 1]} : vector<2x8x1xf32> to vector<1x8x1xf32>
    %1351 = vector.shape_cast %1350 : vector<1x8x1xf32> to vector<8x1xf32>
    %1352 = arith.addf %1349, %1351 : vector<8x1xf32>
    %cst_278 = arith.constant 3.125000e-02 : f32
    %1353 = vector.broadcast %cst_278 : f32 to vector<8x1xf32>
    %1354 = arith.mulf %1352, %1353 : vector<8x1xf32>
    %cst_279 = arith.constant 9.99999974E-6 : f32
    %1355 = vector.broadcast %cst_279 : f32 to vector<8x1xf32>
    %1356 = arith.addf %1354, %1355 : vector<8x1xf32>
    %1357 = math.rsqrt %1356 : vector<8x1xf32>
    %c105 = arith.constant 105 : index
    %c0_280 = arith.constant 0 : index
    %c0_281 = arith.constant 0 : index
    %1358 = vector.load %arg1[%c105, %c0_280, %c0_281] : memref<120x8x1xf32, #tpu.memory_space<vmem>>, vector<1x8x1xf32>
    %1359 = vector.shape_cast %1358 : vector<1x8x1xf32> to vector<8x1xf32>
    %1360 = arith.mulf %1357, %1359 : vector<8x1xf32>
    %1361 = vector.shape_cast %1360 : vector<8x1xf32> to vector<1x8x1xf32>
    %1362 = vector.broadcast %1361 : vector<1x8x1xf32> to vector<2x8x16xf32>
    %1363 = arith.mulf %1344, %1362 : vector<2x8x16xf32>
    %c106 = arith.constant 106 : index
    %c0_282 = arith.constant 0 : index
    %c0_283 = arith.constant 0 : index
    %1364 = vector.load %arg1[%c106, %c0_282, %c0_283] : memref<120x8x1xf32, #tpu.memory_space<vmem>>, vector<1x8x1xf32>
    %1365 = vector.shape_cast %1364 : vector<1x8x1xf32> to vector<8x1xf32>
    %1366 = vector.shape_cast %1365 : vector<8x1xf32> to vector<1x8x1xf32>
    %1367 = vector.broadcast %1366 : vector<1x8x1xf32> to vector<2x8x16xf32>
    %1368 = arith.addf %1363, %1367 : vector<2x8x16xf32>
    %c109 = arith.constant 109 : index
    %c0_284 = arith.constant 0 : index
    %c0_285 = arith.constant 0 : index
    %1369 = vector.load %arg1[%c109, %c0_284, %c0_285] : memref<120x8x1xf32, #tpu.memory_space<vmem>>, vector<1x8x1xf32>
    %1370 = vector.shape_cast %1369 : vector<1x8x1xf32> to vector<8x1xf32>
    %1371 = vector.shape_cast %1370 : vector<8x1xf32> to vector<1x8x1xf32>
    %1372 = vector.broadcast %1371 : vector<1x8x1xf32> to vector<2x8x16xf32>
    %1373 = arith.mulf %1368, %1372 : vector<2x8x16xf32>
    %c11_286 = arith.constant 11 : index
    %1374 = memref.load %arg2[%c11_286] : memref<12xf32, #tpu.memory_space<smem>>
    %cst_287 = arith.constant 0.000000e+00 : f32
    %1375 = vector.broadcast %cst_287 : f32 to vector<2x8x16xf32>
    %1376 = arith.cmpf ogt, %1373, %1375 : vector<2x8x16xf32>
    %1377 = vector.broadcast %1374 : f32 to vector<2x8x16xf32>
    %1378 = arith.mulf %1377, %1373 : vector<2x8x16xf32>
    %1379 = arith.select %1376, %1373, %1378 : vector<2x8x16xi1>, vector<2x8x16xf32>
    %cst_288 = arith.constant dense<0.000000e+00> : vector<2x8xf32>
    %1380 = vector.multi_reduction <add>, %1379, %cst_288 [2] : vector<2x8x16xf32> to vector<2x8xf32>
    %1381 = vector.shape_cast %1380 : vector<2x8xf32> to vector<2x8x1xf32>
    %1382 = vector.extract_strided_slice %1381 {offsets = [0, 0, 0], sizes = [1, 8, 1], strides = [1, 1, 1]} : vector<2x8x1xf32> to vector<1x8x1xf32>
    %1383 = vector.shape_cast %1382 : vector<1x8x1xf32> to vector<8x1xf32>
    %1384 = vector.extract_strided_slice %1381 {offsets = [1, 0, 0], sizes = [1, 8, 1], strides = [1, 1, 1]} : vector<2x8x1xf32> to vector<1x8x1xf32>
    %1385 = vector.shape_cast %1384 : vector<1x8x1xf32> to vector<8x1xf32>
    %1386 = arith.addf %1383, %1385 : vector<8x1xf32>
    %cst_289 = arith.constant 3.125000e-02 : f32
    %1387 = vector.broadcast %cst_289 : f32 to vector<8x1xf32>
    %1388 = arith.mulf %1386, %1387 : vector<8x1xf32>
    %1389 = vector.shape_cast %1388 : vector<8x1xf32> to vector<1x8x1xf32>
    %1390 = vector.broadcast %1389 : vector<1x8x1xf32> to vector<2x8x16xf32>
    %1391 = arith.subf %1379, %1390 : vector<2x8x16xf32>
    %1392 = arith.mulf %1391, %1391 : vector<2x8x16xf32>
    %cst_290 = arith.constant dense<0.000000e+00> : vector<2x8xf32>
    %1393 = vector.multi_reduction <add>, %1392, %cst_290 [2] : vector<2x8x16xf32> to vector<2x8xf32>
    %1394 = vector.shape_cast %1393 : vector<2x8xf32> to vector<2x8x1xf32>
    %1395 = vector.extract_strided_slice %1394 {offsets = [0, 0, 0], sizes = [1, 8, 1], strides = [1, 1, 1]} : vector<2x8x1xf32> to vector<1x8x1xf32>
    %1396 = vector.shape_cast %1395 : vector<1x8x1xf32> to vector<8x1xf32>
    %1397 = vector.extract_strided_slice %1394 {offsets = [1, 0, 0], sizes = [1, 8, 1], strides = [1, 1, 1]} : vector<2x8x1xf32> to vector<1x8x1xf32>
    %1398 = vector.shape_cast %1397 : vector<1x8x1xf32> to vector<8x1xf32>
    %1399 = arith.addf %1396, %1398 : vector<8x1xf32>
    %cst_291 = arith.constant 3.125000e-02 : f32
    %1400 = vector.broadcast %cst_291 : f32 to vector<8x1xf32>
    %1401 = arith.mulf %1399, %1400 : vector<8x1xf32>
    %cst_292 = arith.constant 9.99999974E-6 : f32
    %1402 = vector.broadcast %cst_292 : f32 to vector<8x1xf32>
    %1403 = arith.addf %1401, %1402 : vector<8x1xf32>
    %1404 = math.rsqrt %1403 : vector<8x1xf32>
    %c110 = arith.constant 110 : index
    %c0_293 = arith.constant 0 : index
    %c0_294 = arith.constant 0 : index
    %1405 = vector.load %arg1[%c110, %c0_293, %c0_294] : memref<120x8x1xf32, #tpu.memory_space<vmem>>, vector<1x8x1xf32>
    %1406 = vector.shape_cast %1405 : vector<1x8x1xf32> to vector<8x1xf32>
    %1407 = arith.mulf %1404, %1406 : vector<8x1xf32>
    %c111 = arith.constant 111 : index
    %c0_295 = arith.constant 0 : index
    %c0_296 = arith.constant 0 : index
    %1408 = vector.load %arg1[%c111, %c0_295, %c0_296] : memref<120x8x1xf32, #tpu.memory_space<vmem>>, vector<1x8x1xf32>
    %1409 = vector.shape_cast %1408 : vector<1x8x1xf32> to vector<8x1xf32>
    %c112 = arith.constant 112 : index
    %c0_297 = arith.constant 0 : index
    %c0_298 = arith.constant 0 : index
    %1410 = vector.load %arg1[%c112, %c0_297, %c0_298] : memref<120x8x1xf32, #tpu.memory_space<vmem>>, vector<1x8x1xf32>
    %1411 = vector.shape_cast %1410 : vector<1x8x1xf32> to vector<8x1xf32>
    %1412 = vector.extract_strided_slice %1411 {offsets = [0, 0], sizes = [4, 1], strides = [1, 1]} : vector<8x1xf32> to vector<4x1xf32>
    %1413 = vector.extract_strided_slice %1409 {offsets = [0, 0], sizes = [1, 1], strides = [1, 1]} : vector<8x1xf32> to vector<1x1xf32>
    %1414 = vector.broadcast %1413 : vector<1x1xf32> to vector<4x1xf32>
    %1415 = arith.mulf %1412, %1414 : vector<4x1xf32>
    %1416 = vector.extract_strided_slice %1391 {offsets = [0, 0, 0], sizes = [2, 1, 16], strides = [1, 1, 1]} : vector<2x8x16xf32> to vector<2x1x16xf32>
    %1417 = vector.extract_strided_slice %1407 {offsets = [0, 0], sizes = [1, 1], strides = [1, 1]} : vector<8x1xf32> to vector<1x1xf32>
    %1418 = vector.broadcast %1417 : vector<1x1xf32> to vector<4x1xf32>
    %1419 = arith.mulf %1412, %1418 : vector<4x1xf32>
    %1420 = vector.shape_cast %1419 : vector<4x1xf32> to vector<1x4x1xf32>
    %1421 = vector.broadcast %1416 : vector<2x1x16xf32> to vector<2x4x16xf32>
    %1422 = vector.broadcast %1420 : vector<1x4x1xf32> to vector<2x4x16xf32>
    %1423 = arith.mulf %1421, %1422 : vector<2x4x16xf32>
    %c113 = arith.constant 113 : index
    %c0_299 = arith.constant 0 : index
    %c0_300 = arith.constant 0 : index
    %1424 = vector.load %arg1[%c113, %c0_299, %c0_300] : memref<120x8x1xf32, #tpu.memory_space<vmem>>, vector<1x8x1xf32>
    %1425 = vector.shape_cast %1424 : vector<1x8x1xf32> to vector<8x1xf32>
    %1426 = vector.extract_strided_slice %1425 {offsets = [0, 0], sizes = [4, 1], strides = [1, 1]} : vector<8x1xf32> to vector<4x1xf32>
    %1427 = vector.extract_strided_slice %1409 {offsets = [1, 0], sizes = [1, 1], strides = [1, 1]} : vector<8x1xf32> to vector<1x1xf32>
    %1428 = vector.broadcast %1427 : vector<1x1xf32> to vector<4x1xf32>
    %1429 = arith.mulf %1426, %1428 : vector<4x1xf32>
    %1430 = arith.addf %1415, %1429 : vector<4x1xf32>
    %1431 = vector.extract_strided_slice %1391 {offsets = [0, 1, 0], sizes = [2, 1, 16], strides = [1, 1, 1]} : vector<2x8x16xf32> to vector<2x1x16xf32>
    %1432 = vector.extract_strided_slice %1407 {offsets = [1, 0], sizes = [1, 1], strides = [1, 1]} : vector<8x1xf32> to vector<1x1xf32>
    %1433 = vector.broadcast %1432 : vector<1x1xf32> to vector<4x1xf32>
    %1434 = arith.mulf %1426, %1433 : vector<4x1xf32>
    %1435 = vector.shape_cast %1434 : vector<4x1xf32> to vector<1x4x1xf32>
    %1436 = vector.broadcast %1431 : vector<2x1x16xf32> to vector<2x4x16xf32>
    %1437 = vector.broadcast %1435 : vector<1x4x1xf32> to vector<2x4x16xf32>
    %1438 = arith.mulf %1436, %1437 : vector<2x4x16xf32>
    %1439 = arith.addf %1423, %1438 : vector<2x4x16xf32>
    %c114 = arith.constant 114 : index
    %c0_301 = arith.constant 0 : index
    %c0_302 = arith.constant 0 : index
    %1440 = vector.load %arg1[%c114, %c0_301, %c0_302] : memref<120x8x1xf32, #tpu.memory_space<vmem>>, vector<1x8x1xf32>
    %1441 = vector.shape_cast %1440 : vector<1x8x1xf32> to vector<8x1xf32>
    %1442 = vector.extract_strided_slice %1441 {offsets = [0, 0], sizes = [4, 1], strides = [1, 1]} : vector<8x1xf32> to vector<4x1xf32>
    %1443 = vector.extract_strided_slice %1409 {offsets = [2, 0], sizes = [1, 1], strides = [1, 1]} : vector<8x1xf32> to vector<1x1xf32>
    %1444 = vector.broadcast %1443 : vector<1x1xf32> to vector<4x1xf32>
    %1445 = arith.mulf %1442, %1444 : vector<4x1xf32>
    %1446 = arith.addf %1430, %1445 : vector<4x1xf32>
    %1447 = vector.extract_strided_slice %1391 {offsets = [0, 2, 0], sizes = [2, 1, 16], strides = [1, 1, 1]} : vector<2x8x16xf32> to vector<2x1x16xf32>
    %1448 = vector.extract_strided_slice %1407 {offsets = [2, 0], sizes = [1, 1], strides = [1, 1]} : vector<8x1xf32> to vector<1x1xf32>
    %1449 = vector.broadcast %1448 : vector<1x1xf32> to vector<4x1xf32>
    %1450 = arith.mulf %1442, %1449 : vector<4x1xf32>
    %1451 = vector.shape_cast %1450 : vector<4x1xf32> to vector<1x4x1xf32>
    %1452 = vector.broadcast %1447 : vector<2x1x16xf32> to vector<2x4x16xf32>
    %1453 = vector.broadcast %1451 : vector<1x4x1xf32> to vector<2x4x16xf32>
    %1454 = arith.mulf %1452, %1453 : vector<2x4x16xf32>
    %1455 = arith.addf %1439, %1454 : vector<2x4x16xf32>
    %c115 = arith.constant 115 : index
    %c0_303 = arith.constant 0 : index
    %c0_304 = arith.constant 0 : index
    %1456 = vector.load %arg1[%c115, %c0_303, %c0_304] : memref<120x8x1xf32, #tpu.memory_space<vmem>>, vector<1x8x1xf32>
    %1457 = vector.shape_cast %1456 : vector<1x8x1xf32> to vector<8x1xf32>
    %1458 = vector.extract_strided_slice %1457 {offsets = [0, 0], sizes = [4, 1], strides = [1, 1]} : vector<8x1xf32> to vector<4x1xf32>
    %1459 = vector.extract_strided_slice %1409 {offsets = [3, 0], sizes = [1, 1], strides = [1, 1]} : vector<8x1xf32> to vector<1x1xf32>
    %1460 = vector.broadcast %1459 : vector<1x1xf32> to vector<4x1xf32>
    %1461 = arith.mulf %1458, %1460 : vector<4x1xf32>
    %1462 = arith.addf %1446, %1461 : vector<4x1xf32>
    %1463 = vector.extract_strided_slice %1391 {offsets = [0, 3, 0], sizes = [2, 1, 16], strides = [1, 1, 1]} : vector<2x8x16xf32> to vector<2x1x16xf32>
    %1464 = vector.extract_strided_slice %1407 {offsets = [3, 0], sizes = [1, 1], strides = [1, 1]} : vector<8x1xf32> to vector<1x1xf32>
    %1465 = vector.broadcast %1464 : vector<1x1xf32> to vector<4x1xf32>
    %1466 = arith.mulf %1458, %1465 : vector<4x1xf32>
    %1467 = vector.shape_cast %1466 : vector<4x1xf32> to vector<1x4x1xf32>
    %1468 = vector.broadcast %1463 : vector<2x1x16xf32> to vector<2x4x16xf32>
    %1469 = vector.broadcast %1467 : vector<1x4x1xf32> to vector<2x4x16xf32>
    %1470 = arith.mulf %1468, %1469 : vector<2x4x16xf32>
    %1471 = arith.addf %1455, %1470 : vector<2x4x16xf32>
    %c116 = arith.constant 116 : index
    %c0_305 = arith.constant 0 : index
    %c0_306 = arith.constant 0 : index
    %1472 = vector.load %arg1[%c116, %c0_305, %c0_306] : memref<120x8x1xf32, #tpu.memory_space<vmem>>, vector<1x8x1xf32>
    %1473 = vector.shape_cast %1472 : vector<1x8x1xf32> to vector<8x1xf32>
    %1474 = vector.extract_strided_slice %1473 {offsets = [0, 0], sizes = [4, 1], strides = [1, 1]} : vector<8x1xf32> to vector<4x1xf32>
    %1475 = vector.extract_strided_slice %1409 {offsets = [4, 0], sizes = [1, 1], strides = [1, 1]} : vector<8x1xf32> to vector<1x1xf32>
    %1476 = vector.broadcast %1475 : vector<1x1xf32> to vector<4x1xf32>
    %1477 = arith.mulf %1474, %1476 : vector<4x1xf32>
    %1478 = arith.addf %1462, %1477 : vector<4x1xf32>
    %1479 = vector.extract_strided_slice %1391 {offsets = [0, 4, 0], sizes = [2, 1, 16], strides = [1, 1, 1]} : vector<2x8x16xf32> to vector<2x1x16xf32>
    %1480 = vector.extract_strided_slice %1407 {offsets = [4, 0], sizes = [1, 1], strides = [1, 1]} : vector<8x1xf32> to vector<1x1xf32>
    %1481 = vector.broadcast %1480 : vector<1x1xf32> to vector<4x1xf32>
    %1482 = arith.mulf %1474, %1481 : vector<4x1xf32>
    %1483 = vector.shape_cast %1482 : vector<4x1xf32> to vector<1x4x1xf32>
    %1484 = vector.broadcast %1479 : vector<2x1x16xf32> to vector<2x4x16xf32>
    %1485 = vector.broadcast %1483 : vector<1x4x1xf32> to vector<2x4x16xf32>
    %1486 = arith.mulf %1484, %1485 : vector<2x4x16xf32>
    %1487 = arith.addf %1471, %1486 : vector<2x4x16xf32>
    %c117 = arith.constant 117 : index
    %c0_307 = arith.constant 0 : index
    %c0_308 = arith.constant 0 : index
    %1488 = vector.load %arg1[%c117, %c0_307, %c0_308] : memref<120x8x1xf32, #tpu.memory_space<vmem>>, vector<1x8x1xf32>
    %1489 = vector.shape_cast %1488 : vector<1x8x1xf32> to vector<8x1xf32>
    %1490 = vector.extract_strided_slice %1489 {offsets = [0, 0], sizes = [4, 1], strides = [1, 1]} : vector<8x1xf32> to vector<4x1xf32>
    %1491 = vector.extract_strided_slice %1409 {offsets = [5, 0], sizes = [1, 1], strides = [1, 1]} : vector<8x1xf32> to vector<1x1xf32>
    %1492 = vector.broadcast %1491 : vector<1x1xf32> to vector<4x1xf32>
    %1493 = arith.mulf %1490, %1492 : vector<4x1xf32>
    %1494 = arith.addf %1478, %1493 : vector<4x1xf32>
    %1495 = vector.extract_strided_slice %1391 {offsets = [0, 5, 0], sizes = [2, 1, 16], strides = [1, 1, 1]} : vector<2x8x16xf32> to vector<2x1x16xf32>
    %1496 = vector.extract_strided_slice %1407 {offsets = [5, 0], sizes = [1, 1], strides = [1, 1]} : vector<8x1xf32> to vector<1x1xf32>
    %1497 = vector.broadcast %1496 : vector<1x1xf32> to vector<4x1xf32>
    %1498 = arith.mulf %1490, %1497 : vector<4x1xf32>
    %1499 = vector.shape_cast %1498 : vector<4x1xf32> to vector<1x4x1xf32>
    %1500 = vector.broadcast %1495 : vector<2x1x16xf32> to vector<2x4x16xf32>
    %1501 = vector.broadcast %1499 : vector<1x4x1xf32> to vector<2x4x16xf32>
    %1502 = arith.mulf %1500, %1501 : vector<2x4x16xf32>
    %1503 = arith.addf %1487, %1502 : vector<2x4x16xf32>
    %c118 = arith.constant 118 : index
    %c0_309 = arith.constant 0 : index
    %c0_310 = arith.constant 0 : index
    %1504 = vector.load %arg1[%c118, %c0_309, %c0_310] : memref<120x8x1xf32, #tpu.memory_space<vmem>>, vector<1x8x1xf32>
    %1505 = vector.shape_cast %1504 : vector<1x8x1xf32> to vector<8x1xf32>
    %1506 = vector.extract_strided_slice %1505 {offsets = [0, 0], sizes = [4, 1], strides = [1, 1]} : vector<8x1xf32> to vector<4x1xf32>
    %1507 = vector.extract_strided_slice %1409 {offsets = [6, 0], sizes = [1, 1], strides = [1, 1]} : vector<8x1xf32> to vector<1x1xf32>
    %1508 = vector.broadcast %1507 : vector<1x1xf32> to vector<4x1xf32>
    %1509 = arith.mulf %1506, %1508 : vector<4x1xf32>
    %1510 = arith.addf %1494, %1509 : vector<4x1xf32>
    %1511 = vector.extract_strided_slice %1391 {offsets = [0, 6, 0], sizes = [2, 1, 16], strides = [1, 1, 1]} : vector<2x8x16xf32> to vector<2x1x16xf32>
    %1512 = vector.extract_strided_slice %1407 {offsets = [6, 0], sizes = [1, 1], strides = [1, 1]} : vector<8x1xf32> to vector<1x1xf32>
    %1513 = vector.broadcast %1512 : vector<1x1xf32> to vector<4x1xf32>
    %1514 = arith.mulf %1506, %1513 : vector<4x1xf32>
    %1515 = vector.shape_cast %1514 : vector<4x1xf32> to vector<1x4x1xf32>
    %1516 = vector.broadcast %1511 : vector<2x1x16xf32> to vector<2x4x16xf32>
    %1517 = vector.broadcast %1515 : vector<1x4x1xf32> to vector<2x4x16xf32>
    %1518 = arith.mulf %1516, %1517 : vector<2x4x16xf32>
    %1519 = arith.addf %1503, %1518 : vector<2x4x16xf32>
    %c119 = arith.constant 119 : index
    %c0_311 = arith.constant 0 : index
    %c0_312 = arith.constant 0 : index
    %1520 = vector.load %arg1[%c119, %c0_311, %c0_312] : memref<120x8x1xf32, #tpu.memory_space<vmem>>, vector<1x8x1xf32>
    %1521 = vector.shape_cast %1520 : vector<1x8x1xf32> to vector<8x1xf32>
    %1522 = vector.extract_strided_slice %1521 {offsets = [0, 0], sizes = [4, 1], strides = [1, 1]} : vector<8x1xf32> to vector<4x1xf32>
    %1523 = vector.extract_strided_slice %1409 {offsets = [7, 0], sizes = [1, 1], strides = [1, 1]} : vector<8x1xf32> to vector<1x1xf32>
    %1524 = vector.broadcast %1523 : vector<1x1xf32> to vector<4x1xf32>
    %1525 = arith.mulf %1522, %1524 : vector<4x1xf32>
    %1526 = arith.addf %1510, %1525 : vector<4x1xf32>
    %1527 = vector.extract_strided_slice %1391 {offsets = [0, 7, 0], sizes = [2, 1, 16], strides = [1, 1, 1]} : vector<2x8x16xf32> to vector<2x1x16xf32>
    %1528 = vector.extract_strided_slice %1407 {offsets = [7, 0], sizes = [1, 1], strides = [1, 1]} : vector<8x1xf32> to vector<1x1xf32>
    %1529 = vector.broadcast %1528 : vector<1x1xf32> to vector<4x1xf32>
    %1530 = arith.mulf %1522, %1529 : vector<4x1xf32>
    %1531 = vector.shape_cast %1530 : vector<4x1xf32> to vector<1x4x1xf32>
    %1532 = vector.broadcast %1527 : vector<2x1x16xf32> to vector<2x4x16xf32>
    %1533 = vector.broadcast %1531 : vector<1x4x1xf32> to vector<2x4x16xf32>
    %1534 = arith.mulf %1532, %1533 : vector<2x4x16xf32>
    %1535 = arith.addf %1519, %1534 : vector<2x4x16xf32>
    %1536 = vector.shape_cast %1526 : vector<4x1xf32> to vector<1x4x1xf32>
    %1537 = vector.broadcast %1536 : vector<1x4x1xf32> to vector<2x4x16xf32>
    %1538 = arith.addf %1535, %1537 : vector<2x4x16xf32>
    %1539 = arith.addf %1290, %1538 : vector<2x4x16xf32>
    %c0_313 = arith.constant 0 : index
    %c0_314 = arith.constant 0 : index
    %c0_315 = arith.constant 0 : index
    %1540 = vector.load %arg3[%c0_313, %c0_314, %c0_315] : memref<2x4x16xf32, #tpu.memory_space<vmem>>, vector<2x4x16xf32>
    tpu.vector_store %arg3[%c0_313, %c0_314, %c0_315], %1539 {strides = array<i32>} : memref<2x4x16xf32, #tpu.memory_space<vmem>>, vector<2x4x16xf32>,
    return
  }
}

</mosaic_0001>

<llo_original>
// kernel: res_temporal_pallas.1
$region0: #{res_temporal_pallas.1}
  #allocation0 [shape = 'u32[]', space=smem, size = 0x4, offset = 0x4, fixed_abs, tag = 'smem constant byte address 0x4 - core index']
  #allocation1 [shape = 'u32[144,128]{1,0:T(1,128)}', space=vmem, size = 0x12000, scoped, tag = 'internal scratch']
  %s0 = inlined_call_operand.vmem [shape: f32[2,4,16], index: 0, kind: input, shape index: {}]
  %s1 = inlined_call_operand.vmem [shape: f32[120,8,1], index: 1, kind: input, shape index: {}]
  %s2 = inlined_call_operand.vmem [shape: f32[12], index: 2, kind: input, shape index: {}]
  %s3 = inlined_call_operand.hbm [shape: f32[2,4,16], index: 3, kind: output, shape index: {}]
  %s4 = sld [smem:[#allocation0]]
  $region26: #{res_temporal_pallas.1} parent=0
    _
  %s6 = ssub.s32 1, %s4
  %s7 = scalar_select 0, %s6, %s4
  $region1: #{res_temporal_pallas.1} parent=0
    #allocation2 [shape = 'u8[512]{0}', space=smem, size = 0x200, scoped, tag = 'input window, operand 2, single buffered']
    #allocation3 [shape = 's32[1]{0}', space=sflag, size = 0x4, scoped, tag = 'scoped memory for res_temporal_pallas.1']
    #allocation4 [shape = 's32[1]{0}', space=sflag, size = 0x4, scoped, tag = 'scoped memory for res_temporal_pallas.1']
    #allocation5 [shape = 'u8[4096]{0}', space=vmem, size = 0x1000, scoped, tag = 'output window, operand 0, single buffered']
    %8 = vsyncpa [#allocation4], 0
    %9 = vsyncpa [#allocation3], 0
    // Predicated region
    $region2: #{res_temporal_pallas.1} parent=1 // pred_check
      _
    $region3: #{res_temporal_pallas.1} parent=1 // pred_check_branch
      %11 = sbr.rel (0) target = $region5
    $region4: #{res_temporal_pallas.1} parent=1 // pred_region
      _
    $region5: #{res_temporal_pallas.1} parent=1 // pred_fallthru
      _
    // Predicated region
    $region6: #{res_temporal_pallas.1} parent=1 // pred_check
      _
    $region7: #{res_temporal_pallas.1} parent=1 // pred_check_branch
      %13 = sbr.rel (0) target = $region9
    $region8: #{res_temporal_pallas.1} parent=1 // pred_region
      _
    $region9: #{res_temporal_pallas.1} parent=1 // pred_fallthru
      _
    // Predicated region
    $region10: #{res_temporal_pallas.1} parent=1 // pred_check
      _
    $region11: #{res_temporal_pallas.1} parent=1 // pred_check_branch
      %15 = sbr.rel (0) target = $region13
    $region12: #{res_temporal_pallas.1} parent=1 // pred_region
      %s17 = ssub.s32 16, 16
      %18 = vsyncadd [#allocation4], %s17
      %s20 = sshll.u32 %s2, 4
      %s21 = int_to_ptr.vmem [resolvable:$true] %s20
      %23 = dma.vmem_to_smem %s21, 16, [#allocation2], [#allocation4]
    $region13: #{res_temporal_pallas.1} parent=1 // pred_fallthru
      _
    // Predicated region
    $region14: #{res_temporal_pallas.1} parent=1 // pred_check
      _
    $region15: #{res_temporal_pallas.1} parent=1 // pred_check_branch
      %25 = sbr.rel (0) target = $region17
    $region16: #{res_temporal_pallas.1} parent=1 // pred_region
      %26 = dma.done [#allocation4], 16
    $region17: #{res_temporal_pallas.1} parent=1 // pred_fallthru
      _
    %27 = sfence
    %v28 = vld [vmem:[%s0] sm:$0xf]
    %v29 = vld [vmem:[%s0 + $0x4] sm:$0xf]
    %s30 = scalar_lea.vmem %s1, 32
    %v31 = vld [vmem:[%s30] sm:$0xff]
    %v32 = vld [vmem:[%s1] sm:$0xff]
    %v33 = vlaneseq
    %v34 = vshrl.u32 %v33, 7
    %v35 = vsub.s32 0, %v34
    %v36 = vrot.slane %v28, %v35
    %v37 = vlaneseq
    %v38 = vshrl.u32 %v37, 7
    %v39 = vsub.s32 0, %v38
    %v40 = vrot.slane %v29, %v39
    %42 = vset.pattern.permute.xlu0 0
    %43 = vperm.xlu0 %42, %v32
    %v44 = vpop.permute.xlu0 %43
    %v46 = vmul.f32 %v36, %v44
    %v47 = vmul.f32 %v40, %v44
    %49 = vset.pattern.permute.xlu0 0
    %50 = vperm.xlu0 %49, %v31
    %v51 = vpop.permute.xlu0 %50
    %v53 = vadd.f32 %v51, %v46
    %v54 = vadd.f32 %v51, %v47
    %s55 = scalar_lea.vmem %s1, 8
    %v56 = vld [vmem:[%s55] sm:$0xff]
    %v57 = vlaneseq
    %v58 = vshrl.u32 %v57, 7
    %v59 = vsub.s32 1, %v58
    %v60 = vrot.slane %v28, %v59
    %v61 = vlaneseq
    %v62 = vshrl.u32 %v61, 7
    %v63 = vsub.s32 1, %v62
    %v64 = vrot.slane %v29, %v63
    %66 = vset.pattern.permute.xlu0 0
    %67 = vperm.xlu0 %66, %v56
    %v68 = vpop.permute.xlu0 %67
    %v70 = vmul.f32 %v60, %v68
    %v71 = vmul.f32 %v64, %v68
    %v72 = vadd.f32 %v53, %v70
    %v73 = vadd.f32 %v54, %v71
    %s74 = scalar_lea.vmem %s1, 16
    %v75 = vld [vmem:[%s74] sm:$0xff]
    %v76 = vlaneseq
    %v77 = vshrl.u32 %v76, 7
    %v78 = vsub.s32 2, %v77
    %v79 = vrot.slane %v28, %v78
    %v80 = vlaneseq
    %v81 = vshrl.u32 %v80, 7
    %v82 = vsub.s32 2, %v81
    %v83 = vrot.slane %v29, %v82
    %85 = vset.pattern.permute.xlu0 0
    %86 = vperm.xlu0 %85, %v75
    %v87 = vpop.permute.xlu0 %86
    %v89 = vmul.f32 %v79, %v87
    %v90 = vmul.f32 %v83, %v87
    %v91 = vadd.f32 %v72, %v89
    %v92 = vadd.f32 %v73, %v90
    %s93 = scalar_lea.vmem %s1, 24
    %v94 = vld [vmem:[%s93] sm:$0xff]
    %v95 = vlaneseq
    %v96 = vshrl.u32 %v95, 7
    %v97 = vsub.s32 3, %v96
    %v98 = vrot.slane %v28, %v97
    %v99 = vlaneseq
    %v100 = vshrl.u32 %v99, 7
    %v101 = vsub.s32 3, %v100
    %v102 = vrot.slane %v29, %v101
    %104 = vset.pattern.permute.xlu0 0
    %105 = vperm.xlu0 %104, %v94
    %v106 = vpop.permute.xlu0 %105
    %v108 = vmul.f32 %v98, %v106
    %v109 = vmul.f32 %v102, %v106
    %v110 = vadd.f32 %v91, %v108
    %v111 = vadd.f32 %v92, %v109
    %s112 = sld [smem:[#allocation2]]
    %vm113 = vcmp.gt.f32.partialorder %v110, 0.0
    %vm114 = vcmp.gt.f32.partialorder %v111, 0.0
    %v115 = vstv %s112
    %v116 = vmul.f32 %v115, %v110
    %v117 = vmul.f32 %v115, %v111
    %v118 = vsel %vm113, %v110, %v116
    %v119 = vsel %vm114, %v111, %v117
    %vm120 = vcmask 130048
    %v121 = vsel %vm120, %v118, 0.0
    %122 = vadd.xlane.f32.xlu0 %v121
    %v123 = vpop.xlane.xlu0 %122
    %v124 = vsel %vm120, %v119, 0.0
    %125 = vadd.xlane.f32.xlu0 %v124
    %v126 = vpop.xlane.xlu0 %125
    %v127 = vadd.f32 %v123, %v126
    %v128 = vmul.f32 %v127, 0.03125
    %v129 = vsub.f32 %v118, %v128
    %v130 = vsub.f32 %v119, %v128
    %v131 = vmul.f32 %v129, %v129
    %v132 = vmul.f32 %v130, %v130
    %v133 = vsel %vm120, %v131, 0.0
    %134 = vadd.xlane.f32.xlu0 %v133
    %v135 = vpop.xlane.xlu0 %134
    %v136 = vsel %vm120, %v132, 0.0
    %137 = vadd.xlane.f32.xlu0 %v136
    %v138 = vpop.xlane.xlu0 %137
    %v139 = vadd.f32 %v135, %v138
    %v140 = vmul.f32 %v139, 0.03125
    %v141 = vadd.f32 %v140, 1e-05
    %v142 = vrsqrt.pop %v141
    %s143 = scalar_lea.vmem %s1, 40
    %v144 = vld [vmem:[%s143] sm:$0xff]
    %v145 = vmul.f32 %v142, %v144
    %147 = vset.pattern.permute.xlu0 0
    %148 = vperm.xlu0 %147, %v145
    %v149 = vpop.permute.xlu0 %148
    %v151 = vmul.f32 %v129, %v149
    %v152 = vmul.f32 %v130, %v149
    %s153 = scalar_lea.vmem %s1, 48
    %v154 = vld [vmem:[%s153] sm:$0xff]
    %156 = vset.pattern.permute.xlu0 0
    %157 = vperm.xlu0 %156, %v154
    %v158 = vpop.permute.xlu0 %157
    %v160 = vadd.f32 %v151, %v158
    %v161 = vadd.f32 %v152, %v158
    %s162 = scalar_lea.vmem %s1, 56
    %v163 = vld [vmem:[%s162] sm:$0xff]
    %166 = vrot.lane.b32.xlu0 %v160, 2
    %v167 = vpop.permute.xlu0 %166
    %168 = vrot.lane.b32.xlu0 %v161, 2
    %v169 = vpop.permute.xlu0 %168
    %vm172 = vcmask 15360
    %v173 = vsel %vm172, 0.0, %v167
    %v174 = vsel %vm172, 0.0, %v169
    %176 = vset.pattern.permute.xlu0 0
    %177 = vperm.xlu0 %176, %v163
    %v178 = vpop.permute.xlu0 %177
    %v180 = vmul.f32 %v173, %v178
    %v181 = vmul.f32 %v174, %v178
    %s182 = scalar_lea.vmem %s1, 64
    %v183 = vld [vmem:[%s182] sm:$0xff]
    %184 = vrot.lane.b32.xlu0 %v160, 1
    %v185 = vpop.permute.xlu0 %184
    %186 = vrot.lane.b32.xlu0 %v161, 1
    %v187 = vpop.permute.xlu0 %186
    %vm190 = vcmask 7168
    %v191 = vsel %vm190, 0.0, %v185
    %v192 = vsel %vm190, 0.0, %v187
    %194 = vset.pattern.permute.xlu0 0
    %195 = vperm.xlu0 %194, %v183
    %v196 = vpop.permute.xlu0 %195
    %v198 = vmul.f32 %v191, %v196
    %v199 = vmul.f32 %v192, %v196
    %v200 = vadd.f32 %v180, %v198
    %v201 = vadd.f32 %v181, %v199
    %s202 = scalar_lea.vmem %s1, 72
    %v203 = vld [vmem:[%s202] sm:$0xff]
    %205 = vset.pattern.permute.xlu0 0
    %206 = vperm.xlu0 %205, %v203
    %v207 = vpop.permute.xlu0 %206
    %v209 = vmul.f32 %v160, %v207
    %v210 = vmul.f32 %v161, %v207
    %v211 = vadd.f32 %v200, %v209
    %v212 = vadd.f32 %v201, %v210
    %s213 = sld [smem:[#allocation2 + $0x6]]
    %vm214 = vcmp.gt.f32.partialorder %v211, 0.0
    %vm215 = vcmp.gt.f32.partialorder %v212, 0.0
    %v216 = vstv %s213
    %v217 = vmul.f32 %v216, %v211
    %v218 = vmul.f32 %v216, %v212
    %v219 = vsel %vm214, %v211, %v217
    %v220 = vsel %vm215, %v212, %v218
    %v221 = vsel %vm120, %v219, 0.0
    %222 = vadd.xlane.f32.xlu0 %v221
    %v223 = vpop.xlane.xlu0 %222
    %v224 = vsel %vm120, %v220, 0.0
    %225 = vadd.xlane.f32.xlu0 %v224
    %v226 = vpop.xlane.xlu0 %225
    %v227 = vadd.f32 %v223, %v226
    %v228 = vmul.f32 %v227, 0.03125
    %v229 = vsub.f32 %v219, %v228
    %v230 = vsub.f32 %v220, %v228
    %v231 = vmul.f32 %v229, %v229
    %v232 = vmul.f32 %v230, %v230
    %v233 = vsel %vm120, %v231, 0.0
    %234 = vadd.xlane.f32.xlu0 %v233
    %v235 = vpop.xlane.xlu0 %234
    %v236 = vsel %vm120, %v232, 0.0
    %237 = vadd.xlane.f32.xlu0 %v236
    %v238 = vpop.xlane.xlu0 %237
    %v239 = vadd.f32 %v235, %v238
    %v240 = vmul.f32 %v239, 0.03125
    %v241 = vadd.f32 %v240, 1e-05
    %v242 = vrsqrt.pop %v241
    %s243 = scalar_lea.vmem %s1, 80
    %v244 = vld [vmem:[%s243] sm:$0xff]
    %v245 = vmul.f32 %v242, %v244
    %s246 = scalar_lea.vmem %s1, 88
    %v247 = vld [vmem:[%s246] sm:$0xff]
    %s248 = scalar_lea.vmem %s1, 96
    %v249 = vld [vmem:[%s248] sm:$0xff]
    %v250 = vlaneseq
    %v251 = vshrl.u32 %v250, 7
    %v252 = vsub.s32 0, %v251
    %v253 = vrot.slane %v247, %v252
    %v254 = vmul.f32 %v249, %v253
    %v255 = vlaneseq
    %v256 = vshrl.u32 %v255, 7
    %v257 = vsub.s32 0, %v256
    %v258 = vrot.slane %v245, %v257
    %v259 = vmul.f32 %v249, %v258
    %v260 = vlaneseq
    %v261 = vshrl.u32 %v260, 7
    %v262 = vsub.s32 0, %v261
    %v263 = vrot.slane %v229, %v262
    %v264 = vlaneseq
    %v265 = vshrl.u32 %v264, 7
    %v266 = vsub.s32 0, %v265
    %v267 = vrot.slane %v230, %v266
    %269 = vset.pattern.permute.xlu0 0
    %270 = vperm.xlu0 %269, %v259
    %v271 = vpop.permute.xlu0 %270
    %v273 = vmul.f32 %v263, %v271
    %v274 = vmul.f32 %v267, %v271
    %s275 = scalar_lea.vmem %s1, 104
    %v276 = vld [vmem:[%s275] sm:$0xff]
    %v277 = vlaneseq
    %v278 = vshrl.u32 %v277, 7
    %v279 = vsub.s32 1, %v278
    %v280 = vrot.slane %v247, %v279
    %v281 = vmul.f32 %v276, %v280
    %v282 = vadd.f32 %v254, %v281
    %v283 = vlaneseq
    %v284 = vshrl.u32 %v283, 7
    %v285 = vsub.s32 1, %v284
    %v286 = vrot.slane %v245, %v285
    %v287 = vmul.f32 %v276, %v286
    %v288 = vlaneseq
    %v289 = vshrl.u32 %v288, 7
    %v290 = vsub.s32 1, %v289
    %v291 = vrot.slane %v229, %v290
    %v292 = vlaneseq
    %v293 = vshrl.u32 %v292, 7
    %v294 = vsub.s32 1, %v293
    %v295 = vrot.slane %v230, %v294
    %297 = vset.pattern.permute.xlu0 0
    %298 = vperm.xlu0 %297, %v287
    %v299 = vpop.permute.xlu0 %298
    %v301 = vmul.f32 %v291, %v299
    %v302 = vmul.f32 %v295, %v299
    %v303 = vadd.f32 %v273, %v301
    %v304 = vadd.f32 %v274, %v302
    %s305 = scalar_lea.vmem %s1, 112
    %v306 = vld [vmem:[%s305] sm:$0xff]
    %v307 = vlaneseq
    %v308 = vshrl.u32 %v307, 7
    %v309 = vsub.s32 2, %v308
    %v310 = vrot.slane %v247, %v309
    %v311 = vmul.f32 %v306, %v310
    %v312 = vadd.f32 %v282, %v311
    %v313 = vlaneseq
    %v314 = vshrl.u32 %v313, 7
    %v315 = vsub.s32 2, %v314
    %v316 = vrot.slane %v245, %v315
    %v317 = vmul.f32 %v306, %v316
    %v318 = vlaneseq
    %v319 = vshrl.u32 %v318, 7
    %v320 = vsub.s32 2, %v319
    %v321 = vrot.slane %v229, %v320
    %v322 = vlaneseq
    %v323 = vshrl.u32 %v322, 7
    %v324 = vsub.s32 2, %v323
    %v325 = vrot.slane %v230, %v324
    %327 = vset.pattern.permute.xlu0 0
    %328 = vperm.xlu0 %327, %v317
    %v329 = vpop.permute.xlu0 %328
    %v331 = vmul.f32 %v321, %v329
    %v332 = vmul.f32 %v325, %v329
    %v333 = vadd.f32 %v303, %v331
    %v334 = vadd.f32 %v304, %v332
    %s335 = scalar_lea.vmem %s1, 120
    %v336 = vld [vmem:[%s335] sm:$0xff]
    %v337 = vlaneseq
    %v338 = vshrl.u32 %v337, 7
    %v339 = vsub.s32 3, %v338
    %v340 = vrot.slane %v247, %v339
    %v341 = vmul.f32 %v336, %v340
    %v342 = vadd.f32 %v312, %v341
    %v343 = vlaneseq
    %v344 = vshrl.u32 %v343, 7
    %v345 = vsub.s32 3, %v344
    %v346 = vrot.slane %v245, %v345
    %v347 = vmul.f32 %v336, %v346
    %v348 = vlaneseq
    %v349 = vshrl.u32 %v348, 7
    %v350 = vsub.s32 3, %v349
    %v351 = vrot.slane %v229, %v350
    %v352 = vlaneseq
    %v353 = vshrl.u32 %v352, 7
    %v354 = vsub.s32 3, %v353
    %v355 = vrot.slane %v230, %v354
    %357 = vset.pattern.permute.xlu0 0
    %358 = vperm.xlu0 %357, %v347
    %v359 = vpop.permute.xlu0 %358
    %v361 = vmul.f32 %v351, %v359
    %v362 = vmul.f32 %v355, %v359
    %v363 = vadd.f32 %v333, %v361
    %v364 = vadd.f32 %v334, %v362
    %s365 = scalar_lea.vmem %s1, 128
    %v366 = vld [vmem:[%s365] sm:$0xff]
    %v367 = vlaneseq
    %v368 = vshrl.u32 %v367, 7
    %v369 = vsub.s32 4, %v368
    %v370 = vrot.slane %v247, %v369
    %v371 = vmul.f32 %v366, %v370
    %v372 = vadd.f32 %v342, %v371
    %v373 = vlaneseq
    %v374 = vshrl.u32 %v373, 7
    %v375 = vsub.s32 4, %v374
    %v376 = vrot.slane %v245, %v375
    %v377 = vmul.f32 %v366, %v376
    %v378 = vlaneseq
    %v379 = vshrl.u32 %v378, 7
    %v380 = vsub.s32 4, %v379
    %v381 = vrot.slane %v229, %v380
    %v382 = vlaneseq
    %v383 = vshrl.u32 %v382, 7
    %v384 = vsub.s32 4, %v383
    %v385 = vrot.slane %v230, %v384
    %387 = vset.pattern.permute.xlu0 0
    %388 = vperm.xlu0 %387, %v377
    %v389 = vpop.permute.xlu0 %388
    %v391 = vmul.f32 %v381, %v389
    %v392 = vmul.f32 %v385, %v389
    %v393 = vadd.f32 %v363, %v391
    %v394 = vadd.f32 %v364, %v392
    %s395 = scalar_lea.vmem %s1, 136
    %v396 = vld [vmem:[%s395] sm:$0xff]
    %v397 = vlaneseq
    %v398 = vshrl.u32 %v397, 7
    %v399 = vsub.s32 5, %v398
    %v400 = vrot.slane %v247, %v399
    %v401 = vmul.f32 %v396, %v400
    %v402 = vadd.f32 %v372, %v401
    %v403 = vlaneseq
    %v404 = vshrl.u32 %v403, 7
    %v405 = vsub.s32 5, %v404
    %v406 = vrot.slane %v245, %v405
    %v407 = vmul.f32 %v396, %v406
    %v408 = vlaneseq
    %v409 = vshrl.u32 %v408, 7
    %v410 = vsub.s32 5, %v409
    %v411 = vrot.slane %v229, %v410
    %v412 = vlaneseq
    %v413 = vshrl.u32 %v412, 7
    %v414 = vsub.s32 5, %v413
    %v415 = vrot.slane %v230, %v414
    %417 = vset.pattern.permute.xlu0 0
    %418 = vperm.xlu0 %417, %v407
    %v419 = vpop.permute.xlu0 %418
    %v421 = vmul.f32 %v411, %v419
    %v422 = vmul.f32 %v415, %v419
    %v423 = vadd.f32 %v393, %v421
    %v424 = vadd.f32 %v394, %v422
    %s425 = scalar_lea.vmem %s1, 144
    %v426 = vld [vmem:[%s425] sm:$0xff]
    %v427 = vlaneseq
    %v428 = vshrl.u32 %v427, 7
    %v429 = vsub.s32 6, %v428
    %v430 = vrot.slane %v247, %v429
    %v431 = vmul.f32 %v426, %v430
    %v432 = vadd.f32 %v402, %v431
    %v433 = vlaneseq
    %v434 = vshrl.u32 %v433, 7
    %v435 = vsub.s32 6, %v434
    %v436 = vrot.slane %v245, %v435
    %v437 = vmul.f32 %v426, %v436
    %v438 = vlaneseq
    %v439 = vshrl.u32 %v438, 7
    %v440 = vsub.s32 6, %v439
    %v441 = vrot.slane %v229, %v440
    %v442 = vlaneseq
    %v443 = vshrl.u32 %v442, 7
    %v444 = vsub.s32 6, %v443
    %v445 = vrot.slane %v230, %v444
    %447 = vset.pattern.permute.xlu0 0
    %448 = vperm.xlu0 %447, %v437
    %v449 = vpop.permute.xlu0 %448
    %v451 = vmul.f32 %v441, %v449
    %v452 = vmul.f32 %v445, %v449
    %v453 = vadd.f32 %v423, %v451
    %v454 = vadd.f32 %v424, %v452
    %s455 = scalar_lea.vmem %s1, 152
    %v456 = vld [vmem:[%s455] sm:$0xff]
    %v457 = vlaneseq
    %v458 = vshrl.u32 %v457, 7
    %v459 = vsub.s32 7, %v458
    %v460 = vrot.slane %v247, %v459
    %v461 = vmul.f32 %v456, %v460
    %v462 = vadd.f32 %v432, %v461
    %v463 = vlaneseq
    %v464 = vshrl.u32 %v463, 7
    %v465 = vsub.s32 7, %v464
    %v466 = vrot.slane %v245, %v465
    %v467 = vmul.f32 %v456, %v466
    %v468 = vlaneseq
    %v469 = vshrl.u32 %v468, 7
    %v470 = vsub.s32 7, %v469
    %v471 = vrot.slane %v229, %v470
    %v472 = vlaneseq
    %v473 = vshrl.u32 %v472, 7
    %v474 = vsub.s32 7, %v473
    %v475 = vrot.slane %v230, %v474
    %477 = vset.pattern.permute.xlu0 0
    %478 = vperm.xlu0 %477, %v467
    %v479 = vpop.permute.xlu0 %478
    %v481 = vmul.f32 %v471, %v479
    %v482 = vmul.f32 %v475, %v479
    %v483 = vadd.f32 %v453, %v481
    %v484 = vadd.f32 %v454, %v482
    %486 = vset.pattern.permute.xlu0 0
    %487 = vperm.xlu0 %486, %v462
    %v488 = vpop.permute.xlu0 %487
    %v490 = vadd.f32 %v483, %v488
    %v491 = vadd.f32 %v484, %v488
    %v492 = vadd.f32 %v28, %v490
    %v493 = vadd.f32 %v29, %v491
    %s494 = scalar_lea.vmem %s1, 192
    %v495 = vld [vmem:[%s494] sm:$0xff]
    %s496 = scalar_lea.vmem %s1, 160
    %v497 = vld [vmem:[%s496] sm:$0xff]
    %v498 = vlaneseq
    %v499 = vshrl.u32 %v498, 7
    %v500 = vsub.s32 0, %v499
    %v501 = vrot.slane %v492, %v500
    %v502 = vlaneseq
    %v503 = vshrl.u32 %v502, 7
    %v504 = vsub.s32 0, %v503
    %v505 = vrot.slane %v493, %v504
    %507 = vset.pattern.permute.xlu0 0
    %508 = vperm.xlu0 %507, %v497
    %v509 = vpop.permute.xlu0 %508
    %v511 = vmul.f32 %v501, %v509
    %v512 = vmul.f32 %v505, %v509
    %514 = vset.pattern.permute.xlu0 0
    %515 = vperm.xlu0 %514, %v495
    %v516 = vpop.permute.xlu0 %515
    %v518 = vadd.f32 %v516, %v511
    %v519 = vadd.f32 %v516, %v512
    %s520 = scalar_lea.vmem %s1, 168
    %v521 = vld [vmem:[%s520] sm:$0xff]
    %v522 = vlaneseq
    %v523 = vshrl.u32 %v522, 7
    %v524 = vsub.s32 1, %v523
    %v525 = vrot.slane %v492, %v524
    %v526 = vlaneseq
    %v527 = vshrl.u32 %v526, 7
    %v528 = vsub.s32 1, %v527
    %v529 = vrot.slane %v493, %v528
    %531 = vset.pattern.permute.xlu0 0
    %532 = vperm.xlu0 %531, %v521
    %v533 = vpop.permute.xlu0 %532
    %v535 = vmul.f32 %v525, %v533
    %v536 = vmul.f32 %v529, %v533
    %v537 = vadd.f32 %v518, %v535
    %v538 = vadd.f32 %v519, %v536
    %s539 = scalar_lea.vmem %s1, 176
    %v540 = vld [vmem:[%s539] sm:$0xff]
    %v541 = vlaneseq
    %v542 = vshrl.u32 %v541, 7
    %v543 = vsub.s32 2, %v542
    %v544 = vrot.slane %v492, %v543
    %v545 = vlaneseq
    %v546 = vshrl.u32 %v545, 7
    %v547 = vsub.s32 2, %v546
    %v548 = vrot.slane %v493, %v547
    %550 = vset.pattern.permute.xlu0 0
    %551 = vperm.xlu0 %550, %v540
    %v552 = vpop.permute.xlu0 %551
    %v554 = vmul.f32 %v544, %v552
    %v555 = vmul.f32 %v548, %v552
    %v556 = vadd.f32 %v537, %v554
    %v557 = vadd.f32 %v538, %v555
    %s558 = scalar_lea.vmem %s1, 184
    %v559 = vld [vmem:[%s558] sm:$0xff]
    %v560 = vlaneseq
    %v561 = vshrl.u32 %v560, 7
    %v562 = vsub.s32 3, %v561
    %v563 = vrot.slane %v492, %v562
    %v564 = vlaneseq
    %v565 = vshrl.u32 %v564, 7
    %v566 = vsub.s32 3, %v565
    %v567 = vrot.slane %v493, %v566
    %569 = vset.pattern.permute.xlu0 0
    %570 = vperm.xlu0 %569, %v559
    %v571 = vpop.permute.xlu0 %570
    %v573 = vmul.f32 %v563, %v571
    %v574 = vmul.f32 %v567, %v571
    %v575 = vadd.f32 %v556, %v573
    %v576 = vadd.f32 %v557, %v574
    %s577 = sld [smem:[#allocation2 + $0x1]]
    %vm578 = vcmp.gt.f32.partialorder %v575, 0.0
    %vm579 = vcmp.gt.f32.partialorder %v576, 0.0
    %v580 = vstv %s577
    %v581 = vmul.f32 %v580, %v575
    %v582 = vmul.f32 %v580, %v576
    %v583 = vsel %vm578, %v575, %v581
    %v584 = vsel %vm579, %v576, %v582
    %v585 = vsel %vm120, %v583, 0.0
    %586 = vadd.xlane.f32.xlu0 %v585
    %v587 = vpop.xlane.xlu0 %586
    %v588 = vsel %vm120, %v584, 0.0
    %589 = vadd.xlane.f32.xlu0 %v588
    %v590 = vpop.xlane.xlu0 %589
    %v591 = vadd.f32 %v587, %v590
    %v592 = vmul.f32 %v591, 0.03125
    %v593 = vsub.f32 %v583, %v592
    %v594 = vsub.f32 %v584, %v592
    %v595 = vmul.f32 %v593, %v593
    %v596 = vmul.f32 %v594, %v594
    %v597 = vsel %vm120, %v595, 0.0
    %598 = vadd.xlane.f32.xlu0 %v597
    %v599 = vpop.xlane.xlu0 %598
    %v600 = vsel %vm120, %v596, 0.0
    %601 = vadd.xlane.f32.xlu0 %v600
    %v602 = vpop.xlane.xlu0 %601
    %v603 = vadd.f32 %v599, %v602
    %v604 = vmul.f32 %v603, 0.03125
    %v605 = vadd.f32 %v604, 1e-05
    %v606 = vrsqrt.pop %v605
    %s607 = scalar_lea.vmem %s1, 200
    %v608 = vld [vmem:[%s607] sm:$0xff]
    %v609 = vmul.f32 %v606, %v608
    %611 = vset.pattern.permute.xlu0 0
    %612 = vperm.xlu0 %611, %v609
    %v613 = vpop.permute.xlu0 %612
    %v615 = vmul.f32 %v593, %v613
    %v616 = vmul.f32 %v594, %v613
    %s617 = scalar_lea.vmem %s1, 208
    %v618 = vld [vmem:[%s617] sm:$0xff]
    %620 = vset.pattern.permute.xlu0 0
    %621 = vperm.xlu0 %620, %v618
    %v622 = vpop.permute.xlu0 %621
    %v624 = vadd.f32 %v615, %v622
    %v625 = vadd.f32 %v616, %v622
    %s626 = scalar_lea.vmem %s1, 216
    %v627 = vld [vmem:[%s626] sm:$0xff]
    %630 = vrot.lane.b32.xlu0 %v624, 6
    %v631 = vpop.permute.xlu0 %630
    %632 = vrot.lane.b32.xlu0 %v625, 6
    %v633 = vpop.permute.xlu0 %632
    %vm636 = vcmask 48128
    %v637 = vsel %vm636, 0.0, %v631
    %v638 = vsel %vm636, 0.0, %v633
    %640 = vset.pattern.permute.xlu0 0
    %641 = vperm.xlu0 %640, %v627
    %v642 = vpop.permute.xlu0 %641
    %v644 = vmul.f32 %v637, %v642
    %v645 = vmul.f32 %v638, %v642
    %s646 = scalar_lea.vmem %s1, 224
    %v647 = vld [vmem:[%s646] sm:$0xff]
    %648 = vrot.lane.b32.xlu0 %v624, 3
    %v649 = vpop.permute.xlu0 %648
    %650 = vrot.lane.b32.xlu0 %v625, 3
    %v651 = vpop.permute.xlu0 %650
    %vm654 = vcmask 23552
    %v655 = vsel %vm654, 0.0, %v649
    %v656 = vsel %vm654, 0.0, %v651
    %658 = vset.pattern.permute.xlu0 0
    %659 = vperm.xlu0 %658, %v647
    %v660 = vpop.permute.xlu0 %659
    %v662 = vmul.f32 %v655, %v660
    %v663 = vmul.f32 %v656, %v660
    %v664 = vadd.f32 %v644, %v662
    %v665 = vadd.f32 %v645, %v663
    %s666 = scalar_lea.vmem %s1, 232
    %v667 = vld [vmem:[%s666] sm:$0xff]
    %669 = vset.pattern.permute.xlu0 0
    %670 = vperm.xlu0 %669, %v667
    %v671 = vpop.permute.xlu0 %670
    %v673 = vmul.f32 %v624, %v671
    %v674 = vmul.f32 %v625, %v671
    %v675 = vadd.f32 %v664, %v673
    %v676 = vadd.f32 %v665, %v674
    %s677 = sld [smem:[#allocation2 + $0x7]]
    %vm678 = vcmp.gt.f32.partialorder %v675, 0.0
    %vm679 = vcmp.gt.f32.partialorder %v676, 0.0
    %v680 = vstv %s677
    %v681 = vmul.f32 %v680, %v675
    %v682 = vmul.f32 %v680, %v676
    %v683 = vsel %vm678, %v675, %v681
    %v684 = vsel %vm679, %v676, %v682
    %v685 = vsel %vm120, %v683, 0.0
    %686 = vadd.xlane.f32.xlu0 %v685
    %v687 = vpop.xlane.xlu0 %686
    %v688 = vsel %vm120, %v684, 0.0
    %689 = vadd.xlane.f32.xlu0 %v688
    %v690 = vpop.xlane.xlu0 %689
    %v691 = vadd.f32 %v687, %v690
    %v692 = vmul.f32 %v691, 0.03125
    %v693 = vsub.f32 %v683, %v692
    %v694 = vsub.f32 %v684, %v692
    %v695 = vmul.f32 %v693, %v693
    %v696 = vmul.f32 %v694, %v694
    %v697 = vsel %vm120, %v695, 0.0
    %698 = vadd.xlane.f32.xlu0 %v697
    %v699 = vpop.xlane.xlu0 %698
    %v700 = vsel %vm120, %v696, 0.0
    %701 = vadd.xlane.f32.xlu0 %v700
    %v702 = vpop.xlane.xlu0 %701
    %v703 = vadd.f32 %v699, %v702
    %v704 = vmul.f32 %v703, 0.03125
    %v705 = vadd.f32 %v704, 1e-05
    %v706 = vrsqrt.pop %v705
    %s707 = scalar_lea.vmem %s1, 240
    %v708 = vld [vmem:[%s707] sm:$0xff]
    %v709 = vmul.f32 %v706, %v708
    %s710 = scalar_lea.vmem %s1, 248
    %v711 = vld [vmem:[%s710] sm:$0xff]
    %s712 = scalar_lea.vmem %s1, 256
    %v713 = vld [vmem:[%s712] sm:$0xff]
    %v714 = vlaneseq
    %v715 = vshrl.u32 %v714, 7
    %v716 = vsub.s32 0, %v715
    %v717 = vrot.slane %v711, %v716
    %v718 = vmul.f32 %v713, %v717
    %v719 = vlaneseq
    %v720 = vshrl.u32 %v719, 7
    %v721 = vsub.s32 0, %v720
    %v722 = vrot.slane %v709, %v721
    %v723 = vmul.f32 %v713, %v722
    %v724 = vlaneseq
    %v725 = vshrl.u32 %v724, 7
    %v726 = vsub.s32 0, %v725
    %v727 = vrot.slane %v693, %v726
    %v728 = vlaneseq
    %v729 = vshrl.u32 %v728, 7
    %v730 = vsub.s32 0, %v729
    %v731 = vrot.slane %v694, %v730
    %733 = vset.pattern.permute.xlu0 0
    %734 = vperm.xlu0 %733, %v723
    %v735 = vpop.permute.xlu0 %734
    %v737 = vmul.f32 %v727, %v735
    %v738 = vmul.f32 %v731, %v735
    %s739 = scalar_lea.vmem %s1, 264
    %v740 = vld [vmem:[%s739] sm:$0xff]
    %v741 = vlaneseq
    %v742 = vshrl.u32 %v741, 7
    %v743 = vsub.s32 1, %v742
    %v744 = vrot.slane %v711, %v743
    %v745 = vmul.f32 %v740, %v744
    %v746 = vadd.f32 %v718, %v745
    %v747 = vlaneseq
    %v748 = vshrl.u32 %v747, 7
    %v749 = vsub.s32 1, %v748
    %v750 = vrot.slane %v709, %v749
    %v751 = vmul.f32 %v740, %v750
    %v752 = vlaneseq
    %v753 = vshrl.u32 %v752, 7
    %v754 = vsub.s32 1, %v753
    %v755 = vrot.slane %v693, %v754
    %v756 = vlaneseq
    %v757 = vshrl.u32 %v756, 7
    %v758 = vsub.s32 1, %v757
    %v759 = vrot.slane %v694, %v758
    %761 = vset.pattern.permute.xlu0 0
    %762 = vperm.xlu0 %761, %v751
    %v763 = vpop.permute.xlu0 %762
    %v765 = vmul.f32 %v755, %v763
    %v766 = vmul.f32 %v759, %v763
    %v767 = vadd.f32 %v737, %v765
    %v768 = vadd.f32 %v738, %v766
    %s769 = scalar_lea.vmem %s1, 272
    %v770 = vld [vmem:[%s769] sm:$0xff]
    %v771 = vlaneseq
    %v772 = vshrl.u32 %v771, 7
    %v773 = vsub.s32 2, %v772
    %v774 = vrot.slane %v711, %v773
    %v775 = vmul.f32 %v770, %v774
    %v776 = vadd.f32 %v746, %v775
    %v777 = vlaneseq
    %v778 = vshrl.u32 %v777, 7
    %v779 = vsub.s32 2, %v778
    %v780 = vrot.slane %v709, %v779
    %v781 = vmul.f32 %v770, %v780
    %v782 = vlaneseq
    %v783 = vshrl.u32 %v782, 7
    %v784 = vsub.s32 2, %v783
    %v785 = vrot.slane %v693, %v784
    %v786 = vlaneseq
    %v787 = vshrl.u32 %v786, 7
    %v788 = vsub.s32 2, %v787
    %v789 = vrot.slane %v694, %v788
    %791 = vset.pattern.permute.xlu0 0
    %792 = vperm.xlu0 %791, %v781
    %v793 = vpop.permute.xlu0 %792
    %v795 = vmul.f32 %v785, %v793
    %v796 = vmul.f32 %v789, %v793
    %v797 = vadd.f32 %v767, %v795
    %v798 = vadd.f32 %v768, %v796
    %s799 = scalar_lea.vmem %s1, 280
    %v800 = vld [vmem:[%s799] sm:$0xff]
    %v801 = vlaneseq
    %v802 = vshrl.u32 %v801, 7
    %v803 = vsub.s32 3, %v802
    %v804 = vrot.slane %v711, %v803
    %v805 = vmul.f32 %v800, %v804
    %v806 = vadd.f32 %v776, %v805
    %v807 = vlaneseq
    %v808 = vshrl.u32 %v807, 7
    %v809 = vsub.s32 3, %v808
    %v810 = vrot.slane %v709, %v809
    %v811 = vmul.f32 %v800, %v810
    %v812 = vlaneseq
    %v813 = vshrl.u32 %v812, 7
    %v814 = vsub.s32 3, %v813
    %v815 = vrot.slane %v693, %v814
    %v816 = vlaneseq
    %v817 = vshrl.u32 %v816, 7
    %v818 = vsub.s32 3, %v817
    %v819 = vrot.slane %v694, %v818
    %821 = vset.pattern.permute.xlu0 0
    %822 = vperm.xlu0 %821, %v811
    %v823 = vpop.permute.xlu0 %822
    %v825 = vmul.f32 %v815, %v823
    %v826 = vmul.f32 %v819, %v823
    %v827 = vadd.f32 %v797, %v825
    %v828 = vadd.f32 %v798, %v826
    %s829 = scalar_lea.vmem %s1, 288
    %v830 = vld [vmem:[%s829] sm:$0xff]
    %v831 = vlaneseq
    %v832 = vshrl.u32 %v831, 7
    %v833 = vsub.s32 4, %v832
    %v834 = vrot.slane %v711, %v833
    %v835 = vmul.f32 %v830, %v834
    %v836 = vadd.f32 %v806, %v835
    %v837 = vlaneseq
    %v838 = vshrl.u32 %v837, 7
    %v839 = vsub.s32 4, %v838
    %v840 = vrot.slane %v709, %v839
    %v841 = vmul.f32 %v830, %v840
    %v842 = vlaneseq
    %v843 = vshrl.u32 %v842, 7
    %v844 = vsub.s32 4, %v843
    %v845 = vrot.slane %v693, %v844
    %v846 = vlaneseq
    %v847 = vshrl.u32 %v846, 7
    %v848 = vsub.s32 4, %v847
    %v849 = vrot.slane %v694, %v848
    %851 = vset.pattern.permute.xlu0 0
    %852 = vperm.xlu0 %851, %v841
    %v853 = vpop.permute.xlu0 %852
    %v855 = vmul.f32 %v845, %v853
    %v856 = vmul.f32 %v849, %v853
    %v857 = vadd.f32 %v827, %v855
    %v858 = vadd.f32 %v828, %v856
    %s859 = scalar_lea.vmem %s1, 296
    %v860 = vld [vmem:[%s859] sm:$0xff]
    %v861 = vlaneseq
    %v862 = vshrl.u32 %v861, 7
    %v863 = vsub.s32 5, %v862
    %v864 = vrot.slane %v711, %v863
    %v865 = vmul.f32 %v860, %v864
    %v866 = vadd.f32 %v836, %v865
    %v867 = vlaneseq
    %v868 = vshrl.u32 %v867, 7
    %v869 = vsub.s32 5, %v868
    %v870 = vrot.slane %v709, %v869
    %v871 = vmul.f32 %v860, %v870
    %v872 = vlaneseq
    %v873 = vshrl.u32 %v872, 7
    %v874 = vsub.s32 5, %v873
    %v875 = vrot.slane %v693, %v874
    %v876 = vlaneseq
    %v877 = vshrl.u32 %v876, 7
    %v878 = vsub.s32 5, %v877
    %v879 = vrot.slane %v694, %v878
    %881 = vset.pattern.permute.xlu0 0
    %882 = vperm.xlu0 %881, %v871
    %v883 = vpop.permute.xlu0 %882
    %v885 = vmul.f32 %v875, %v883
    %v886 = vmul.f32 %v879, %v883
    %v887 = vadd.f32 %v857, %v885
    %v888 = vadd.f32 %v858, %v886
    %s889 = scalar_lea.vmem %s1, 304
    %v890 = vld [vmem:[%s889] sm:$0xff]
    %v891 = vlaneseq
    %v892 = vshrl.u32 %v891, 7
    %v893 = vsub.s32 6, %v892
    %v894 = vrot.slane %v711, %v893
    %v895 = vmul.f32 %v890, %v894
    %v896 = vadd.f32 %v866, %v895
    %v897 = vlaneseq
    %v898 = vshrl.u32 %v897, 7
    %v899 = vsub.s32 6, %v898
    %v900 = vrot.slane %v709, %v899
    %v901 = vmul.f32 %v890, %v900
    %v902 = vlaneseq
    %v903 = vshrl.u32 %v902, 7
    %v904 = vsub.s32 6, %v903
    %v905 = vrot.slane %v693, %v904
    %v906 = vlaneseq
    %v907 = vshrl.u32 %v906, 7
    %v908 = vsub.s32 6, %v907
    %v909 = vrot.slane %v694, %v908
    %911 = vset.pattern.permute.xlu0 0
    %912 = vperm.xlu0 %911, %v901
    %v913 = vpop.permute.xlu0 %912
    %v915 = vmul.f32 %v905, %v913
    %v916 = vmul.f32 %v909, %v913
    %v917 = vadd.f32 %v887, %v915
    %v918 = vadd.f32 %v888, %v916
    %s919 = scalar_lea.vmem %s1, 312
    %v920 = vld [vmem:[%s919] sm:$0xff]
    %v921 = vlaneseq
    %v922 = vshrl.u32 %v921, 7
    %v923 = vsub.s32 7, %v922
    %v924 = vrot.slane %v711, %v923
    %v925 = vmul.f32 %v920, %v924
    %v926 = vadd.f32 %v896, %v925
    %v927 = vlaneseq
    %v928 = vshrl.u32 %v927, 7
    %v929 = vsub.s32 7, %v928
    %v930 = vrot.slane %v709, %v929
    %v931 = vmul.f32 %v920, %v930
    %v932 = vlaneseq
    %v933 = vshrl.u32 %v932, 7
    %v934 = vsub.s32 7, %v933
    %v935 = vrot.slane %v693, %v934
    %v936 = vlaneseq
    %v937 = vshrl.u32 %v936, 7
    %v938 = vsub.s32 7, %v937
    %v939 = vrot.slane %v694, %v938
    %941 = vset.pattern.permute.xlu0 0
    %942 = vperm.xlu0 %941, %v931
    %v943 = vpop.permute.xlu0 %942
    %v945 = vmul.f32 %v935, %v943
    %v946 = vmul.f32 %v939, %v943
    %v947 = vadd.f32 %v917, %v945
    %v948 = vadd.f32 %v918, %v946
    %950 = vset.pattern.permute.xlu0 0
    %951 = vperm.xlu0 %950, %v926
    %v952 = vpop.permute.xlu0 %951
    %v954 = vadd.f32 %v947, %v952
    %v955 = vadd.f32 %v948, %v952
    %v956 = vadd.f32 %v492, %v954
    %v957 = vadd.f32 %v493, %v955
    %s958 = scalar_lea.vmem %s1, 352
    %v959 = vld [vmem:[%s958] sm:$0xff]
    %s960 = scalar_lea.vmem %s1, 320
    %v961 = vld [vmem:[%s960] sm:$0xff]
    %v962 = vlaneseq
    %v963 = vshrl.u32 %v962, 7
    %v964 = vsub.s32 0, %v963
    %v965 = vrot.slane %v956, %v964
    %v966 = vlaneseq
    %v967 = vshrl.u32 %v966, 7
    %v968 = vsub.s32 0, %v967
    %v969 = vrot.slane %v957, %v968
    %971 = vset.pattern.permute.xlu0 0
    %972 = vperm.xlu0 %971, %v961
    %v973 = vpop.permute.xlu0 %972
    %v975 = vmul.f32 %v965, %v973
    %v976 = vmul.f32 %v969, %v973
    %978 = vset.pattern.permute.xlu0 0
    %979 = vperm.xlu0 %978, %v959
    %v980 = vpop.permute.xlu0 %979
    %v982 = vadd.f32 %v980, %v975
    %v983 = vadd.f32 %v980, %v976
    %s984 = scalar_lea.vmem %s1, 328
    %v985 = vld [vmem:[%s984] sm:$0xff]
    %v986 = vlaneseq
    %v987 = vshrl.u32 %v986, 7
    %v988 = vsub.s32 1, %v987
    %v989 = vrot.slane %v956, %v988
    %v990 = vlaneseq
    %v991 = vshrl.u32 %v990, 7
    %v992 = vsub.s32 1, %v991
    %v993 = vrot.slane %v957, %v992
    %995 = vset.pattern.permute.xlu0 0
    %996 = vperm.xlu0 %995, %v985
    %v997 = vpop.permute.xlu0 %996
    %v999 = vmul.f32 %v989, %v997
    %v1000 = vmul.f32 %v993, %v997
    %v1001 = vadd.f32 %v982, %v999
    %v1002 = vadd.f32 %v983, %v1000
    %s1003 = scalar_lea.vmem %s1, 336
    %v1004 = vld [vmem:[%s1003] sm:$0xff]
    %v1005 = vlaneseq
    %v1006 = vshrl.u32 %v1005, 7
    %v1007 = vsub.s32 2, %v1006
    %v1008 = vrot.slane %v956, %v1007
    %v1009 = vlaneseq
    %v1010 = vshrl.u32 %v1009, 7
    %v1011 = vsub.s32 2, %v1010
    %v1012 = vrot.slane %v957, %v1011
    %1014 = vset.pattern.permute.xlu0 0
    %1015 = vperm.xlu0 %1014, %v1004
    %v1016 = vpop.permute.xlu0 %1015
    %v1018 = vmul.f32 %v1008, %v1016
    %v1019 = vmul.f32 %v1012, %v1016
    %v1020 = vadd.f32 %v1001, %v1018
    %v1021 = vadd.f32 %v1002, %v1019
    %s1022 = scalar_lea.vmem %s1, 344
    %v1023 = vld [vmem:[%s1022] sm:$0xff]
    %v1024 = vlaneseq
    %v1025 = vshrl.u32 %v1024, 7
    %v1026 = vsub.s32 3, %v1025
    %v1027 = vrot.slane %v956, %v1026
    %v1028 = vlaneseq
    %v1029 = vshrl.u32 %v1028, 7
    %v1030 = vsub.s32 3, %v1029
    %v1031 = vrot.slane %v957, %v1030
    %1033 = vset.pattern.permute.xlu0 0
    %1034 = vperm.xlu0 %1033, %v1023
    %v1035 = vpop.permute.xlu0 %1034
    %v1037 = vmul.f32 %v1027, %v1035
    %v1038 = vmul.f32 %v1031, %v1035
    %v1039 = vadd.f32 %v1020, %v1037
    %v1040 = vadd.f32 %v1021, %v1038
    %s1041 = sld [smem:[#allocation2 + $0x2]]
    %vm1042 = vcmp.gt.f32.partialorder %v1039, 0.0
    %vm1043 = vcmp.gt.f32.partialorder %v1040, 0.0
    %v1044 = vstv %s1041
    %v1045 = vmul.f32 %v1044, %v1039
    %v1046 = vmul.f32 %v1044, %v1040
    %v1047 = vsel %vm1042, %v1039, %v1045
    %v1048 = vsel %vm1043, %v1040, %v1046
    %v1049 = vsel %vm120, %v1047, 0.0
    %1050 = vadd.xlane.f32.xlu0 %v1049
    %v1051 = vpop.xlane.xlu0 %1050
    %v1052 = vsel %vm120, %v1048, 0.0
    %1053 = vadd.xlane.f32.xlu0 %v1052
    %v1054 = vpop.xlane.xlu0 %1053
    %v1055 = vadd.f32 %v1051, %v1054
    %v1056 = vmul.f32 %v1055, 0.03125
    %v1057 = vsub.f32 %v1047, %v1056
    %v1058 = vsub.f32 %v1048, %v1056
    %v1059 = vmul.f32 %v1057, %v1057
    %v1060 = vmul.f32 %v1058, %v1058
    %v1061 = vsel %vm120, %v1059, 0.0
    %1062 = vadd.xlane.f32.xlu0 %v1061
    %v1063 = vpop.xlane.xlu0 %1062
    %v1064 = vsel %vm120, %v1060, 0.0
    %1065 = vadd.xlane.f32.xlu0 %v1064
    %v1066 = vpop.xlane.xlu0 %1065
    %v1067 = vadd.f32 %v1063, %v1066
    %v1068 = vmul.f32 %v1067, 0.03125
    %v1069 = vadd.f32 %v1068, 1e-05
    %v1070 = vrsqrt.pop %v1069
    %s1071 = scalar_lea.vmem %s1, 360
    %v1072 = vld [vmem:[%s1071] sm:$0xff]
    %v1073 = vmul.f32 %v1070, %v1072
    %1075 = vset.pattern.permute.xlu0 0
    %1076 = vperm.xlu0 %1075, %v1073
    %v1077 = vpop.permute.xlu0 %1076
    %v1079 = vmul.f32 %v1057, %v1077
    %v1080 = vmul.f32 %v1058, %v1077
    %s1081 = scalar_lea.vmem %s1, 368
    %v1082 = vld [vmem:[%s1081] sm:$0xff]
    %1084 = vset.pattern.permute.xlu0 0
    %1085 = vperm.xlu0 %1084, %v1082
    %v1086 = vpop.permute.xlu0 %1085
    %v1088 = vadd.f32 %v1079, %v1086
    %v1089 = vadd.f32 %v1080, %v1086
    %s1090 = scalar_lea.vmem %s1, 384
    %v1091 = vld [vmem:[%s1090] sm:$0xff]
    %1094 = vrot.lane.b32.xlu0 %v1088, 9
    %v1095 = vpop.permute.xlu0 %1094
    %1096 = vrot.lane.b32.xlu0 %v1089, 9
    %v1097 = vpop.permute.xlu0 %1096
    %vm1100 = vcmask 72704
    %v1101 = vsel %vm1100, 0.0, %v1095
    %v1102 = vsel %vm1100, 0.0, %v1097
    %1104 = vset.pattern.permute.xlu0 0
    %1105 = vperm.xlu0 %1104, %v1091
    %v1106 = vpop.permute.xlu0 %1105
    %v1108 = vmul.f32 %v1101, %v1106
    %v1109 = vmul.f32 %v1102, %v1106
    %s1110 = scalar_lea.vmem %s1, 392
    %v1111 = vld [vmem:[%s1110] sm:$0xff]
    %1113 = vset.pattern.permute.xlu0 0
    %1114 = vperm.xlu0 %1113, %v1111
    %v1115 = vpop.permute.xlu0 %1114
    %v1117 = vmul.f32 %v1088, %v1115
    %v1118 = vmul.f32 %v1089, %v1115
    %v1119 = vadd.f32 %v1108, %v1117
    %v1120 = vadd.f32 %v1109, %v1118
    %s1121 = sld [smem:[#allocation2 + $0x8]]
    %vm1122 = vcmp.gt.f32.partialorder %v1119, 0.0
    %vm1123 = vcmp.gt.f32.partialorder %v1120, 0.0
    %v1124 = vstv %s1121
    %v1125 = vmul.f32 %v1124, %v1119
    %v1126 = vmul.f32 %v1124, %v1120
    %v1127 = vsel %vm1122, %v1119, %v1125
    %v1128 = vsel %vm1123, %v1120, %v1126
    %v1129 = vsel %vm120, %v1127, 0.0
    %1130 = vadd.xlane.f32.xlu0 %v1129
    %v1131 = vpop.xlane.xlu0 %1130
    %v1132 = vsel %vm120, %v1128, 0.0
    %1133 = vadd.xlane.f32.xlu0 %v1132
    %v1134 = vpop.xlane.xlu0 %1133
    %v1135 = vadd.f32 %v1131, %v1134
    %v1136 = vmul.f32 %v1135, 0.03125
    %v1137 = vsub.f32 %v1127, %v1136
    %v1138 = vsub.f32 %v1128, %v1136
    %v1139 = vmul.f32 %v1137, %v1137
    %v1140 = vmul.f32 %v1138, %v1138
    %v1141 = vsel %vm120, %v1139, 0.0
    %1142 = vadd.xlane.f32.xlu0 %v1141
    %v1143 = vpop.xlane.xlu0 %1142
    %v1144 = vsel %vm120, %v1140, 0.0
    %1145 = vadd.xlane.f32.xlu0 %v1144
    %v1146 = vpop.xlane.xlu0 %1145
    %v1147 = vadd.f32 %v1143, %v1146
    %v1148 = vmul.f32 %v1147, 0.03125
    %v1149 = vadd.f32 %v1148, 1e-05
    %v1150 = vrsqrt.pop %v1149
    %s1151 = scalar_lea.vmem %s1, 400
    %v1152 = vld [vmem:[%s1151] sm:$0xff]
    %v1153 = vmul.f32 %v1150, %v1152
    %s1154 = scalar_lea.vmem %s1, 408
    %v1155 = vld [vmem:[%s1154] sm:$0xff]
    %s1156 = scalar_lea.vmem %s1, 416
    %v1157 = vld [vmem:[%s1156] sm:$0xff]
    %v1158 = vlaneseq
    %v1159 = vshrl.u32 %v1158, 7
    %v1160 = vsub.s32 0, %v1159
    %v1161 = vrot.slane %v1155, %v1160
    %v1162 = vmul.f32 %v1157, %v1161
    %v1163 = vlaneseq
    %v1164 = vshrl.u32 %v1163, 7
    %v1165 = vsub.s32 0, %v1164
    %v1166 = vrot.slane %v1153, %v1165
    %v1167 = vmul.f32 %v1157, %v1166
    %v1168 = vlaneseq
    %v1169 = vshrl.u32 %v1168, 7
    %v1170 = vsub.s32 0, %v1169
    %v1171 = vrot.slane %v1137, %v1170
    %v1172 = vlaneseq
    %v1173 = vshrl.u32 %v1172, 7
    %v1174 = vsub.s32 0, %v1173
    %v1175 = vrot.slane %v1138, %v1174
    %1177 = vset.pattern.permute.xlu0 0
    %1178 = vperm.xlu0 %1177, %v1167
    %v1179 = vpop.permute.xlu0 %1178
    %v1181 = vmul.f32 %v1171, %v1179
    %v1182 = vmul.f32 %v1175, %v1179
    %s1183 = scalar_lea.vmem %s1, 424
    %v1184 = vld [vmem:[%s1183] sm:$0xff]
    %v1185 = vlaneseq
    %v1186 = vshrl.u32 %v1185, 7
    %v1187 = vsub.s32 1, %v1186
    %v1188 = vrot.slane %v1155, %v1187
    %v1189 = vmul.f32 %v1184, %v1188
    %v1190 = vadd.f32 %v1162, %v1189
    %v1191 = vlaneseq
    %v1192 = vshrl.u32 %v1191, 7
    %v1193 = vsub.s32 1, %v1192
    %v1194 = vrot.slane %v1153, %v1193
    %v1195 = vmul.f32 %v1184, %v1194
    %v1196 = vlaneseq
    %v1197 = vshrl.u32 %v1196, 7
    %v1198 = vsub.s32 1, %v1197
    %v1199 = vrot.slane %v1137, %v1198
    %v1200 = vlaneseq
    %v1201 = vshrl.u32 %v1200, 7
    %v1202 = vsub.s32 1, %v1201
    %v1203 = vrot.slane %v1138, %v1202
    %1205 = vset.pattern.permute.xlu0 0
    %1206 = vperm.xlu0 %1205, %v1195
    %v1207 = vpop.permute.xlu0 %1206
    %v1209 = vmul.f32 %v1199, %v1207
    %v1210 = vmul.f32 %v1203, %v1207
    %v1211 = vadd.f32 %v1181, %v1209
    %v1212 = vadd.f32 %v1182, %v1210
    %s1213 = scalar_lea.vmem %s1, 432
    %v1214 = vld [vmem:[%s1213] sm:$0xff]
    %v1215 = vlaneseq
    %v1216 = vshrl.u32 %v1215, 7
    %v1217 = vsub.s32 2, %v1216
    %v1218 = vrot.slane %v1155, %v1217
    %v1219 = vmul.f32 %v1214, %v1218
    %v1220 = vadd.f32 %v1190, %v1219
    %v1221 = vlaneseq
    %v1222 = vshrl.u32 %v1221, 7
    %v1223 = vsub.s32 2, %v1222
    %v1224 = vrot.slane %v1153, %v1223
    %v1225 = vmul.f32 %v1214, %v1224
    %v1226 = vlaneseq
    %v1227 = vshrl.u32 %v1226, 7
    %v1228 = vsub.s32 2, %v1227
    %v1229 = vrot.slane %v1137, %v1228
    %v1230 = vlaneseq
    %v1231 = vshrl.u32 %v1230, 7
    %v1232 = vsub.s32 2, %v1231
    %v1233 = vrot.slane %v1138, %v1232
    %1235 = vset.pattern.permute.xlu0 0
    %1236 = vperm.xlu0 %1235, %v1225
    %v1237 = vpop.permute.xlu0 %1236
    %v1239 = vmul.f32 %v1229, %v1237
    %v1240 = vmul.f32 %v1233, %v1237
    %v1241 = vadd.f32 %v1211, %v1239
    %v1242 = vadd.f32 %v1212, %v1240
    %s1243 = scalar_lea.vmem %s1, 440
    %v1244 = vld [vmem:[%s1243] sm:$0xff]
    %v1245 = vlaneseq
    %v1246 = vshrl.u32 %v1245, 7
    %v1247 = vsub.s32 3, %v1246
    %v1248 = vrot.slane %v1155, %v1247
    %v1249 = vmul.f32 %v1244, %v1248
    %v1250 = vadd.f32 %v1220, %v1249
    %v1251 = vlaneseq
    %v1252 = vshrl.u32 %v1251, 7
    %v1253 = vsub.s32 3, %v1252
    %v1254 = vrot.slane %v1153, %v1253
    %v1255 = vmul.f32 %v1244, %v1254
    %v1256 = vlaneseq
    %v1257 = vshrl.u32 %v1256, 7
    %v1258 = vsub.s32 3, %v1257
    %v1259 = vrot.slane %v1137, %v1258
    %v1260 = vlaneseq
    %v1261 = vshrl.u32 %v1260, 7
    %v1262 = vsub.s32 3, %v1261
    %v1263 = vrot.slane %v1138, %v1262
    %1265 = vset.pattern.permute.xlu0 0
    %1266 = vperm.xlu0 %1265, %v1255
    %v1267 = vpop.permute.xlu0 %1266
    %v1269 = vmul.f32 %v1259, %v1267
    %v1270 = vmul.f32 %v1263, %v1267
    %v1271 = vadd.f32 %v1241, %v1269
    %v1272 = vadd.f32 %v1242, %v1270
    %s1273 = scalar_lea.vmem %s1, 448
    %v1274 = vld [vmem:[%s1273] sm:$0xff]
    %v1275 = vlaneseq
    %v1276 = vshrl.u32 %v1275, 7
    %v1277 = vsub.s32 4, %v1276
    %v1278 = vrot.slane %v1155, %v1277
    %v1279 = vmul.f32 %v1274, %v1278
    %v1280 = vadd.f32 %v1250, %v1279
    %v1281 = vlaneseq
    %v1282 = vshrl.u32 %v1281, 7
    %v1283 = vsub.s32 4, %v1282
    %v1284 = vrot.slane %v1153, %v1283
    %v1285 = vmul.f32 %v1274, %v1284
    %v1286 = vlaneseq
    %v1287 = vshrl.u32 %v1286, 7
    %v1288 = vsub.s32 4, %v1287
    %v1289 = vrot.slane %v1137, %v1288
    %v1290 = vlaneseq
    %v1291 = vshrl.u32 %v1290, 7
    %v1292 = vsub.s32 4, %v1291
    %v1293 = vrot.slane %v1138, %v1292
    %1295 = vset.pattern.permute.xlu0 0
    %1296 = vperm.xlu0 %1295, %v1285
    %v1297 = vpop.permute.xlu0 %1296
    %v1299 = vmul.f32 %v1289, %v1297
    %v1300 = vmul.f32 %v1293, %v1297
    %v1301 = vadd.f32 %v1271, %v1299
    %v1302 = vadd.f32 %v1272, %v1300
    %s1303 = scalar_lea.vmem %s1, 456
    %v1304 = vld [vmem:[%s1303] sm:$0xff]
    %v1305 = vlaneseq
    %v1306 = vshrl.u32 %v1305, 7
    %v1307 = vsub.s32 5, %v1306
    %v1308 = vrot.slane %v1155, %v1307
    %v1309 = vmul.f32 %v1304, %v1308
    %v1310 = vadd.f32 %v1280, %v1309
    %v1311 = vlaneseq
    %v1312 = vshrl.u32 %v1311, 7
    %v1313 = vsub.s32 5, %v1312
    %v1314 = vrot.slane %v1153, %v1313
    %v1315 = vmul.f32 %v1304, %v1314
    %v1316 = vlaneseq
    %v1317 = vshrl.u32 %v1316, 7
    %v1318 = vsub.s32 5, %v1317
    %v1319 = vrot.slane %v1137, %v1318
    %v1320 = vlaneseq
    %v1321 = vshrl.u32 %v1320, 7
    %v1322 = vsub.s32 5, %v1321
    %v1323 = vrot.slane %v1138, %v1322
    %1325 = vset.pattern.permute.xlu0 0
    %1326 = vperm.xlu0 %1325, %v1315
    %v1327 = vpop.permute.xlu0 %1326
    %v1329 = vmul.f32 %v1319, %v1327
    %v1330 = vmul.f32 %v1323, %v1327
    %v1331 = vadd.f32 %v1301, %v1329
    %v1332 = vadd.f32 %v1302, %v1330
    %s1333 = scalar_lea.vmem %s1, 464
    %v1334 = vld [vmem:[%s1333] sm:$0xff]
    %v1335 = vlaneseq
    %v1336 = vshrl.u32 %v1335, 7
    %v1337 = vsub.s32 6, %v1336
    %v1338 = vrot.slane %v1155, %v1337
    %v1339 = vmul.f32 %v1334, %v1338
    %v1340 = vadd.f32 %v1310, %v1339
    %v1341 = vlaneseq
    %v1342 = vshrl.u32 %v1341, 7
    %v1343 = vsub.s32 6, %v1342
    %v1344 = vrot.slane %v1153, %v1343
    %v1345 = vmul.f32 %v1334, %v1344
    %v1346 = vlaneseq
    %v1347 = vshrl.u32 %v1346, 7
    %v1348 = vsub.s32 6, %v1347
    %v1349 = vrot.slane %v1137, %v1348
    %v1350 = vlaneseq
    %v1351 = vshrl.u32 %v1350, 7
    %v1352 = vsub.s32 6, %v1351
    %v1353 = vrot.slane %v1138, %v1352
    %1355 = vset.pattern.permute.xlu0 0
    %1356 = vperm.xlu0 %1355, %v1345
    %v1357 = vpop.permute.xlu0 %1356
    %v1359 = vmul.f32 %v1349, %v1357
    %v1360 = vmul.f32 %v1353, %v1357
    %v1361 = vadd.f32 %v1331, %v1359
    %v1362 = vadd.f32 %v1332, %v1360
    %s1363 = scalar_lea.vmem %s1, 472
    %v1364 = vld [vmem:[%s1363] sm:$0xff]
    %v1365 = vlaneseq
    %v1366 = vshrl.u32 %v1365, 7
    %v1367 = vsub.s32 7, %v1366
    %v1368 = vrot.slane %v1155, %v1367
    %v1369 = vmul.f32 %v1364, %v1368
    %v1370 = vadd.f32 %v1340, %v1369
    %v1371 = vlaneseq
    %v1372 = vshrl.u32 %v1371, 7
    %v1373 = vsub.s32 7, %v1372
    %v1374 = vrot.slane %v1153, %v1373
    %v1375 = vmul.f32 %v1364, %v1374
    %v1376 = vlaneseq
    %v1377 = vshrl.u32 %v1376, 7
    %v1378 = vsub.s32 7, %v1377
    %v1379 = vrot.slane %v1137, %v1378
    %v1380 = vlaneseq
    %v1381 = vshrl.u32 %v1380, 7
    %v1382 = vsub.s32 7, %v1381
    %v1383 = vrot.slane %v1138, %v1382
    %1385 = vset.pattern.permute.xlu0 0
    %1386 = vperm.xlu0 %1385, %v1375
    %v1387 = vpop.permute.xlu0 %1386
    %v1389 = vmul.f32 %v1379, %v1387
    %v1390 = vmul.f32 %v1383, %v1387
    %v1391 = vadd.f32 %v1361, %v1389
    %v1392 = vadd.f32 %v1362, %v1390
    %1394 = vset.pattern.permute.xlu0 0
    %1395 = vperm.xlu0 %1394, %v1370
    %v1396 = vpop.permute.xlu0 %1395
    %v1398 = vadd.f32 %v1391, %v1396
    %v1399 = vadd.f32 %v1392, %v1396
    %v1400 = vadd.f32 %v956, %v1398
    %v1401 = vadd.f32 %v957, %v1399
    %s1402 = scalar_lea.vmem %s1, 512
    %v1403 = vld [vmem:[%s1402] sm:$0xff]
    %s1404 = scalar_lea.vmem %s1, 480
    %v1405 = vld [vmem:[%s1404] sm:$0xff]
    %v1406 = vlaneseq
    %v1407 = vshrl.u32 %v1406, 7
    %v1408 = vsub.s32 0, %v1407
    %v1409 = vrot.slane %v1400, %v1408
    %v1410 = vlaneseq
    %v1411 = vshrl.u32 %v1410, 7
    %v1412 = vsub.s32 0, %v1411
    %v1413 = vrot.slane %v1401, %v1412
    %1415 = vset.pattern.permute.xlu0 0
    %1416 = vperm.xlu0 %1415, %v1405
    %v1417 = vpop.permute.xlu0 %1416
    %v1419 = vmul.f32 %v1409, %v1417
    %v1420 = vmul.f32 %v1413, %v1417
    %1422 = vset.pattern.permute.xlu0 0
    %1423 = vperm.xlu0 %1422, %v1403
    %v1424 = vpop.permute.xlu0 %1423
    %v1426 = vadd.f32 %v1424, %v1419
    %v1427 = vadd.f32 %v1424, %v1420
    %s1428 = scalar_lea.vmem %s1, 488
    %v1429 = vld [vmem:[%s1428] sm:$0xff]
    %v1430 = vlaneseq
    %v1431 = vshrl.u32 %v1430, 7
    %v1432 = vsub.s32 1, %v1431
    %v1433 = vrot.slane %v1400, %v1432
    %v1434 = vlaneseq
    %v1435 = vshrl.u32 %v1434, 7
    %v1436 = vsub.s32 1, %v1435
    %v1437 = vrot.slane %v1401, %v1436
    %1439 = vset.pattern.permute.xlu0 0
    %1440 = vperm.xlu0 %1439, %v1429
    %v1441 = vpop.permute.xlu0 %1440
    %v1443 = vmul.f32 %v1433, %v1441
    %v1444 = vmul.f32 %v1437, %v1441
    %v1445 = vadd.f32 %v1426, %v1443
    %v1446 = vadd.f32 %v1427, %v1444
    %s1447 = scalar_lea.vmem %s1, 496
    %v1448 = vld [vmem:[%s1447] sm:$0xff]
    %v1449 = vlaneseq
    %v1450 = vshrl.u32 %v1449, 7
    %v1451 = vsub.s32 2, %v1450
    %v1452 = vrot.slane %v1400, %v1451
    %v1453 = vlaneseq
    %v1454 = vshrl.u32 %v1453, 7
    %v1455 = vsub.s32 2, %v1454
    %v1456 = vrot.slane %v1401, %v1455
    %1458 = vset.pattern.permute.xlu0 0
    %1459 = vperm.xlu0 %1458, %v1448
    %v1460 = vpop.permute.xlu0 %1459
    %v1462 = vmul.f32 %v1452, %v1460
    %v1463 = vmul.f32 %v1456, %v1460
    %v1464 = vadd.f32 %v1445, %v1462
    %v1465 = vadd.f32 %v1446, %v1463
    %s1466 = scalar_lea.vmem %s1, 504
    %v1467 = vld [vmem:[%s1466] sm:$0xff]
    %v1468 = vlaneseq
    %v1469 = vshrl.u32 %v1468, 7
    %v1470 = vsub.s32 3, %v1469
    %v1471 = vrot.slane %v1400, %v1470
    %v1472 = vlaneseq
    %v1473 = vshrl.u32 %v1472, 7
    %v1474 = vsub.s32 3, %v1473
    %v1475 = vrot.slane %v1401, %v1474
    %1477 = vset.pattern.permute.xlu0 0
    %1478 = vperm.xlu0 %1477, %v1467
    %v1479 = vpop.permute.xlu0 %1478
    %v1481 = vmul.f32 %v1471, %v1479
    %v1482 = vmul.f32 %v1475, %v1479
    %v1483 = vadd.f32 %v1464, %v1481
    %v1484 = vadd.f32 %v1465, %v1482
    %s1485 = sld [smem:[#allocation2 + $0x3]]
    %vm1486 = vcmp.gt.f32.partialorder %v1483, 0.0
    %vm1487 = vcmp.gt.f32.partialorder %v1484, 0.0
    %v1488 = vstv %s1485
    %v1489 = vmul.f32 %v1488, %v1483
    %v1490 = vmul.f32 %v1488, %v1484
    %v1491 = vsel %vm1486, %v1483, %v1489
    %v1492 = vsel %vm1487, %v1484, %v1490
    %v1493 = vsel %vm120, %v1491, 0.0
    %1494 = vadd.xlane.f32.xlu0 %v1493
    %v1495 = vpop.xlane.xlu0 %1494
    %v1496 = vsel %vm120, %v1492, 0.0
    %1497 = vadd.xlane.f32.xlu0 %v1496
    %v1498 = vpop.xlane.xlu0 %1497
    %v1499 = vadd.f32 %v1495, %v1498
    %v1500 = vmul.f32 %v1499, 0.03125
    %v1501 = vsub.f32 %v1491, %v1500
    %v1502 = vsub.f32 %v1492, %v1500
    %v1503 = vmul.f32 %v1501, %v1501
    %v1504 = vmul.f32 %v1502, %v1502
    %v1505 = vsel %vm120, %v1503, 0.0
    %1506 = vadd.xlane.f32.xlu0 %v1505
    %v1507 = vpop.xlane.xlu0 %1506
    %v1508 = vsel %vm120, %v1504, 0.0
    %1509 = vadd.xlane.f32.xlu0 %v1508
    %v1510 = vpop.xlane.xlu0 %1509
    %v1511 = vadd.f32 %v1507, %v1510
    %v1512 = vmul.f32 %v1511, 0.03125
    %v1513 = vadd.f32 %v1512, 1e-05
    %v1514 = vrsqrt.pop %v1513
    %s1515 = scalar_lea.vmem %s1, 520
    %v1516 = vld [vmem:[%s1515] sm:$0xff]
    %v1517 = vmul.f32 %v1514, %v1516
    %1519 = vset.pattern.permute.xlu0 0
    %1520 = vperm.xlu0 %1519, %v1517
    %v1521 = vpop.permute.xlu0 %1520
    %v1523 = vmul.f32 %v1501, %v1521
    %v1524 = vmul.f32 %v1502, %v1521
    %s1525 = scalar_lea.vmem %s1, 528
    %v1526 = vld [vmem:[%s1525] sm:$0xff]
    %1528 = vset.pattern.permute.xlu0 0
    %1529 = vperm.xlu0 %1528, %v1526
    %v1530 = vpop.permute.xlu0 %1529
    %v1532 = vadd.f32 %v1523, %v1530
    %v1533 = vadd.f32 %v1524, %v1530
    %s1534 = scalar_lea.vmem %s1, 552
    %v1535 = vld [vmem:[%s1534] sm:$0xff]
    %1537 = vset.pattern.permute.xlu0 0
    %1538 = vperm.xlu0 %1537, %v1535
    %v1539 = vpop.permute.xlu0 %1538
    %v1541 = vmul.f32 %v1532, %v1539
    %v1542 = vmul.f32 %v1533, %v1539
    %s1543 = sld [smem:[#allocation2 + $0x9]]
    %vm1544 = vcmp.gt.f32.partialorder %v1541, 0.0
    %vm1545 = vcmp.gt.f32.partialorder %v1542, 0.0
    %v1546 = vstv %s1543
    %v1547 = vmul.f32 %v1546, %v1541
    %v1548 = vmul.f32 %v1546, %v1542
    %v1549 = vsel %vm1544, %v1541, %v1547
    %v1550 = vsel %vm1545, %v1542, %v1548
    %v1551 = vsel %vm120, %v1549, 0.0
    %1552 = vadd.xlane.f32.xlu0 %v1551
    %v1553 = vpop.xlane.xlu0 %1552
    %v1554 = vsel %vm120, %v1550, 0.0
    %1555 = vadd.xlane.f32.xlu0 %v1554
    %v1556 = vpop.xlane.xlu0 %1555
    %v1557 = vadd.f32 %v1553, %v1556
    %v1558 = vmul.f32 %v1557, 0.03125
    %v1559 = vsub.f32 %v1549, %v1558
    %v1560 = vsub.f32 %v1550, %v1558
    %v1561 = vmul.f32 %v1559, %v1559
    %v1562 = vmul.f32 %v1560, %v1560
    %v1563 = vsel %vm120, %v1561, 0.0
    %1564 = vadd.xlane.f32.xlu0 %v1563
    %v1565 = vpop.xlane.xlu0 %1564
    %v1566 = vsel %vm120, %v1562, 0.0
    %1567 = vadd.xlane.f32.xlu0 %v1566
    %v1568 = vpop.xlane.xlu0 %1567
    %v1569 = vadd.f32 %v1565, %v1568
    %v1570 = vmul.f32 %v1569, 0.03125
    %v1571 = vadd.f32 %v1570, 1e-05
    %v1572 = vrsqrt.pop %v1571
    %s1573 = scalar_lea.vmem %s1, 560
    %v1574 = vld [vmem:[%s1573] sm:$0xff]
    %v1575 = vmul.f32 %v1572, %v1574
    %s1576 = scalar_lea.vmem %s1, 568
    %v1577 = vld [vmem:[%s1576] sm:$0xff]
    %s1578 = scalar_lea.vmem %s1, 576
    %v1579 = vld [vmem:[%s1578] sm:$0xff]
    %v1580 = vlaneseq
    %v1581 = vshrl.u32 %v1580, 7
    %v1582 = vsub.s32 0, %v1581
    %v1583 = vrot.slane %v1577, %v1582
    %v1584 = vmul.f32 %v1579, %v1583
    %v1585 = vlaneseq
    %v1586 = vshrl.u32 %v1585, 7
    %v1587 = vsub.s32 0, %v1586
    %v1588 = vrot.slane %v1575, %v1587
    %v1589 = vmul.f32 %v1579, %v1588
    %v1590 = vlaneseq
    %v1591 = vshrl.u32 %v1590, 7
    %v1592 = vsub.s32 0, %v1591
    %v1593 = vrot.slane %v1559, %v1592
    %v1594 = vlaneseq
    %v1595 = vshrl.u32 %v1594, 7
    %v1596 = vsub.s32 0, %v1595
    %v1597 = vrot.slane %v1560, %v1596
    %1599 = vset.pattern.permute.xlu0 0
    %1600 = vperm.xlu0 %1599, %v1589
    %v1601 = vpop.permute.xlu0 %1600
    %v1603 = vmul.f32 %v1593, %v1601
    %v1604 = vmul.f32 %v1597, %v1601
    %s1605 = scalar_lea.vmem %s1, 584
    %v1606 = vld [vmem:[%s1605] sm:$0xff]
    %v1607 = vlaneseq
    %v1608 = vshrl.u32 %v1607, 7
    %v1609 = vsub.s32 1, %v1608
    %v1610 = vrot.slane %v1577, %v1609
    %v1611 = vmul.f32 %v1606, %v1610
    %v1612 = vadd.f32 %v1584, %v1611
    %v1613 = vlaneseq
    %v1614 = vshrl.u32 %v1613, 7
    %v1615 = vsub.s32 1, %v1614
    %v1616 = vrot.slane %v1575, %v1615
    %v1617 = vmul.f32 %v1606, %v1616
    %v1618 = vlaneseq
    %v1619 = vshrl.u32 %v1618, 7
    %v1620 = vsub.s32 1, %v1619
    %v1621 = vrot.slane %v1559, %v1620
    %v1622 = vlaneseq
    %v1623 = vshrl.u32 %v1622, 7
    %v1624 = vsub.s32 1, %v1623
    %v1625 = vrot.slane %v1560, %v1624
    %1627 = vset.pattern.permute.xlu0 0
    %1628 = vperm.xlu0 %1627, %v1617
    %v1629 = vpop.permute.xlu0 %1628
    %v1631 = vmul.f32 %v1621, %v1629
    %v1632 = vmul.f32 %v1625, %v1629
    %v1633 = vadd.f32 %v1603, %v1631
    %v1634 = vadd.f32 %v1604, %v1632
    %s1635 = scalar_lea.vmem %s1, 592
    %v1636 = vld [vmem:[%s1635] sm:$0xff]
    %v1637 = vlaneseq
    %v1638 = vshrl.u32 %v1637, 7
    %v1639 = vsub.s32 2, %v1638
    %v1640 = vrot.slane %v1577, %v1639
    %v1641 = vmul.f32 %v1636, %v1640
    %v1642 = vadd.f32 %v1612, %v1641
    %v1643 = vlaneseq
    %v1644 = vshrl.u32 %v1643, 7
    %v1645 = vsub.s32 2, %v1644
    %v1646 = vrot.slane %v1575, %v1645
    %v1647 = vmul.f32 %v1636, %v1646
    %v1648 = vlaneseq
    %v1649 = vshrl.u32 %v1648, 7
    %v1650 = vsub.s32 2, %v1649
    %v1651 = vrot.slane %v1559, %v1650
    %v1652 = vlaneseq
    %v1653 = vshrl.u32 %v1652, 7
    %v1654 = vsub.s32 2, %v1653
    %v1655 = vrot.slane %v1560, %v1654
    %1657 = vset.pattern.permute.xlu0 0
    %1658 = vperm.xlu0 %1657, %v1647
    %v1659 = vpop.permute.xlu0 %1658
    %v1661 = vmul.f32 %v1651, %v1659
    %v1662 = vmul.f32 %v1655, %v1659
    %v1663 = vadd.f32 %v1633, %v1661
    %v1664 = vadd.f32 %v1634, %v1662
    %s1665 = scalar_lea.vmem %s1, 600
    %v1666 = vld [vmem:[%s1665] sm:$0xff]
    %v1667 = vlaneseq
    %v1668 = vshrl.u32 %v1667, 7
    %v1669 = vsub.s32 3, %v1668
    %v1670 = vrot.slane %v1577, %v1669
    %v1671 = vmul.f32 %v1666, %v1670
    %v1672 = vadd.f32 %v1642, %v1671
    %v1673 = vlaneseq
    %v1674 = vshrl.u32 %v1673, 7
    %v1675 = vsub.s32 3, %v1674
    %v1676 = vrot.slane %v1575, %v1675
    %v1677 = vmul.f32 %v1666, %v1676
    %v1678 = vlaneseq
    %v1679 = vshrl.u32 %v1678, 7
    %v1680 = vsub.s32 3, %v1679
    %v1681 = vrot.slane %v1559, %v1680
    %v1682 = vlaneseq
    %v1683 = vshrl.u32 %v1682, 7
    %v1684 = vsub.s32 3, %v1683
    %v1685 = vrot.slane %v1560, %v1684
    %1687 = vset.pattern.permute.xlu0 0
    %1688 = vperm.xlu0 %1687, %v1677
    %v1689 = vpop.permute.xlu0 %1688
    %v1691 = vmul.f32 %v1681, %v1689
    %v1692 = vmul.f32 %v1685, %v1689
    %v1693 = vadd.f32 %v1663, %v1691
    %v1694 = vadd.f32 %v1664, %v1692
    %s1695 = scalar_lea.vmem %s1, 608
    %v1696 = vld [vmem:[%s1695] sm:$0xff]
    %v1697 = vlaneseq
    %v1698 = vshrl.u32 %v1697, 7
    %v1699 = vsub.s32 4, %v1698
    %v1700 = vrot.slane %v1577, %v1699
    %v1701 = vmul.f32 %v1696, %v1700
    %v1702 = vadd.f32 %v1672, %v1701
    %v1703 = vlaneseq
    %v1704 = vshrl.u32 %v1703, 7
    %v1705 = vsub.s32 4, %v1704
    %v1706 = vrot.slane %v1575, %v1705
    %v1707 = vmul.f32 %v1696, %v1706
    %v1708 = vlaneseq
    %v1709 = vshrl.u32 %v1708, 7
    %v1710 = vsub.s32 4, %v1709
    %v1711 = vrot.slane %v1559, %v1710
    %v1712 = vlaneseq
    %v1713 = vshrl.u32 %v1712, 7
    %v1714 = vsub.s32 4, %v1713
    %v1715 = vrot.slane %v1560, %v1714
    %1717 = vset.pattern.permute.xlu0 0
    %1718 = vperm.xlu0 %1717, %v1707
    %v1719 = vpop.permute.xlu0 %1718
    %v1721 = vmul.f32 %v1711, %v1719
    %v1722 = vmul.f32 %v1715, %v1719
    %v1723 = vadd.f32 %v1693, %v1721
    %v1724 = vadd.f32 %v1694, %v1722
    %s1725 = scalar_lea.vmem %s1, 616
    %v1726 = vld [vmem:[%s1725] sm:$0xff]
    %v1727 = vlaneseq
    %v1728 = vshrl.u32 %v1727, 7
    %v1729 = vsub.s32 5, %v1728
    %v1730 = vrot.slane %v1577, %v1729
    %v1731 = vmul.f32 %v1726, %v1730
    %v1732 = vadd.f32 %v1702, %v1731
    %v1733 = vlaneseq
    %v1734 = vshrl.u32 %v1733, 7
    %v1735 = vsub.s32 5, %v1734
    %v1736 = vrot.slane %v1575, %v1735
    %v1737 = vmul.f32 %v1726, %v1736
    %v1738 = vlaneseq
    %v1739 = vshrl.u32 %v1738, 7
    %v1740 = vsub.s32 5, %v1739
    %v1741 = vrot.slane %v1559, %v1740
    %v1742 = vlaneseq
    %v1743 = vshrl.u32 %v1742, 7
    %v1744 = vsub.s32 5, %v1743
    %v1745 = vrot.slane %v1560, %v1744
    %1747 = vset.pattern.permute.xlu0 0
    %1748 = vperm.xlu0 %1747, %v1737
    %v1749 = vpop.permute.xlu0 %1748
    %v1751 = vmul.f32 %v1741, %v1749
    %v1752 = vmul.f32 %v1745, %v1749
    %v1753 = vadd.f32 %v1723, %v1751
    %v1754 = vadd.f32 %v1724, %v1752
    %s1755 = scalar_lea.vmem %s1, 624
    %v1756 = vld [vmem:[%s1755] sm:$0xff]
    %v1757 = vlaneseq
    %v1758 = vshrl.u32 %v1757, 7
    %v1759 = vsub.s32 6, %v1758
    %v1760 = vrot.slane %v1577, %v1759
    %v1761 = vmul.f32 %v1756, %v1760
    %v1762 = vadd.f32 %v1732, %v1761
    %v1763 = vlaneseq
    %v1764 = vshrl.u32 %v1763, 7
    %v1765 = vsub.s32 6, %v1764
    %v1766 = vrot.slane %v1575, %v1765
    %v1767 = vmul.f32 %v1756, %v1766
    %v1768 = vlaneseq
    %v1769 = vshrl.u32 %v1768, 7
    %v1770 = vsub.s32 6, %v1769
    %v1771 = vrot.slane %v1559, %v1770
    %v1772 = vlaneseq
    %v1773 = vshrl.u32 %v1772, 7
    %v1774 = vsub.s32 6, %v1773
    %v1775 = vrot.slane %v1560, %v1774
    %1777 = vset.pattern.permute.xlu0 0
    %1778 = vperm.xlu0 %1777, %v1767
    %v1779 = vpop.permute.xlu0 %1778
    %v1781 = vmul.f32 %v1771, %v1779
    %v1782 = vmul.f32 %v1775, %v1779
    %v1783 = vadd.f32 %v1753, %v1781
    %v1784 = vadd.f32 %v1754, %v1782
    %s1785 = scalar_lea.vmem %s1, 632
    %v1786 = vld [vmem:[%s1785] sm:$0xff]
    %v1787 = vlaneseq
    %v1788 = vshrl.u32 %v1787, 7
    %v1789 = vsub.s32 7, %v1788
    %v1790 = vrot.slane %v1577, %v1789
    %v1791 = vmul.f32 %v1786, %v1790
    %v1792 = vadd.f32 %v1762, %v1791
    %v1793 = vlaneseq
    %v1794 = vshrl.u32 %v1793, 7
    %v1795 = vsub.s32 7, %v1794
    %v1796 = vrot.slane %v1575, %v1795
    %v1797 = vmul.f32 %v1786, %v1796
    %v1798 = vlaneseq
    %v1799 = vshrl.u32 %v1798, 7
    %v1800 = vsub.s32 7, %v1799
    %v1801 = vrot.slane %v1559, %v1800
    %v1802 = vlaneseq
    %v1803 = vshrl.u32 %v1802, 7
    %v1804 = vsub.s32 7, %v1803
    %v1805 = vrot.slane %v1560, %v1804
    %1807 = vset.pattern.permute.xlu0 0
    %1808 = vperm.xlu0 %1807, %v1797
    %v1809 = vpop.permute.xlu0 %1808
    %v1811 = vmul.f32 %v1801, %v1809
    %v1812 = vmul.f32 %v1805, %v1809
    %v1813 = vadd.f32 %v1783, %v1811
    %v1814 = vadd.f32 %v1784, %v1812
    %1816 = vset.pattern.permute.xlu0 0
    %1817 = vperm.xlu0 %1816, %v1792
    %v1818 = vpop.permute.xlu0 %1817
    %v1820 = vadd.f32 %v1813, %v1818
    %v1821 = vadd.f32 %v1814, %v1818
    %v1822 = vadd.f32 %v1400, %v1820
    %v1823 = vadd.f32 %v1401, %v1821
    %s1824 = scalar_lea.vmem %s1, 672
    %v1825 = vld [vmem:[%s1824] sm:$0xff]
    %s1826 = scalar_lea.vmem %s1, 640
    %v1827 = vld [vmem:[%s1826] sm:$0xff]
    %v1828 = vlaneseq
    %v1829 = vshrl.u32 %v1828, 7
    %v1830 = vsub.s32 0, %v1829
    %v1831 = vrot.slane %v1822, %v1830
    %v1832 = vlaneseq
    %v1833 = vshrl.u32 %v1832, 7
    %v1834 = vsub.s32 0, %v1833
    %v1835 = vrot.slane %v1823, %v1834
    %1837 = vset.pattern.permute.xlu0 0
    %1838 = vperm.xlu0 %1837, %v1827
    %v1839 = vpop.permute.xlu0 %1838
    %v1841 = vmul.f32 %v1831, %v1839
    %v1842 = vmul.f32 %v1835, %v1839
    %1844 = vset.pattern.permute.xlu0 0
    %1845 = vperm.xlu0 %1844, %v1825
    %v1846 = vpop.permute.xlu0 %1845
    %v1848 = vadd.f32 %v1846, %v1841
    %v1849 = vadd.f32 %v1846, %v1842
    %s1850 = scalar_lea.vmem %s1, 648
    %v1851 = vld [vmem:[%s1850] sm:$0xff]
    %v1852 = vlaneseq
    %v1853 = vshrl.u32 %v1852, 7
    %v1854 = vsub.s32 1, %v1853
    %v1855 = vrot.slane %v1822, %v1854
    %v1856 = vlaneseq
    %v1857 = vshrl.u32 %v1856, 7
    %v1858 = vsub.s32 1, %v1857
    %v1859 = vrot.slane %v1823, %v1858
    %1861 = vset.pattern.permute.xlu0 0
    %1862 = vperm.xlu0 %1861, %v1851
    %v1863 = vpop.permute.xlu0 %1862
    %v1865 = vmul.f32 %v1855, %v1863
    %v1866 = vmul.f32 %v1859, %v1863
    %v1867 = vadd.f32 %v1848, %v1865
    %v1868 = vadd.f32 %v1849, %v1866
    %s1869 = scalar_lea.vmem %s1, 656
    %v1870 = vld [vmem:[%s1869] sm:$0xff]
    %v1871 = vlaneseq
    %v1872 = vshrl.u32 %v1871, 7
    %v1873 = vsub.s32 2, %v1872
    %v1874 = vrot.slane %v1822, %v1873
    %v1875 = vlaneseq
    %v1876 = vshrl.u32 %v1875, 7
    %v1877 = vsub.s32 2, %v1876
    %v1878 = vrot.slane %v1823, %v1877
    %1880 = vset.pattern.permute.xlu0 0
    %1881 = vperm.xlu0 %1880, %v1870
    %v1882 = vpop.permute.xlu0 %1881
    %v1884 = vmul.f32 %v1874, %v1882
    %v1885 = vmul.f32 %v1878, %v1882
    %v1886 = vadd.f32 %v1867, %v1884
    %v1887 = vadd.f32 %v1868, %v1885
    %s1888 = scalar_lea.vmem %s1, 664
    %v1889 = vld [vmem:[%s1888] sm:$0xff]
    %v1890 = vlaneseq
    %v1891 = vshrl.u32 %v1890, 7
    %v1892 = vsub.s32 3, %v1891
    %v1893 = vrot.slane %v1822, %v1892
    %v1894 = vlaneseq
    %v1895 = vshrl.u32 %v1894, 7
    %v1896 = vsub.s32 3, %v1895
    %v1897 = vrot.slane %v1823, %v1896
    %1899 = vset.pattern.permute.xlu0 0
    %1900 = vperm.xlu0 %1899, %v1889
    %v1901 = vpop.permute.xlu0 %1900
    %v1903 = vmul.f32 %v1893, %v1901
    %v1904 = vmul.f32 %v1897, %v1901
    %v1905 = vadd.f32 %v1886, %v1903
    %v1906 = vadd.f32 %v1887, %v1904
    %s1907 = sld [smem:[#allocation2 + $0x4]]
    %vm1908 = vcmp.gt.f32.partialorder %v1905, 0.0
    %vm1909 = vcmp.gt.f32.partialorder %v1906, 0.0
    %v1910 = vstv %s1907
    %v1911 = vmul.f32 %v1910, %v1905
    %v1912 = vmul.f32 %v1910, %v1906
    %v1913 = vsel %vm1908, %v1905, %v1911
    %v1914 = vsel %vm1909, %v1906, %v1912
    %v1915 = vsel %vm120, %v1913, 0.0
    %1916 = vadd.xlane.f32.xlu0 %v1915
    %v1917 = vpop.xlane.xlu0 %1916
    %v1918 = vsel %vm120, %v1914, 0.0
    %1919 = vadd.xlane.f32.xlu0 %v1918
    %v1920 = vpop.xlane.xlu0 %1919
    %v1921 = vadd.f32 %v1917, %v1920
    %v1922 = vmul.f32 %v1921, 0.03125
    %v1923 = vsub.f32 %v1913, %v1922
    %v1924 = vsub.f32 %v1914, %v1922
    %v1925 = vmul.f32 %v1923, %v1923
    %v1926 = vmul.f32 %v1924, %v1924
    %v1927 = vsel %vm120, %v1925, 0.0
    %1928 = vadd.xlane.f32.xlu0 %v1927
    %v1929 = vpop.xlane.xlu0 %1928
    %v1930 = vsel %vm120, %v1926, 0.0
    %1931 = vadd.xlane.f32.xlu0 %v1930
    %v1932 = vpop.xlane.xlu0 %1931
    %v1933 = vadd.f32 %v1929, %v1932
    %v1934 = vmul.f32 %v1933, 0.03125
    %v1935 = vadd.f32 %v1934, 1e-05
    %v1936 = vrsqrt.pop %v1935
    %s1937 = scalar_lea.vmem %s1, 680
    %v1938 = vld [vmem:[%s1937] sm:$0xff]
    %v1939 = vmul.f32 %v1936, %v1938
    %1941 = vset.pattern.permute.xlu0 0
    %1942 = vperm.xlu0 %1941, %v1939
    %v1943 = vpop.permute.xlu0 %1942
    %v1945 = vmul.f32 %v1923, %v1943
    %v1946 = vmul.f32 %v1924, %v1943
    %s1947 = scalar_lea.vmem %s1, 688
    %v1948 = vld [vmem:[%s1947] sm:$0xff]
    %1950 = vset.pattern.permute.xlu0 0
    %1951 = vperm.xlu0 %1950, %v1948
    %v1952 = vpop.permute.xlu0 %1951
    %v1954 = vadd.f32 %v1945, %v1952
    %v1955 = vadd.f32 %v1946, %v1952
    %s1956 = scalar_lea.vmem %s1, 712
    %v1957 = vld [vmem:[%s1956] sm:$0xff]
    %1959 = vset.pattern.permute.xlu0 0
    %1960 = vperm.xlu0 %1959, %v1957
    %v1961 = vpop.permute.xlu0 %1960
    %v1963 = vmul.f32 %v1954, %v1961
    %v1964 = vmul.f32 %v1955, %v1961
    %s1965 = sld [smem:[#allocation2 + $0xa]]
    %vm1966 = vcmp.gt.f32.partialorder %v1963, 0.0
    %vm1967 = vcmp.gt.f32.partialorder %v1964, 0.0
    %v1968 = vstv %s1965
    %v1969 = vmul.f32 %v1968, %v1963
    %v1970 = vmul.f32 %v1968, %v1964
    %v1971 = vsel %vm1966, %v1963, %v1969
    %v1972 = vsel %vm1967, %v1964, %v1970
    %v1973 = vsel %vm120, %v1971, 0.0
    %1974 = vadd.xlane.f32.xlu0 %v1973
    %v1975 = vpop.xlane.xlu0 %1974
    %v1976 = vsel %vm120, %v1972, 0.0
    %1977 = vadd.xlane.f32.xlu0 %v1976
    %v1978 = vpop.xlane.xlu0 %1977
    %v1979 = vadd.f32 %v1975, %v1978
    %v1980 = vmul.f32 %v1979, 0.03125
    %v1981 = vsub.f32 %v1971, %v1980
    %v1982 = vsub.f32 %v1972, %v1980
    %v1983 = vmul.f32 %v1981, %v1981
    %v1984 = vmul.f32 %v1982, %v1982
    %v1985 = vsel %vm120, %v1983, 0.0
    %1986 = vadd.xlane.f32.xlu0 %v1985
    %v1987 = vpop.xlane.xlu0 %1986
    %v1988 = vsel %vm120, %v1984, 0.0
    %1989 = vadd.xlane.f32.xlu0 %v1988
    %v1990 = vpop.xlane.xlu0 %1989
    %v1991 = vadd.f32 %v1987, %v1990
    %v1992 = vmul.f32 %v1991, 0.03125
    %v1993 = vadd.f32 %v1992, 1e-05
    %v1994 = vrsqrt.pop %v1993
    %s1995 = scalar_lea.vmem %s1, 720
    %v1996 = vld [vmem:[%s1995] sm:$0xff]
    %v1997 = vmul.f32 %v1994, %v1996
    %s1998 = scalar_lea.vmem %s1, 728
    %v1999 = vld [vmem:[%s1998] sm:$0xff]
    %s2000 = scalar_lea.vmem %s1, 736
    %v2001 = vld [vmem:[%s2000] sm:$0xff]
    %v2002 = vlaneseq
    %v2003 = vshrl.u32 %v2002, 7
    %v2004 = vsub.s32 0, %v2003
    %v2005 = vrot.slane %v1999, %v2004
    %v2006 = vmul.f32 %v2001, %v2005
    %v2007 = vlaneseq
    %v2008 = vshrl.u32 %v2007, 7
    %v2009 = vsub.s32 0, %v2008
    %v2010 = vrot.slane %v1997, %v2009
    %v2011 = vmul.f32 %v2001, %v2010
    %v2012 = vlaneseq
    %v2013 = vshrl.u32 %v2012, 7
    %v2014 = vsub.s32 0, %v2013
    %v2015 = vrot.slane %v1981, %v2014
    %v2016 = vlaneseq
    %v2017 = vshrl.u32 %v2016, 7
    %v2018 = vsub.s32 0, %v2017
    %v2019 = vrot.slane %v1982, %v2018
    %2021 = vset.pattern.permute.xlu0 0
    %2022 = vperm.xlu0 %2021, %v2011
    %v2023 = vpop.permute.xlu0 %2022
    %v2025 = vmul.f32 %v2015, %v2023
    %v2026 = vmul.f32 %v2019, %v2023
    %s2027 = scalar_lea.vmem %s1, 744
    %v2028 = vld [vmem:[%s2027] sm:$0xff]
    %v2029 = vlaneseq
    %v2030 = vshrl.u32 %v2029, 7
    %v2031 = vsub.s32 1, %v2030
    %v2032 = vrot.slane %v1999, %v2031
    %v2033 = vmul.f32 %v2028, %v2032
    %v2034 = vadd.f32 %v2006, %v2033
    %v2035 = vlaneseq
    %v2036 = vshrl.u32 %v2035, 7
    %v2037 = vsub.s32 1, %v2036
    %v2038 = vrot.slane %v1997, %v2037
    %v2039 = vmul.f32 %v2028, %v2038
    %v2040 = vlaneseq
    %v2041 = vshrl.u32 %v2040, 7
    %v2042 = vsub.s32 1, %v2041
    %v2043 = vrot.slane %v1981, %v2042
    %v2044 = vlaneseq
    %v2045 = vshrl.u32 %v2044, 7
    %v2046 = vsub.s32 1, %v2045
    %v2047 = vrot.slane %v1982, %v2046
    %2049 = vset.pattern.permute.xlu0 0
    %2050 = vperm.xlu0 %2049, %v2039
    %v2051 = vpop.permute.xlu0 %2050
    %v2053 = vmul.f32 %v2043, %v2051
    %v2054 = vmul.f32 %v2047, %v2051
    %v2055 = vadd.f32 %v2025, %v2053
    %v2056 = vadd.f32 %v2026, %v2054
    %s2057 = scalar_lea.vmem %s1, 752
    %v2058 = vld [vmem:[%s2057] sm:$0xff]
    %v2059 = vlaneseq
    %v2060 = vshrl.u32 %v2059, 7
    %v2061 = vsub.s32 2, %v2060
    %v2062 = vrot.slane %v1999, %v2061
    %v2063 = vmul.f32 %v2058, %v2062
    %v2064 = vadd.f32 %v2034, %v2063
    %v2065 = vlaneseq
    %v2066 = vshrl.u32 %v2065, 7
    %v2067 = vsub.s32 2, %v2066
    %v2068 = vrot.slane %v1997, %v2067
    %v2069 = vmul.f32 %v2058, %v2068
    %v2070 = vlaneseq
    %v2071 = vshrl.u32 %v2070, 7
    %v2072 = vsub.s32 2, %v2071
    %v2073 = vrot.slane %v1981, %v2072
    %v2074 = vlaneseq
    %v2075 = vshrl.u32 %v2074, 7
    %v2076 = vsub.s32 2, %v2075
    %v2077 = vrot.slane %v1982, %v2076
    %2079 = vset.pattern.permute.xlu0 0
    %2080 = vperm.xlu0 %2079, %v2069
    %v2081 = vpop.permute.xlu0 %2080
    %v2083 = vmul.f32 %v2073, %v2081
    %v2084 = vmul.f32 %v2077, %v2081
    %v2085 = vadd.f32 %v2055, %v2083
    %v2086 = vadd.f32 %v2056, %v2084
    %s2087 = scalar_lea.vmem %s1, 760
    %v2088 = vld [vmem:[%s2087] sm:$0xff]
    %v2089 = vlaneseq
    %v2090 = vshrl.u32 %v2089, 7
    %v2091 = vsub.s32 3, %v2090
    %v2092 = vrot.slane %v1999, %v2091
    %v2093 = vmul.f32 %v2088, %v2092
    %v2094 = vadd.f32 %v2064, %v2093
    %v2095 = vlaneseq
    %v2096 = vshrl.u32 %v2095, 7
    %v2097 = vsub.s32 3, %v2096
    %v2098 = vrot.slane %v1997, %v2097
    %v2099 = vmul.f32 %v2088, %v2098
    %v2100 = vlaneseq
    %v2101 = vshrl.u32 %v2100, 7
    %v2102 = vsub.s32 3, %v2101
    %v2103 = vrot.slane %v1981, %v2102
    %v2104 = vlaneseq
    %v2105 = vshrl.u32 %v2104, 7
    %v2106 = vsub.s32 3, %v2105
    %v2107 = vrot.slane %v1982, %v2106
    %2109 = vset.pattern.permute.xlu0 0
    %2110 = vperm.xlu0 %2109, %v2099
    %v2111 = vpop.permute.xlu0 %2110
    %v2113 = vmul.f32 %v2103, %v2111
    %v2114 = vmul.f32 %v2107, %v2111
    %v2115 = vadd.f32 %v2085, %v2113
    %v2116 = vadd.f32 %v2086, %v2114
    %s2117 = scalar_lea.vmem %s1, 768
    %v2118 = vld [vmem:[%s2117] sm:$0xff]
    %v2119 = vlaneseq
    %v2120 = vshrl.u32 %v2119, 7
    %v2121 = vsub.s32 4, %v2120
    %v2122 = vrot.slane %v1999, %v2121
    %v2123 = vmul.f32 %v2118, %v2122
    %v2124 = vadd.f32 %v2094, %v2123
    %v2125 = vlaneseq
    %v2126 = vshrl.u32 %v2125, 7
    %v2127 = vsub.s32 4, %v2126
    %v2128 = vrot.slane %v1997, %v2127
    %v2129 = vmul.f32 %v2118, %v2128
    %v2130 = vlaneseq
    %v2131 = vshrl.u32 %v2130, 7
    %v2132 = vsub.s32 4, %v2131
    %v2133 = vrot.slane %v1981, %v2132
    %v2134 = vlaneseq
    %v2135 = vshrl.u32 %v2134, 7
    %v2136 = vsub.s32 4, %v2135
    %v2137 = vrot.slane %v1982, %v2136
    %2139 = vset.pattern.permute.xlu0 0
    %2140 = vperm.xlu0 %2139, %v2129
    %v2141 = vpop.permute.xlu0 %2140
    %v2143 = vmul.f32 %v2133, %v2141
    %v2144 = vmul.f32 %v2137, %v2141
    %v2145 = vadd.f32 %v2115, %v2143
    %v2146 = vadd.f32 %v2116, %v2144
    %s2147 = scalar_lea.vmem %s1, 776
    %v2148 = vld [vmem:[%s2147] sm:$0xff]
    %v2149 = vlaneseq
    %v2150 = vshrl.u32 %v2149, 7
    %v2151 = vsub.s32 5, %v2150
    %v2152 = vrot.slane %v1999, %v2151
    %v2153 = vmul.f32 %v2148, %v2152
    %v2154 = vadd.f32 %v2124, %v2153
    %v2155 = vlaneseq
    %v2156 = vshrl.u32 %v2155, 7
    %v2157 = vsub.s32 5, %v2156
    %v2158 = vrot.slane %v1997, %v2157
    %v2159 = vmul.f32 %v2148, %v2158
    %v2160 = vlaneseq
    %v2161 = vshrl.u32 %v2160, 7
    %v2162 = vsub.s32 5, %v2161
    %v2163 = vrot.slane %v1981, %v2162
    %v2164 = vlaneseq
    %v2165 = vshrl.u32 %v2164, 7
    %v2166 = vsub.s32 5, %v2165
    %v2167 = vrot.slane %v1982, %v2166
    %2169 = vset.pattern.permute.xlu0 0
    %2170 = vperm.xlu0 %2169, %v2159
    %v2171 = vpop.permute.xlu0 %2170
    %v2173 = vmul.f32 %v2163, %v2171
    %v2174 = vmul.f32 %v2167, %v2171
    %v2175 = vadd.f32 %v2145, %v2173
    %v2176 = vadd.f32 %v2146, %v2174
    %s2177 = scalar_lea.vmem %s1, 784
    %v2178 = vld [vmem:[%s2177] sm:$0xff]
    %v2179 = vlaneseq
    %v2180 = vshrl.u32 %v2179, 7
    %v2181 = vsub.s32 6, %v2180
    %v2182 = vrot.slane %v1999, %v2181
    %v2183 = vmul.f32 %v2178, %v2182
    %v2184 = vadd.f32 %v2154, %v2183
    %v2185 = vlaneseq
    %v2186 = vshrl.u32 %v2185, 7
    %v2187 = vsub.s32 6, %v2186
    %v2188 = vrot.slane %v1997, %v2187
    %v2189 = vmul.f32 %v2178, %v2188
    %v2190 = vlaneseq
    %v2191 = vshrl.u32 %v2190, 7
    %v2192 = vsub.s32 6, %v2191
    %v2193 = vrot.slane %v1981, %v2192
    %v2194 = vlaneseq
    %v2195 = vshrl.u32 %v2194, 7
    %v2196 = vsub.s32 6, %v2195
    %v2197 = vrot.slane %v1982, %v2196
    %2199 = vset.pattern.permute.xlu0 0
    %2200 = vperm.xlu0 %2199, %v2189
    %v2201 = vpop.permute.xlu0 %2200
    %v2203 = vmul.f32 %v2193, %v2201
    %v2204 = vmul.f32 %v2197, %v2201
    %v2205 = vadd.f32 %v2175, %v2203
    %v2206 = vadd.f32 %v2176, %v2204
    %s2207 = scalar_lea.vmem %s1, 792
    %v2208 = vld [vmem:[%s2207] sm:$0xff]
    %v2209 = vlaneseq
    %v2210 = vshrl.u32 %v2209, 7
    %v2211 = vsub.s32 7, %v2210
    %v2212 = vrot.slane %v1999, %v2211
    %v2213 = vmul.f32 %v2208, %v2212
    %v2214 = vadd.f32 %v2184, %v2213
    %v2215 = vlaneseq
    %v2216 = vshrl.u32 %v2215, 7
    %v2217 = vsub.s32 7, %v2216
    %v2218 = vrot.slane %v1997, %v2217
    %v2219 = vmul.f32 %v2208, %v2218
    %v2220 = vlaneseq
    %v2221 = vshrl.u32 %v2220, 7
    %v2222 = vsub.s32 7, %v2221
    %v2223 = vrot.slane %v1981, %v2222
    %v2224 = vlaneseq
    %v2225 = vshrl.u32 %v2224, 7
    %v2226 = vsub.s32 7, %v2225
    %v2227 = vrot.slane %v1982, %v2226
    %2229 = vset.pattern.permute.xlu0 0
    %2230 = vperm.xlu0 %2229, %v2219
    %v2231 = vpop.permute.xlu0 %2230
    %v2233 = vmul.f32 %v2223, %v2231
    %v2234 = vmul.f32 %v2227, %v2231
    %v2235 = vadd.f32 %v2205, %v2233
    %v2236 = vadd.f32 %v2206, %v2234
    %2238 = vset.pattern.permute.xlu0 0
    %2239 = vperm.xlu0 %2238, %v2214
    %v2240 = vpop.permute.xlu0 %2239
    %v2242 = vadd.f32 %v2235, %v2240
    %v2243 = vadd.f32 %v2236, %v2240
    %v2244 = vadd.f32 %v1822, %v2242
    %v2245 = vadd.f32 %v1823, %v2243
    %s2246 = scalar_lea.vmem %s1, 832
    %v2247 = vld [vmem:[%s2246] sm:$0xff]
    %s2248 = scalar_lea.vmem %s1, 800
    %v2249 = vld [vmem:[%s2248] sm:$0xff]
    %v2250 = vlaneseq
    %v2251 = vshrl.u32 %v2250, 7
    %v2252 = vsub.s32 0, %v2251
    %v2253 = vrot.slane %v2244, %v2252
    %v2254 = vlaneseq
    %v2255 = vshrl.u32 %v2254, 7
    %v2256 = vsub.s32 0, %v2255
    %v2257 = vrot.slane %v2245, %v2256
    %2259 = vset.pattern.permute.xlu0 0
    %2260 = vperm.xlu0 %2259, %v2249
    %v2261 = vpop.permute.xlu0 %2260
    %v2263 = vmul.f32 %v2253, %v2261
    %v2264 = vmul.f32 %v2257, %v2261
    %2266 = vset.pattern.permute.xlu0 0
    %2267 = vperm.xlu0 %2266, %v2247
    %v2268 = vpop.permute.xlu0 %2267
    %v2270 = vadd.f32 %v2268, %v2263
    %v2271 = vadd.f32 %v2268, %v2264
    %s2272 = scalar_lea.vmem %s1, 808
    %v2273 = vld [vmem:[%s2272] sm:$0xff]
    %v2274 = vlaneseq
    %v2275 = vshrl.u32 %v2274, 7
    %v2276 = vsub.s32 1, %v2275
    %v2277 = vrot.slane %v2244, %v2276
    %v2278 = vlaneseq
    %v2279 = vshrl.u32 %v2278, 7
    %v2280 = vsub.s32 1, %v2279
    %v2281 = vrot.slane %v2245, %v2280
    %2283 = vset.pattern.permute.xlu0 0
    %2284 = vperm.xlu0 %2283, %v2273
    %v2285 = vpop.permute.xlu0 %2284
    %v2287 = vmul.f32 %v2277, %v2285
    %v2288 = vmul.f32 %v2281, %v2285
    %v2289 = vadd.f32 %v2270, %v2287
    %v2290 = vadd.f32 %v2271, %v2288
    %s2291 = scalar_lea.vmem %s1, 816
    %v2292 = vld [vmem:[%s2291] sm:$0xff]
    %v2293 = vlaneseq
    %v2294 = vshrl.u32 %v2293, 7
    %v2295 = vsub.s32 2, %v2294
    %v2296 = vrot.slane %v2244, %v2295
    %v2297 = vlaneseq
    %v2298 = vshrl.u32 %v2297, 7
    %v2299 = vsub.s32 2, %v2298
    %v2300 = vrot.slane %v2245, %v2299
    %2302 = vset.pattern.permute.xlu0 0
    %2303 = vperm.xlu0 %2302, %v2292
    %v2304 = vpop.permute.xlu0 %2303
    %v2306 = vmul.f32 %v2296, %v2304
    %v2307 = vmul.f32 %v2300, %v2304
    %v2308 = vadd.f32 %v2289, %v2306
    %v2309 = vadd.f32 %v2290, %v2307
    %s2310 = scalar_lea.vmem %s1, 824
    %v2311 = vld [vmem:[%s2310] sm:$0xff]
    %v2312 = vlaneseq
    %v2313 = vshrl.u32 %v2312, 7
    %v2314 = vsub.s32 3, %v2313
    %v2315 = vrot.slane %v2244, %v2314
    %v2316 = vlaneseq
    %v2317 = vshrl.u32 %v2316, 7
    %v2318 = vsub.s32 3, %v2317
    %v2319 = vrot.slane %v2245, %v2318
    %2321 = vset.pattern.permute.xlu0 0
    %2322 = vperm.xlu0 %2321, %v2311
    %v2323 = vpop.permute.xlu0 %2322
    %v2325 = vmul.f32 %v2315, %v2323
    %v2326 = vmul.f32 %v2319, %v2323
    %v2327 = vadd.f32 %v2308, %v2325
    %v2328 = vadd.f32 %v2309, %v2326
    %s2329 = sld [smem:[#allocation2 + $0x5]]
    %vm2330 = vcmp.gt.f32.partialorder %v2327, 0.0
    %vm2331 = vcmp.gt.f32.partialorder %v2328, 0.0
    %v2332 = vstv %s2329
    %v2333 = vmul.f32 %v2332, %v2327
    %v2334 = vmul.f32 %v2332, %v2328
    %v2335 = vsel %vm2330, %v2327, %v2333
    %v2336 = vsel %vm2331, %v2328, %v2334
    %v2337 = vsel %vm120, %v2335, 0.0
    %2338 = vadd.xlane.f32.xlu0 %v2337
    %v2339 = vpop.xlane.xlu0 %2338
    %v2340 = vsel %vm120, %v2336, 0.0
    %2341 = vadd.xlane.f32.xlu0 %v2340
    %v2342 = vpop.xlane.xlu0 %2341
    %v2343 = vadd.f32 %v2339, %v2342
    %v2344 = vmul.f32 %v2343, 0.03125
    %v2345 = vsub.f32 %v2335, %v2344
    %v2346 = vsub.f32 %v2336, %v2344
    %v2347 = vmul.f32 %v2345, %v2345
    %v2348 = vmul.f32 %v2346, %v2346
    %v2349 = vsel %vm120, %v2347, 0.0
    %2350 = vadd.xlane.f32.xlu0 %v2349
    %v2351 = vpop.xlane.xlu0 %2350
    %v2352 = vsel %vm120, %v2348, 0.0
    %2353 = vadd.xlane.f32.xlu0 %v2352
    %v2354 = vpop.xlane.xlu0 %2353
    %v2355 = vadd.f32 %v2351, %v2354
    %v2356 = vmul.f32 %v2355, 0.03125
    %v2357 = vadd.f32 %v2356, 1e-05
    %v2358 = vrsqrt.pop %v2357
    %s2359 = scalar_lea.vmem %s1, 840
    %v2360 = vld [vmem:[%s2359] sm:$0xff]
    %v2361 = vmul.f32 %v2358, %v2360
    %2363 = vset.pattern.permute.xlu0 0
    %2364 = vperm.xlu0 %2363, %v2361
    %v2365 = vpop.permute.xlu0 %2364
    %v2367 = vmul.f32 %v2345, %v2365
    %v2368 = vmul.f32 %v2346, %v2365
    %s2369 = scalar_lea.vmem %s1, 848
    %v2370 = vld [vmem:[%s2369] sm:$0xff]
    %2372 = vset.pattern.permute.xlu0 0
    %2373 = vperm.xlu0 %2372, %v2370
    %v2374 = vpop.permute.xlu0 %2373
    %v2376 = vadd.f32 %v2367, %v2374
    %v2377 = vadd.f32 %v2368, %v2374
    %s2378 = scalar_lea.vmem %s1, 872
    %v2379 = vld [vmem:[%s2378] sm:$0xff]
    %2381 = vset.pattern.permute.xlu0 0
    %2382 = vperm.xlu0 %2381, %v2379
    %v2383 = vpop.permute.xlu0 %2382
    %v2385 = vmul.f32 %v2376, %v2383
    %v2386 = vmul.f32 %v2377, %v2383
    %s2387 = sld [smem:[#allocation2 + $0xb]]
    %vm2388 = vcmp.gt.f32.partialorder %v2385, 0.0
    %vm2389 = vcmp.gt.f32.partialorder %v2386, 0.0
    %v2390 = vstv %s2387
    %v2391 = vmul.f32 %v2390, %v2385
    %v2392 = vmul.f32 %v2390, %v2386
    %v2393 = vsel %vm2388, %v2385, %v2391
    %v2394 = vsel %vm2389, %v2386, %v2392
    %v2395 = vsel %vm120, %v2393, 0.0
    %2396 = vadd.xlane.f32.xlu0 %v2395
    %v2397 = vpop.xlane.xlu0 %2396
    %v2398 = vsel %vm120, %v2394, 0.0
    %2399 = vadd.xlane.f32.xlu0 %v2398
    %v2400 = vpop.xlane.xlu0 %2399
    %v2401 = vadd.f32 %v2397, %v2400
    %v2402 = vmul.f32 %v2401, 0.03125
    %v2403 = vsub.f32 %v2393, %v2402
    %v2404 = vsub.f32 %v2394, %v2402
    %v2405 = vmul.f32 %v2403, %v2403
    %v2406 = vmul.f32 %v2404, %v2404
    %v2407 = vsel %vm120, %v2405, 0.0
    %2408 = vadd.xlane.f32.xlu0 %v2407
    %v2409 = vpop.xlane.xlu0 %2408
    %v2410 = vsel %vm120, %v2406, 0.0
    %2411 = vadd.xlane.f32.xlu0 %v2410
    %v2412 = vpop.xlane.xlu0 %2411
    %v2413 = vadd.f32 %v2409, %v2412
    %v2414 = vmul.f32 %v2413, 0.03125
    %v2415 = vadd.f32 %v2414, 1e-05
    %v2416 = vrsqrt.pop %v2415
    %s2417 = scalar_lea.vmem %s1, 880
    %v2418 = vld [vmem:[%s2417] sm:$0xff]
    %v2419 = vmul.f32 %v2416, %v2418
    %s2420 = scalar_lea.vmem %s1, 888
    %v2421 = vld [vmem:[%s2420] sm:$0xff]
    %s2422 = scalar_lea.vmem %s1, 896
    %v2423 = vld [vmem:[%s2422] sm:$0xff]
    %v2424 = vlaneseq
    %v2425 = vshrl.u32 %v2424, 7
    %v2426 = vsub.s32 0, %v2425
    %v2427 = vrot.slane %v2421, %v2426
    %v2428 = vmul.f32 %v2423, %v2427
    %v2429 = vlaneseq
    %v2430 = vshrl.u32 %v2429, 7
    %v2431 = vsub.s32 0, %v2430
    %v2432 = vrot.slane %v2419, %v2431
    %v2433 = vmul.f32 %v2423, %v2432
    %v2434 = vlaneseq
    %v2435 = vshrl.u32 %v2434, 7
    %v2436 = vsub.s32 0, %v2435
    %v2437 = vrot.slane %v2403, %v2436
    %v2438 = vlaneseq
    %v2439 = vshrl.u32 %v2438, 7
    %v2440 = vsub.s32 0, %v2439
    %v2441 = vrot.slane %v2404, %v2440
    %2443 = vset.pattern.permute.xlu0 0
    %2444 = vperm.xlu0 %2443, %v2433
    %v2445 = vpop.permute.xlu0 %2444
    %v2447 = vmul.f32 %v2437, %v2445
    %v2448 = vmul.f32 %v2441, %v2445
    %s2449 = scalar_lea.vmem %s1, 904
    %v2450 = vld [vmem:[%s2449] sm:$0xff]
    %v2451 = vlaneseq
    %v2452 = vshrl.u32 %v2451, 7
    %v2453 = vsub.s32 1, %v2452
    %v2454 = vrot.slane %v2421, %v2453
    %v2455 = vmul.f32 %v2450, %v2454
    %v2456 = vadd.f32 %v2428, %v2455
    %v2457 = vlaneseq
    %v2458 = vshrl.u32 %v2457, 7
    %v2459 = vsub.s32 1, %v2458
    %v2460 = vrot.slane %v2419, %v2459
    %v2461 = vmul.f32 %v2450, %v2460
    %v2462 = vlaneseq
    %v2463 = vshrl.u32 %v2462, 7
    %v2464 = vsub.s32 1, %v2463
    %v2465 = vrot.slane %v2403, %v2464
    %v2466 = vlaneseq
    %v2467 = vshrl.u32 %v2466, 7
    %v2468 = vsub.s32 1, %v2467
    %v2469 = vrot.slane %v2404, %v2468
    %2471 = vset.pattern.permute.xlu0 0
    %2472 = vperm.xlu0 %2471, %v2461
    %v2473 = vpop.permute.xlu0 %2472
    %v2475 = vmul.f32 %v2465, %v2473
    %v2476 = vmul.f32 %v2469, %v2473
    %v2477 = vadd.f32 %v2447, %v2475
    %v2478 = vadd.f32 %v2448, %v2476
    %s2479 = scalar_lea.vmem %s1, 912
    %v2480 = vld [vmem:[%s2479] sm:$0xff]
    %v2481 = vlaneseq
    %v2482 = vshrl.u32 %v2481, 7
    %v2483 = vsub.s32 2, %v2482
    %v2484 = vrot.slane %v2421, %v2483
    %v2485 = vmul.f32 %v2480, %v2484
    %v2486 = vadd.f32 %v2456, %v2485
    %v2487 = vlaneseq
    %v2488 = vshrl.u32 %v2487, 7
    %v2489 = vsub.s32 2, %v2488
    %v2490 = vrot.slane %v2419, %v2489
    %v2491 = vmul.f32 %v2480, %v2490
    %v2492 = vlaneseq
    %v2493 = vshrl.u32 %v2492, 7
    %v2494 = vsub.s32 2, %v2493
    %v2495 = vrot.slane %v2403, %v2494
    %v2496 = vlaneseq
    %v2497 = vshrl.u32 %v2496, 7
    %v2498 = vsub.s32 2, %v2497
    %v2499 = vrot.slane %v2404, %v2498
    %2501 = vset.pattern.permute.xlu0 0
    %2502 = vperm.xlu0 %2501, %v2491
    %v2503 = vpop.permute.xlu0 %2502
    %v2505 = vmul.f32 %v2495, %v2503
    %v2506 = vmul.f32 %v2499, %v2503
    %v2507 = vadd.f32 %v2477, %v2505
    %v2508 = vadd.f32 %v2478, %v2506
    %s2509 = scalar_lea.vmem %s1, 920
    %v2510 = vld [vmem:[%s2509] sm:$0xff]
    %v2511 = vlaneseq
    %v2512 = vshrl.u32 %v2511, 7
    %v2513 = vsub.s32 3, %v2512
    %v2514 = vrot.slane %v2421, %v2513
    %v2515 = vmul.f32 %v2510, %v2514
    %v2516 = vadd.f32 %v2486, %v2515
    %v2517 = vlaneseq
    %v2518 = vshrl.u32 %v2517, 7
    %v2519 = vsub.s32 3, %v2518
    %v2520 = vrot.slane %v2419, %v2519
    %v2521 = vmul.f32 %v2510, %v2520
    %v2522 = vlaneseq
    %v2523 = vshrl.u32 %v2522, 7
    %v2524 = vsub.s32 3, %v2523
    %v2525 = vrot.slane %v2403, %v2524
    %v2526 = vlaneseq
    %v2527 = vshrl.u32 %v2526, 7
    %v2528 = vsub.s32 3, %v2527
    %v2529 = vrot.slane %v2404, %v2528
    %2531 = vset.pattern.permute.xlu0 0
    %2532 = vperm.xlu0 %2531, %v2521
    %v2533 = vpop.permute.xlu0 %2532
    %v2535 = vmul.f32 %v2525, %v2533
    %v2536 = vmul.f32 %v2529, %v2533
    %v2537 = vadd.f32 %v2507, %v2535
    %v2538 = vadd.f32 %v2508, %v2536
    %s2539 = scalar_lea.vmem %s1, 928
    %v2540 = vld [vmem:[%s2539] sm:$0xff]
    %v2541 = vlaneseq
    %v2542 = vshrl.u32 %v2541, 7
    %v2543 = vsub.s32 4, %v2542
    %v2544 = vrot.slane %v2421, %v2543
    %v2545 = vmul.f32 %v2540, %v2544
    %v2546 = vadd.f32 %v2516, %v2545
    %v2547 = vlaneseq
    %v2548 = vshrl.u32 %v2547, 7
    %v2549 = vsub.s32 4, %v2548
    %v2550 = vrot.slane %v2419, %v2549
    %v2551 = vmul.f32 %v2540, %v2550
    %v2552 = vlaneseq
    %v2553 = vshrl.u32 %v2552, 7
    %v2554 = vsub.s32 4, %v2553
    %v2555 = vrot.slane %v2403, %v2554
    %v2556 = vlaneseq
    %v2557 = vshrl.u32 %v2556, 7
    %v2558 = vsub.s32 4, %v2557
    %v2559 = vrot.slane %v2404, %v2558
    %2561 = vset.pattern.permute.xlu0 0
    %2562 = vperm.xlu0 %2561, %v2551
    %v2563 = vpop.permute.xlu0 %2562
    %v2565 = vmul.f32 %v2555, %v2563
    %v2566 = vmul.f32 %v2559, %v2563
    %v2567 = vadd.f32 %v2537, %v2565
    %v2568 = vadd.f32 %v2538, %v2566
    %s2569 = scalar_lea.vmem %s1, 936
    %v2570 = vld [vmem:[%s2569] sm:$0xff]
    %v2571 = vlaneseq
    %v2572 = vshrl.u32 %v2571, 7
    %v2573 = vsub.s32 5, %v2572
    %v2574 = vrot.slane %v2421, %v2573
    %v2575 = vmul.f32 %v2570, %v2574
    %v2576 = vadd.f32 %v2546, %v2575
    %v2577 = vlaneseq
    %v2578 = vshrl.u32 %v2577, 7
    %v2579 = vsub.s32 5, %v2578
    %v2580 = vrot.slane %v2419, %v2579
    %v2581 = vmul.f32 %v2570, %v2580
    %v2582 = vlaneseq
    %v2583 = vshrl.u32 %v2582, 7
    %v2584 = vsub.s32 5, %v2583
    %v2585 = vrot.slane %v2403, %v2584
    %v2586 = vlaneseq
    %v2587 = vshrl.u32 %v2586, 7
    %v2588 = vsub.s32 5, %v2587
    %v2589 = vrot.slane %v2404, %v2588
    %2591 = vset.pattern.permute.xlu0 0
    %2592 = vperm.xlu0 %2591, %v2581
    %v2593 = vpop.permute.xlu0 %2592
    %v2595 = vmul.f32 %v2585, %v2593
    %v2596 = vmul.f32 %v2589, %v2593
    %v2597 = vadd.f32 %v2567, %v2595
    %v2598 = vadd.f32 %v2568, %v2596
    %s2599 = scalar_lea.vmem %s1, 944
    %v2600 = vld [vmem:[%s2599] sm:$0xff]
    %v2601 = vlaneseq
    %v2602 = vshrl.u32 %v2601, 7
    %v2603 = vsub.s32 6, %v2602
    %v2604 = vrot.slane %v2421, %v2603
    %v2605 = vmul.f32 %v2600, %v2604
    %v2606 = vadd.f32 %v2576, %v2605
    %v2607 = vlaneseq
    %v2608 = vshrl.u32 %v2607, 7
    %v2609 = vsub.s32 6, %v2608
    %v2610 = vrot.slane %v2419, %v2609
    %v2611 = vmul.f32 %v2600, %v2610
    %v2612 = vlaneseq
    %v2613 = vshrl.u32 %v2612, 7
    %v2614 = vsub.s32 6, %v2613
    %v2615 = vrot.slane %v2403, %v2614
    %v2616 = vlaneseq
    %v2617 = vshrl.u32 %v2616, 7
    %v2618 = vsub.s32 6, %v2617
    %v2619 = vrot.slane %v2404, %v2618
    %2621 = vset.pattern.permute.xlu0 0
    %2622 = vperm.xlu0 %2621, %v2611
    %v2623 = vpop.permute.xlu0 %2622
    %v2625 = vmul.f32 %v2615, %v2623
    %v2626 = vmul.f32 %v2619, %v2623
    %v2627 = vadd.f32 %v2597, %v2625
    %v2628 = vadd.f32 %v2598, %v2626
    %s2629 = scalar_lea.vmem %s1, 952
    %v2630 = vld [vmem:[%s2629] sm:$0xff]
    %v2631 = vlaneseq
    %v2632 = vshrl.u32 %v2631, 7
    %v2633 = vsub.s32 7, %v2632
    %v2634 = vrot.slane %v2421, %v2633
    %v2635 = vmul.f32 %v2630, %v2634
    %v2636 = vadd.f32 %v2606, %v2635
    %v2637 = vlaneseq
    %v2638 = vshrl.u32 %v2637, 7
    %v2639 = vsub.s32 7, %v2638
    %v2640 = vrot.slane %v2419, %v2639
    %v2641 = vmul.f32 %v2630, %v2640
    %v2642 = vlaneseq
    %v2643 = vshrl.u32 %v2642, 7
    %v2644 = vsub.s32 7, %v2643
    %v2645 = vrot.slane %v2403, %v2644
    %v2646 = vlaneseq
    %v2647 = vshrl.u32 %v2646, 7
    %v2648 = vsub.s32 7, %v2647
    %v2649 = vrot.slane %v2404, %v2648
    %2651 = vset.pattern.permute.xlu0 0
    %2652 = vperm.xlu0 %2651, %v2641
    %v2653 = vpop.permute.xlu0 %2652
    %v2655 = vmul.f32 %v2645, %v2653
    %v2656 = vmul.f32 %v2649, %v2653
    %v2657 = vadd.f32 %v2627, %v2655
    %v2658 = vadd.f32 %v2628, %v2656
    %2660 = vset.pattern.permute.xlu0 0
    %2661 = vperm.xlu0 %2660, %v2636
    %v2662 = vpop.permute.xlu0 %2661
    %v2664 = vadd.f32 %v2657, %v2662
    %v2665 = vadd.f32 %v2658, %v2662
    %v2666 = vadd.f32 %v2244, %v2664
    %v2667 = vadd.f32 %v2245, %v2665
    %vm2668 = vcmask 125952
    %2669 = vst.msk [vmem:[#allocation5] sm:$0xf] %vm2668, %v2666
    %2670 = vst.msk [vmem:[#allocation5 + $0x4] sm:$0xf] %vm2668, %v2667
    // Predicated region
    $region18: #{res_temporal_pallas.1} parent=1 // pred_check
      _
    $region19: #{res_temporal_pallas.1} parent=1 // pred_check_branch
      %2672 = sbr.rel (0) target = $region21
    $region20: #{res_temporal_pallas.1} parent=1 // pred_region
      %s2674 = ssub.s32 128, 128
      %2675 = vsyncadd [#allocation3], %s2674
      %s2676 = sshll.u32 [#allocation5], 4
      %s2677 = int_to_ptr.vmem [resolvable:$true] %s2676
      %2682 = dma.vmem_to_hbm [thread:$0]  %s2677, 128, %s3, [#allocation3], 64, 64, 4
    $region21: #{res_temporal_pallas.1} parent=1 // pred_fallthru
      _
    // Predicated region
    $region22: #{res_temporal_pallas.1} parent=1 // pred_check
      _
    $region23: #{res_temporal_pallas.1} parent=1 // pred_check_branch
      %2684 = sbr.rel (0) target = $region25
    $region24: #{res_temporal_pallas.1} parent=1 // pred_region
      %2685 = dma.done [#allocation3], 128
    $region25: #{res_temporal_pallas.1} parent=1 // pred_fallthru
      _
    %2686 = vsyncpa [#allocation3], 1
    %2687 = vsyncpa [#allocation4], 1

</llo_original>
